<compile_context>
chip_gen: v5e
topology: v5e:2x2
jax: 0.10.0
libtpu: 0.0.40
codegen_flags: <defaults>
</compile_context>

<pallas_src>
import jax
import jax.numpy as jnp
from jax.experimental import pallas as pl
from jax.experimental.pallas import tpu as pltpu

_BN_EPS = 1e-5
_NEG_SLOPE = 0.2

# Static per-block config of the Classifier: Conv2d(k=4), strides 2/2/3/2,
# BatchNorm2d + LeakyReLU(0.2) on all but the final block.
_CFG = ((4, 2, False), (4, 2, False), (4, 3, False), (4, 2, True))


def _round_up(x, m):
    return (x + m - 1) // m * m


def _cdiv(a, b):
    return -(-a // b)


# ---------------------------------------------------------------------------
# Generation dispatch: scoped VMEM limit + max conv-tile rows.
# ---------------------------------------------------------------------------
_BUDGET_CACHE = []


def _vmem_budget():
    if _BUDGET_CACHE:
        return _BUDGET_CACHE[0]
    phys = 64 * 1024 * 1024
    try:
        phys = int(pltpu.get_tpu_info().vmem_capacity_bytes)
    except Exception:
        pass
    if phys > 96 * 1024 * 1024:          # v5e / v6e: 128 MiB physical VMEM
        cfg = (64 * 1024 * 1024, 2048)
    else:                                # v7x-class (64 MiB) or unknown: conservative
        cfg = (32 * 1024 * 1024, 1024)
    _BUDGET_CACHE.append(cfg)
    return cfg


def _lane_mode(c):
    if c % 128 == 0:
        return "wide"    # channel-last layout is already lane-dense
    if c < 128 and 128 % c == 0:
        return "pack"    # view (m*c/128, 128), channel pattern repeats every c lanes
    return "plain"


def _pick_tiling(m, kdim, c, vmem_limit, tm_cap):
    mode = _lane_mode(c)
    align = max(8, 1024 // c) if mode == "pack" else 8
    # double-buffered bf16 patches + bf16 y per row, plus the f32 accumulator.
    per_row = 2 * (kdim * 2 + c * 2) + c * 4
    budget_rows = max(align, (vmem_limit // 2) // max(per_row, 1))
    tm_max = max(align, min(tm_cap, budget_rows) // align * align)
    nt = max(2, _cdiv(m, tm_max))              # >=2 grid steps -> v7x megacore can split
    tm = min(tm_max, _round_up(_cdiv(m, nt), align))
    m_pad = _round_up(m, tm)
    return tm, m_pad, mode


# ---------------------------------------------------------------------------
# Fused small-shape kernel: conv-as-matmul + exact two-pass BN + LeakyReLU,
# everything resident in VMEM, one pallas_call per block.
# ---------------------------------------------------------------------------
def _fused_conv_bn_lrelu_kernel(p_ref, w_ref, gamma_ref, beta_ref, o_ref):
    y = jnp.dot(p_ref[...], w_ref[...], preferred_element_type=jnp.float32)
    mean = jnp.mean(y, axis=0, keepdims=True)
    d = y - mean
    var = jnp.mean(d * d, axis=0, keepdims=True)       # exact centered variance
    scale = gamma_ref[...] * jax.lax.rsqrt(var + _BN_EPS)
    z = d * scale + beta_ref[...]
    o_ref[...] = jnp.maximum(z, _NEG_SLOPE * z).astype(o_ref.dtype)


def conv_bn_lrelu_fused(patches, w2d, gamma, beta, vmem_limit):
    mp, kdim = patches.shape
    c = w2d.shape[1]
    return pl.pallas_call(
        _fused_conv_bn_lrelu_kernel,
        grid=(1,),
        out_shape=jax.ShapeDtypeStruct((mp, c), jnp.bfloat16),
        in_specs=[
            pl.BlockSpec((mp, kdim), lambda i: (0, 0)),
            pl.BlockSpec((kdim, c), lambda i: (0, 0)),
            pl.BlockSpec((1, c), lambda i: (0, 0)),
            pl.BlockSpec((1, c), lambda i: (0, 0)),
        ],
        out_specs=pl.BlockSpec((mp, c), lambda i: (0, 0)),
        compiler_params=pltpu.CompilerParams(
            dimension_semantics=("arbitrary",),
            vmem_limit_bytes=vmem_limit,
        ),
    )(patches, w2d, gamma, beta)


# ---------------------------------------------------------------------------
# Tiled path, kernel 1: conv-as-matmul (bf16 in, f32 acc) + per-tile BN partial
# statistics; y is stored in bf16 (written once, read once by kernel 2).
# ---------------------------------------------------------------------------
def _conv_stats_kernel(p_ref, w_ref, y_ref, sum_ref, sumsq_ref):
    y = jnp.dot(p_ref[...], w_ref[...], preferred_element_type=jnp.float32)
    c = y.shape[-1]
    sum_ref[...] = jnp.sum(y, axis=0, keepdims=True).reshape(1, 1, c)
    sumsq_ref[...] = jnp.sum(y * y, axis=0, keepdims=True).reshape(1, 1, c)
    y_ref[...] = y.astype(y_ref.dtype)


def conv_stats_pallas(patches, w2d, tm, vmem_limit):
    mp, kdim = patches.shape
    c = w2d.shape[1]
    nt = mp // tm
    return pl.pallas_call(
        _conv_stats_kernel,
        grid=(nt,),
        out_shape=(
            jax.ShapeDtypeStruct((mp, c), jnp.bfloat16),     # raw conv output (bf16)
            jax.ShapeDtypeStruct((nt, 1, c), jnp.float32),   # per-tile sum
            jax.ShapeDtypeStruct((nt, 1, c), jnp.float32),   # per-tile sum of squares
        ),
        in_specs=[
            pl.BlockSpec((tm, kdim), lambda i: (i, 0)),
            pl.BlockSpec((kdim, c), lambda i: (0, 0)),        # weights stay resident
        ],
        out_specs=(
            pl.BlockSpec((tm, c), lambda i: (i, 0)),
            pl.BlockSpec((1, 1, c), lambda i: (i, 0, 0)),
            pl.BlockSpec((1, 1, c), lambda i: (i, 0, 0)),
        ),
        compiler_params=pltpu.CompilerParams(
            dimension_semantics=("parallel",),
            vmem_limit_bytes=vmem_limit,
        ),
    )(patches, w2d)


# ---------------------------------------------------------------------------
# Tiled path, kernel 2: folded BN (single FMA) + LeakyReLU(0.2).
# f32 compute (v5e-safe), bf16 at the store.  Fed lane-dense views.
# ---------------------------------------------------------------------------
def _bn_lrelu_kernel(y_ref, scale_ref, shift_ref, o_ref):
    z = y_ref[...].astype(jnp.float32) * scale_ref[...] + shift_ref[...]
    o_ref[...] = jnp.maximum(z, _NEG_SLOPE * z).astype(o_ref.dtype)


def bn_lrelu_pallas(yv, scale_row, shift_row, tr, vmem_limit):
    r, lanes = yv.shape
    nt = r // tr
    return pl.pallas_call(
        _bn_lrelu_kernel,
        grid=(nt,),
        out_shape=jax.ShapeDtypeStruct((r, lanes), jnp.bfloat16),
        in_specs=[
            pl.BlockSpec((tr, lanes), lambda i: (i, 0)),
            pl.BlockSpec((1, lanes), lambda i: (0, 0)),
            pl.BlockSpec((1, lanes), lambda i: (0, 0)),
        ],
        out_specs=pl.BlockSpec((tr, lanes), lambda i: (i, 0)),
        compiler_params=pltpu.CompilerParams(
            dimension_semantics=("parallel",),
            vmem_limit_bytes=vmem_limit,
        ),
    )(yv, scale_row, shift_row)


# ---------------------------------------------------------------------------
# XLA glue: NHWC im2col with (kh, kw, C) patch ordering (no per-block transposes).
# ---------------------------------------------------------------------------
def im2col_nhwc(x, k, stride):
    n, h, w, c = x.shape
    ho = (h - k) // stride + 1
    wo = (w - k) // stride + 1
    cols = []
    for dh in range(k):
        for dw in range(k):
            cols.append(x[:, dh:dh + stride * (ho - 1) + 1:stride,
                             dw:dw + stride * (wo - 1) + 1:stride, :])
    p = jnp.stack(cols, axis=3)                       # (N, Ho, Wo, k*k, C)
    return p.reshape(n * ho * wo, k * k * c), ho, wo


def init_params(key, im_chan=3, n_classes=2, hidden_dim=16):
    chans = [im_chan, hidden_dim, hidden_dim * 2, hidden_dim * 4, n_classes]
    params = []
    for i, (k, stride, final) in enumerate(_CFG):
        cin, cout = chans[i], chans[i + 1]
        key, wk, bk = jax.random.split(key, 3)
        fan_in = cin * k * k
        bound = 1.0 / (fan_in ** 0.5)
        w = jax.random.uniform(wk, (cout, cin, k, k), jnp.float32, -bound, bound)
        params.append(dict(
            w=w,                                                             # f32 OIHW (reference)
            w2d=w.transpose(2, 3, 1, 0).reshape(k * k * cin, cout)          # (kh,kw,cin) x cout
                 .astype(jnp.bfloat16),
            b=jax.random.uniform(bk, (cout,), jnp.float32, -bound, bound),
            gamma=jnp.ones((cout,), jnp.float32),
            beta=jnp.zeros((cout,), jnp.float32),
        ))
    return params


def classifier_forward(x, params, force_tiled=False):
    """Pallas equivalent of Classifier.forward; x is NCHW, returns (N, n_classes)."""
    vmem_limit, tm_cap = _vmem_budget()
    n = x.shape[0]
    h = jnp.transpose(x, (0, 2, 3, 1)).astype(jnp.bfloat16)    # NHWC end-to-end, bf16
    for (k, stride, final), p in zip(_CFG, params):
        patches, ho, wo = im2col_nhwc(h, k, stride)
        m, kdim = patches.shape
        cout = p['w2d'].shape[1]

        if final:
            # Tiny (N x K x n_classes) matvec, no BN / activation: left to XLA.
            y = jnp.dot(patches, p['w2d'], preferred_element_type=jnp.float32)
            h = (y + p['b'][None, :]).reshape(n, ho, wo, cout)
            continue

        # Fused single-call path when the whole block fits comfortably in VMEM.
        fused_bytes = (2 * (m * kdim * 2 + kdim * cout * 2 + m * cout * 2 + 2 * cout * 4)
                       + m * cout * 4)
        if (not force_tiled) and fused_bytes < vmem_limit // 2:
            z = conv_bn_lrelu_fused(patches, p['w2d'],
                                    p['gamma'].reshape(1, cout),
                                    p['beta'].reshape(1, cout), vmem_limit)
            h = z.reshape(n, ho, wo, cout)
            continue

        # ---------------- tiled large-shape path ----------------
        tm, m_pad, mode = _pick_tiling(m, kdim, cout, vmem_limit, tm_cap)
        if m_pad != m:
            # Zero rows contribute nothing to sum/sumsq (no bias in-kernel), so the
            # padded tail is statistics-neutral and sliced off below.
            patches = jnp.pad(patches, ((0, m_pad - m), (0, 0)))
        y, psum, psumsq = conv_stats_pallas(patches, p['w2d'], tm, vmem_limit)

        # Fold train-mode BatchNorm (biased stats over ALL real rows) into scale/shift.
        # The conv bias is omitted: it is cancelled exactly by the mean subtraction.
        mean = jnp.sum(psum, axis=0).reshape(cout) / m
        var = jnp.sum(psumsq, axis=0).reshape(cout) / m - mean * mean
        var = jnp.maximum(var, 0.0)
        scale = (p['gamma'] * jax.lax.rsqrt(var + _BN_EPS)).reshape(1, cout)
        shift = (p['beta'] - mean * p['gamma'] * jax.lax.rsqrt(var + _BN_EPS)).reshape(1, cout)

        if mode == "pack":
            # Lane-dense view: (m_pad*c/128, 128); channel pattern repeats every c lanes.
            rep = 128 // cout
            yv = y.reshape(m_pad * cout // 128, 128)
            zv = bn_lrelu_pallas(yv, jnp.tile(scale, (1, rep)), jnp.tile(shift, (1, rep)),
                                 tm * cout // 128, vmem_limit)
            z = zv.reshape(m_pad, cout)
        else:
            # "wide" (cout % 128 == 0) is already lane-dense; "plain" is the fallback.
            z = bn_lrelu_pallas(y, scale, shift, tm, vmem_limit)
        h = z[:m].reshape(n, ho, wo, cout)

    # Match class_pred.view(len, -1): flatten in NCHW (C, H, W) order.
    return jnp.transpose(h, (0, 3, 1, 2)).reshape(n, -1).astype(jnp.float32)


def reference_forward(x, params, eps=_BN_EPS):
    """Pure-JAX f32 reference with the original module's semantics."""
    h = x
    for (k, stride, final), p in zip(_CFG, params):
        h = jax.lax.conv_general_dilated(
            h, p['w'], (stride, stride), 'VALID',
            dimension_numbers=('NCHW', 'OIHW', 'NCHW'),
            precision=jax.lax.Precision.HIGHEST)
        h = h + p['b'][None, :, None, None]
        if not final:
            mean = jnp.mean(h, axis=(0, 2, 3), keepdims=True)
            var = jnp.mean((h - mean) ** 2, axis=(0, 2, 3), keepdims=True)
            h = (h - mean) * jax.lax.rsqrt(var + eps)
            h = h * p['gamma'][None, :, None, None] + p['beta'][None, :, None, None]
            h = jnp.where(h > 0, h, _NEG_SLOPE * h)
    return h.reshape(h.shape[0], -1)


if __name__ == "__main__":
    key = jax.random.PRNGKey(0)
    pkey, xkey = jax.random.split(key)

    # Small shapes: the stride-2/2/3/2 k=4 convs need spatial >= 58; use 64.
    batch, im_chan, n_classes, hidden_dim, spatial = 2, 3, 2, 16, 64
    x = jax.random.normal(xkey, (batch, im_chan, spatial, spatial), jnp.float32)
    params = init_params(pkey, im_chan=im_chan, n_classes=n_classes,
                         hidden_dim=hidden_dim)

    fwd = jax.jit(classifier_forward, static_argnames=("force_tiled",))
    out_fused = jax.block_until_ready(fwd(x, params))                      # fused VMEM path
    out_tiled = jax.block_until_ready(fwd(x, params, force_tiled=True))    # tiled path
    assert out_fused.shape == (batch, n_classes), out_fused.shape
    assert out_tiled.shape == (batch, n_classes), out_tiled.shape

    ref = jax.block_until_ready(reference_forward(x, params))
    # bf16 MXU path vs. an f32-HIGHEST reference: loosened (but still tight) tolerance.
    assert jnp.allclose(out_fused, ref, atol=5e-2, rtol=5e-2), (out_fused, ref)
    assert jnp.allclose(out_tiled, ref, atol=5e-2, rtol=5e-2), (out_tiled, ref)

    print("KERNEL_OK")
</pallas_src>

<mosaic_0001>
module attributes {stable_mosaic.version = 11 : i64} {
  func.func @_fused_conv_bn_lrelu_kernel(%arg0: i32, %arg1: memref<1922x48xbf16, #tpu.memory_space<vmem>>, %arg2: memref<48x16xbf16, #tpu.memory_space<vmem>>, %arg3: memref<1x16xf32, #tpu.memory_space<vmem>>, %arg4: memref<1x16xf32, #tpu.memory_space<vmem>>, %arg5: memref<1922x16xbf16, #tpu.memory_space<vmem>>) attributes {dimension_semantics = [#tpu.dimension_semantics<arbitrary>], iteration_bounds = array<i64: 1>, scalar_prefetch = 0 : i64, scratch_operands = 0 : i64, tpu.core_type = #tpu.core_type<tc>, window_params = [{pipeline_mode = #tpu.pipeline_mode<synchronous>, transform_indices = @transform_0, window_bounds = array<i64: 1922, 48>}, {pipeline_mode = #tpu.pipeline_mode<synchronous>, transform_indices = @transform_1, window_bounds = array<i64: 48, 16>}, {pipeline_mode = #tpu.pipeline_mode<synchronous>, transform_indices = @transform_2, window_bounds = array<i64: 1, 16>}, {pipeline_mode = #tpu.pipeline_mode<synchronous>, transform_indices = @transform_3, window_bounds = array<i64: 1, 16>}, {pipeline_mode = #tpu.pipeline_mode<synchronous>, transform_indices = @transform_4, window_bounds = array<i64: 1922, 16>}]} {
    %c0 = arith.constant 0 : index
    %c0_0 = arith.constant 0 : index
    %0 = vector.load %arg1[%c0, %c0_0] : memref<1922x48xbf16, #tpu.memory_space<vmem>>, vector<1922x48xbf16>
    %c0_1 = arith.constant 0 : index
    %c0_2 = arith.constant 0 : index
    %1 = vector.load %arg2[%c0_1, %c0_2] : memref<48x16xbf16, #tpu.memory_space<vmem>>, vector<48x16xbf16>
    %cst = arith.constant dense<0.000000e+00> : vector<1922x16xf32>
    %2 = tpu.matmul %0, %1, %cst {dimension_numbers = #tpu.dot_dimension_numbers<[1], [0], [0], [1], [0, 0, 1, 1], [], []>} : vector<1922x48xbf16>, vector<48x16xbf16>, vector<1922x16xf32> -> vector<1922x16xf32>
    %cst_3 = arith.constant dense<0.000000e+00> : vector<16xf32>
    %3 = vector.multi_reduction <add>, %2, %cst_3 [0] : vector<1922x16xf32> to vector<16xf32>
    %4 = vector.shape_cast %3 : vector<16xf32> to vector<1x16xf32>
    %cst_4 = arith.constant 1.922000e+03 : f32
    %5 = vector.broadcast %cst_4 : f32 to vector<1x16xf32>
    %6 = arith.divf %4, %5 : vector<1x16xf32>
    %7 = vector.broadcast %6 : vector<1x16xf32> to vector<1922x16xf32>
    %8 = arith.subf %2, %7 : vector<1922x16xf32>
    %9 = arith.mulf %8, %8 : vector<1922x16xf32>
    %cst_5 = arith.constant dense<0.000000e+00> : vector<16xf32>
    %10 = vector.multi_reduction <add>, %9, %cst_5 [0] : vector<1922x16xf32> to vector<16xf32>
    %11 = vector.shape_cast %10 : vector<16xf32> to vector<1x16xf32>
    %cst_6 = arith.constant 1.922000e+03 : f32
    %12 = vector.broadcast %cst_6 : f32 to vector<1x16xf32>
    %13 = arith.divf %11, %12 : vector<1x16xf32>
    %c0_7 = arith.constant 0 : index
    %c0_8 = arith.constant 0 : index
    %14 = vector.load %arg3[%c0_7, %c0_8] : memref<1x16xf32, #tpu.memory_space<vmem>>, vector<1x16xf32>
    %cst_9 = arith.constant 9.99999974E-6 : f32
    %15 = vector.broadcast %cst_9 : f32 to vector<1x16xf32>
    %16 = arith.addf %13, %15 : vector<1x16xf32>
    %17 = math.rsqrt %16 : vector<1x16xf32>
    %18 = arith.mulf %14, %17 : vector<1x16xf32>
    %19 = vector.broadcast %18 : vector<1x16xf32> to vector<1922x16xf32>
    %20 = arith.mulf %8, %19 : vector<1922x16xf32>
    %c0_10 = arith.constant 0 : index
    %c0_11 = arith.constant 0 : index
    %21 = vector.load %arg4[%c0_10, %c0_11] : memref<1x16xf32, #tpu.memory_space<vmem>>, vector<1x16xf32>
    %22 = vector.broadcast %21 : vector<1x16xf32> to vector<1922x16xf32>
    %23 = arith.addf %20, %22 : vector<1922x16xf32>
    %cst_12 = arith.constant 2.000000e-01 : f32
    %24 = vector.broadcast %cst_12 : f32 to vector<1922x16xf32>
    %25 = arith.mulf %24, %23 : vector<1922x16xf32>
    %26 = arith.maximumf %23, %25 : vector<1922x16xf32>
    %27 = arith.truncf %26 : vector<1922x16xf32> to vector<1922x16xbf16>
    %c0_13 = arith.constant 0 : index
    %c0_14 = arith.constant 0 : index
    %28 = vector.load %arg5[%c0_13, %c0_14] : memref<1922x16xbf16, #tpu.memory_space<vmem>>, vector<1922x16xbf16>
    tpu.vector_store %arg5[%c0_13, %c0_14], %27 {strides = array<i32>} : memref<1922x16xbf16, #tpu.memory_space<vmem>>, vector<1922x16xbf16>,
    return
  }
  func.func @transform_0(%arg0: i32) -> (i32, i32) {
    %c0_i32 = arith.constant 0 : i32
    %c0_i32_0 = arith.constant 0 : i32
    %c0_i32_1 = arith.constant 0 : i32
    return %c0_i32, %c0_i32_0 : i32, i32
  }
  func.func @transform_1(%arg0: i32) -> (i32, i32) {
    %c0_i32 = arith.constant 0 : i32
    %c0_i32_0 = arith.constant 0 : i32
    %c0_i32_1 = arith.constant 0 : i32
    return %c0_i32, %c0_i32_0 : i32, i32
  }
  func.func @transform_2(%arg0: i32) -> (i32, i32) {
    %c0_i32 = arith.constant 0 : i32
    %c0_i32_0 = arith.constant 0 : i32
    %c0_i32_1 = arith.constant 0 : i32
    return %c0_i32, %c0_i32_0 : i32, i32
  }
  func.func @transform_3(%arg0: i32) -> (i32, i32) {
    %c0_i32 = arith.constant 0 : i32
    %c0_i32_0 = arith.constant 0 : i32
    %c0_i32_1 = arith.constant 0 : i32
    return %c0_i32, %c0_i32_0 : i32, i32
  }
  func.func @transform_4(%arg0: i32) -> (i32, i32) {
    %c0_i32 = arith.constant 0 : i32
    %c0_i32_0 = arith.constant 0 : i32
    %c0_i32_1 = arith.constant 0 : i32
    return %c0_i32, %c0_i32_0 : i32, i32
  }
}

module attributes {stable_mosaic.version = 11 : i64} {
  func.func @_fused_conv_bn_lrelu_kernel(%arg0: i32, %arg1: memref<392x256xbf16, #tpu.memory_space<vmem>>, %arg2: memref<256x32xbf16, #tpu.memory_space<vmem>>, %arg3: memref<1x32xf32, #tpu.memory_space<vmem>>, %arg4: memref<1x32xf32, #tpu.memory_space<vmem>>, %arg5: memref<392x32xbf16, #tpu.memory_space<vmem>>) attributes {dimension_semantics = [#tpu.dimension_semantics<arbitrary>], iteration_bounds = array<i64: 1>, scalar_prefetch = 0 : i64, scratch_operands = 0 : i64, tpu.core_type = #tpu.core_type<tc>, window_params = [{pipeline_mode = #tpu.pipeline_mode<synchronous>, transform_indices = @transform_0, window_bounds = array<i64: 392, 256>}, {pipeline_mode = #tpu.pipeline_mode<synchronous>, transform_indices = @transform_1, window_bounds = array<i64: 256, 32>}, {pipeline_mode = #tpu.pipeline_mode<synchronous>, transform_indices = @transform_2, window_bounds = array<i64: 1, 32>}, {pipeline_mode = #tpu.pipeline_mode<synchronous>, transform_indices = @transform_3, window_bounds = array<i64: 1, 32>}, {pipeline_mode = #tpu.pipeline_mode<synchronous>, transform_indices = @transform_4, window_bounds = array<i64: 392, 32>}]} {
    %c0 = arith.constant 0 : index
    %c0_0 = arith.constant 0 : index
    %0 = vector.load %arg1[%c0, %c0_0] : memref<392x256xbf16, #tpu.memory_space<vmem>>, vector<392x256xbf16>
    %c0_1 = arith.constant 0 : index
    %c0_2 = arith.constant 0 : index
    %1 = vector.load %arg2[%c0_1, %c0_2] : memref<256x32xbf16, #tpu.memory_space<vmem>>, vector<256x32xbf16>
    %cst = arith.constant dense<0.000000e+00> : vector<392x32xf32>
    %2 = tpu.matmul %0, %1, %cst {dimension_numbers = #tpu.dot_dimension_numbers<[1], [0], [0], [1], [0, 0, 1, 1], [], []>} : vector<392x256xbf16>, vector<256x32xbf16>, vector<392x32xf32> -> vector<392x32xf32>
    %cst_3 = arith.constant dense<0.000000e+00> : vector<32xf32>
    %3 = vector.multi_reduction <add>, %2, %cst_3 [0] : vector<392x32xf32> to vector<32xf32>
    %4 = vector.shape_cast %3 : vector<32xf32> to vector<1x32xf32>
    %cst_4 = arith.constant 3.920000e+02 : f32
    %5 = vector.broadcast %cst_4 : f32 to vector<1x32xf32>
    %6 = arith.divf %4, %5 : vector<1x32xf32>
    %7 = vector.broadcast %6 : vector<1x32xf32> to vector<392x32xf32>
    %8 = arith.subf %2, %7 : vector<392x32xf32>
    %9 = arith.mulf %8, %8 : vector<392x32xf32>
    %cst_5 = arith.constant dense<0.000000e+00> : vector<32xf32>
    %10 = vector.multi_reduction <add>, %9, %cst_5 [0] : vector<392x32xf32> to vector<32xf32>
    %11 = vector.shape_cast %10 : vector<32xf32> to vector<1x32xf32>
    %cst_6 = arith.constant 3.920000e+02 : f32
    %12 = vector.broadcast %cst_6 : f32 to vector<1x32xf32>
    %13 = arith.divf %11, %12 : vector<1x32xf32>
    %c0_7 = arith.constant 0 : index
    %c0_8 = arith.constant 0 : index
    %14 = vector.load %arg3[%c0_7, %c0_8] : memref<1x32xf32, #tpu.memory_space<vmem>>, vector<1x32xf32>
    %cst_9 = arith.constant 9.99999974E-6 : f32
    %15 = vector.broadcast %cst_9 : f32 to vector<1x32xf32>
    %16 = arith.addf %13, %15 : vector<1x32xf32>
    %17 = math.rsqrt %16 : vector<1x32xf32>
    %18 = arith.mulf %14, %17 : vector<1x32xf32>
    %19 = vector.broadcast %18 : vector<1x32xf32> to vector<392x32xf32>
    %20 = arith.mulf %8, %19 : vector<392x32xf32>
    %c0_10 = arith.constant 0 : index
    %c0_11 = arith.constant 0 : index
    %21 = vector.load %arg4[%c0_10, %c0_11] : memref<1x32xf32, #tpu.memory_space<vmem>>, vector<1x32xf32>
    %22 = vector.broadcast %21 : vector<1x32xf32> to vector<392x32xf32>
    %23 = arith.addf %20, %22 : vector<392x32xf32>
    %cst_12 = arith.constant 2.000000e-01 : f32
    %24 = vector.broadcast %cst_12 : f32 to vector<392x32xf32>
    %25 = arith.mulf %24, %23 : vector<392x32xf32>
    %26 = arith.maximumf %23, %25 : vector<392x32xf32>
    %27 = arith.truncf %26 : vector<392x32xf32> to vector<392x32xbf16>
    %c0_13 = arith.constant 0 : index
    %c0_14 = arith.constant 0 : index
    %28 = vector.load %arg5[%c0_13, %c0_14] : memref<392x32xbf16, #tpu.memory_space<vmem>>, vector<392x32xbf16>
    tpu.vector_store %arg5[%c0_13, %c0_14], %27 {strides = array<i32>} : memref<392x32xbf16, #tpu.memory_space<vmem>>, vector<392x32xbf16>,
    return
  }
  func.func @transform_0(%arg0: i32) -> (i32, i32) {
    %c0_i32 = arith.constant 0 : i32
    %c0_i32_0 = arith.constant 0 : i32
    %c0_i32_1 = arith.constant 0 : i32
    return %c0_i32, %c0_i32_0 : i32, i32
  }
  func.func @transform_1(%arg0: i32) -> (i32, i32) {
    %c0_i32 = arith.constant 0 : i32
    %c0_i32_0 = arith.constant 0 : i32
    %c0_i32_1 = arith.constant 0 : i32
    return %c0_i32, %c0_i32_0 : i32, i32
  }
  func.func @transform_2(%arg0: i32) -> (i32, i32) {
    %c0_i32 = arith.constant 0 : i32
    %c0_i32_0 = arith.constant 0 : i32
    %c0_i32_1 = arith.constant 0 : i32
    return %c0_i32, %c0_i32_0 : i32, i32
  }
  func.func @transform_3(%arg0: i32) -> (i32, i32) {
    %c0_i32 = arith.constant 0 : i32
    %c0_i32_0 = arith.constant 0 : i32
    %c0_i32_1 = arith.constant 0 : i32
    return %c0_i32, %c0_i32_0 : i32, i32
  }
  func.func @transform_4(%arg0: i32) -> (i32, i32) {
    %c0_i32 = arith.constant 0 : i32
    %c0_i32_0 = arith.constant 0 : i32
    %c0_i32_1 = arith.constant 0 : i32
    return %c0_i32, %c0_i32_0 : i32, i32
  }
}

module attributes {stable_mosaic.version = 11 : i64} {
  func.func @_fused_conv_bn_lrelu_kernel(%arg0: i32, %arg1: memref<32x512xbf16, #tpu.memory_space<vmem>>, %arg2: memref<512x64xbf16, #tpu.memory_space<vmem>>, %arg3: memref<1x64xf32, #tpu.memory_space<vmem>>, %arg4: memref<1x64xf32, #tpu.memory_space<vmem>>, %arg5: memref<32x64xbf16, #tpu.memory_space<vmem>>) attributes {dimension_semantics = [#tpu.dimension_semantics<arbitrary>], iteration_bounds = array<i64: 1>, scalar_prefetch = 0 : i64, scratch_operands = 0 : i64, tpu.core_type = #tpu.core_type<tc>, window_params = [{pipeline_mode = #tpu.pipeline_mode<synchronous>, transform_indices = @transform_0, window_bounds = array<i64: 32, 512>}, {pipeline_mode = #tpu.pipeline_mode<synchronous>, transform_indices = @transform_1, window_bounds = array<i64: 512, 64>}, {pipeline_mode = #tpu.pipeline_mode<synchronous>, transform_indices = @transform_2, window_bounds = array<i64: 1, 64>}, {pipeline_mode = #tpu.pipeline_mode<synchronous>, transform_indices = @transform_3, window_bounds = array<i64: 1, 64>}, {pipeline_mode = #tpu.pipeline_mode<synchronous>, transform_indices = @transform_4, window_bounds = array<i64: 32, 64>}]} {
    %c0 = arith.constant 0 : index
    %c0_0 = arith.constant 0 : index
    %0 = vector.load %arg1[%c0, %c0_0] : memref<32x512xbf16, #tpu.memory_space<vmem>>, vector<32x512xbf16>
    %c0_1 = arith.constant 0 : index
    %c0_2 = arith.constant 0 : index
    %1 = vector.load %arg2[%c0_1, %c0_2] : memref<512x64xbf16, #tpu.memory_space<vmem>>, vector<512x64xbf16>
    %cst = arith.constant dense<0.000000e+00> : vector<32x64xf32>
    %2 = tpu.matmul %0, %1, %cst {dimension_numbers = #tpu.dot_dimension_numbers<[1], [0], [0], [1], [0, 0, 1, 1], [], []>} : vector<32x512xbf16>, vector<512x64xbf16>, vector<32x64xf32> -> vector<32x64xf32>
    %cst_3 = arith.constant dense<0.000000e+00> : vector<64xf32>
    %3 = vector.multi_reduction <add>, %2, %cst_3 [0] : vector<32x64xf32> to vector<64xf32>
    %4 = vector.shape_cast %3 : vector<64xf32> to vector<1x64xf32>
    %cst_4 = arith.constant 3.200000e+01 : f32
    %5 = vector.broadcast %cst_4 : f32 to vector<1x64xf32>
    %6 = arith.divf %4, %5 : vector<1x64xf32>
    %7 = vector.broadcast %6 : vector<1x64xf32> to vector<32x64xf32>
    %8 = arith.subf %2, %7 : vector<32x64xf32>
    %9 = arith.mulf %8, %8 : vector<32x64xf32>
    %cst_5 = arith.constant dense<0.000000e+00> : vector<64xf32>
    %10 = vector.multi_reduction <add>, %9, %cst_5 [0] : vector<32x64xf32> to vector<64xf32>
    %11 = vector.shape_cast %10 : vector<64xf32> to vector<1x64xf32>
    %cst_6 = arith.constant 3.200000e+01 : f32
    %12 = vector.broadcast %cst_6 : f32 to vector<1x64xf32>
    %13 = arith.divf %11, %12 : vector<1x64xf32>
    %c0_7 = arith.constant 0 : index
    %c0_8 = arith.constant 0 : index
    %14 = vector.load %arg3[%c0_7, %c0_8] : memref<1x64xf32, #tpu.memory_space<vmem>>, vector<1x64xf32>
    %cst_9 = arith.constant 9.99999974E-6 : f32
    %15 = vector.broadcast %cst_9 : f32 to vector<1x64xf32>
    %16 = arith.addf %13, %15 : vector<1x64xf32>
    %17 = math.rsqrt %16 : vector<1x64xf32>
    %18 = arith.mulf %14, %17 : vector<1x64xf32>
    %19 = vector.broadcast %18 : vector<1x64xf32> to vector<32x64xf32>
    %20 = arith.mulf %8, %19 : vector<32x64xf32>
    %c0_10 = arith.constant 0 : index
    %c0_11 = arith.constant 0 : index
    %21 = vector.load %arg4[%c0_10, %c0_11] : memref<1x64xf32, #tpu.memory_space<vmem>>, vector<1x64xf32>
    %22 = vector.broadcast %21 : vector<1x64xf32> to vector<32x64xf32>
    %23 = arith.addf %20, %22 : vector<32x64xf32>
    %cst_12 = arith.constant 2.000000e-01 : f32
    %24 = vector.broadcast %cst_12 : f32 to vector<32x64xf32>
    %25 = arith.mulf %24, %23 : vector<32x64xf32>
    %26 = arith.maximumf %23, %25 : vector<32x64xf32>
    %27 = arith.truncf %26 : vector<32x64xf32> to vector<32x64xbf16>
    %c0_13 = arith.constant 0 : index
    %c0_14 = arith.constant 0 : index
    %28 = vector.load %arg5[%c0_13, %c0_14] : memref<32x64xbf16, #tpu.memory_space<vmem>>, vector<32x64xbf16>
    tpu.vector_store %arg5[%c0_13, %c0_14], %27 {strides = array<i32>} : memref<32x64xbf16, #tpu.memory_space<vmem>>, vector<32x64xbf16>,
    return
  }
  func.func @transform_0(%arg0: i32) -> (i32, i32) {
    %c0_i32 = arith.constant 0 : i32
    %c0_i32_0 = arith.constant 0 : i32
    %c0_i32_1 = arith.constant 0 : i32
    return %c0_i32, %c0_i32_0 : i32, i32
  }
  func.func @transform_1(%arg0: i32) -> (i32, i32) {
    %c0_i32 = arith.constant 0 : i32
    %c0_i32_0 = arith.constant 0 : i32
    %c0_i32_1 = arith.constant 0 : i32
    return %c0_i32, %c0_i32_0 : i32, i32
  }
  func.func @transform_2(%arg0: i32) -> (i32, i32) {
    %c0_i32 = arith.constant 0 : i32
    %c0_i32_0 = arith.constant 0 : i32
    %c0_i32_1 = arith.constant 0 : i32
    return %c0_i32, %c0_i32_0 : i32, i32
  }
  func.func @transform_3(%arg0: i32) -> (i32, i32) {
    %c0_i32 = arith.constant 0 : i32
    %c0_i32_0 = arith.constant 0 : i32
    %c0_i32_1 = arith.constant 0 : i32
    return %c0_i32, %c0_i32_0 : i32, i32
  }
  func.func @transform_4(%arg0: i32) -> (i32, i32) {
    %c0_i32 = arith.constant 0 : i32
    %c0_i32_0 = arith.constant 0 : i32
    %c0_i32_1 = arith.constant 0 : i32
    return %c0_i32, %c0_i32_0 : i32, i32
  }
}

</mosaic_0001>

<llo_original>
// kernel: classifier_forward.3
$region0: #{classifier_forward.3}
  #allocation0 [shape = 'u32[]', space=smem, size = 0x4, offset = 0x4, fixed_abs, tag = 'smem constant byte address 0x4 - core index']
  #allocation1 [shape = 'u32[72,128]{1,0:T(1,128)}', space=vmem, size = 0x9000, scoped, tag = 'internal scratch']
  %s0 = inlined_call_operand.vmem [shape: bf16[1922,48], index: 0, kind: input, shape index: {}]
  %s1 = inlined_call_operand.vmem [shape: bf16[48,16], index: 1, kind: input, shape index: {}]
  %s2 = inlined_call_operand.vmem [shape: f32[1,16], index: 2, kind: input, shape index: {}]
  %s3 = inlined_call_operand.vmem [shape: f32[1,16], index: 3, kind: input, shape index: {}]
  %s4 = inlined_call_operand.vmem [shape: bf16[1922,16], index: 4, kind: output, shape index: {}]
  %s5 = sld [smem:[#allocation0]]
  $region26: #{classifier_forward.3} parent=0
    _
  %s7 = ssub.s32 1, %s5
  %s8 = scalar_select 0, %s7, %s5
  // Predicated region
  $region2: #{classifier_forward.3} parent=0 // pred_check
    _
  $region3: #{classifier_forward.3} parent=0 // pred_check_branch
    %10 = sbr.rel (0) target = $region5
  $region4: #{classifier_forward.3} parent=0 // pred_region
    _
  $region5: #{classifier_forward.3} parent=0 // pred_fallthru
    _
  // Predicated region
  $region6: #{classifier_forward.3} parent=0 // pred_check
    _
  $region7: #{classifier_forward.3} parent=0 // pred_check_branch
    %12 = sbr.rel (0) target = $region9
  $region8: #{classifier_forward.3} parent=0 // pred_region
    _
  $region9: #{classifier_forward.3} parent=0 // pred_fallthru
    _
  // Predicated region
  $region10: #{classifier_forward.3} parent=0 // pred_check
    _
  $region11: #{classifier_forward.3} parent=0 // pred_check_branch
    %14 = sbr.rel (0) target = $region13
  $region12: #{classifier_forward.3} parent=0 // pred_region
    _
  $region13: #{classifier_forward.3} parent=0 // pred_fallthru
    _
  // Predicated region
  $region14: #{classifier_forward.3} parent=0 // pred_check
    _
  $region15: #{classifier_forward.3} parent=0 // pred_check_branch
    %16 = sbr.rel (0) target = $region17
  $region16: #{classifier_forward.3} parent=0 // pred_region
    _
  $region17: #{classifier_forward.3} parent=0 // pred_fallthru
    _
  %v18 = vld [vmem:[%s0] sm:$0xf]
  %v19 = vld [vmem:[%s0 + $0x4] sm:$0xf]
  %v20 = vld [vmem:[%s0 + $0x8] sm:$0xf]
  %v21 = vld [vmem:[%s0 + $0xc] sm:$0xf]
  %v22 = vld [vmem:[%s0 + $0x10] sm:$0xf]
  %v23 = vld [vmem:[%s0 + $0x14] sm:$0xf]
  %v24 = vld [vmem:[%s0 + $0x18] sm:$0xf]
  %v25 = vld [vmem:[%s0 + $0x1c] sm:$0xf]
  %v26 = vld [vmem:[%s0 + $0x20] sm:$0xf]
  %v27 = vld [vmem:[%s0 + $0x24] sm:$0xf]
  %v28 = vld [vmem:[%s0 + $0x28] sm:$0xf]
  %v29 = vld [vmem:[%s0 + $0x2c] sm:$0xf]
  %v30 = vld [vmem:[%s0 + $0x30] sm:$0xf]
  %v31 = vld [vmem:[%s0 + $0x34] sm:$0xf]
  %v32 = vld [vmem:[%s0 + $0x38] sm:$0xf]
  %v33 = vld [vmem:[%s0 + $0x3c] sm:$0xf]
  %v34 = vld [vmem:[%s0 + $0x40] sm:$0xf]
  %v35 = vld [vmem:[%s0 + $0x44] sm:$0xf]
  %v36 = vld [vmem:[%s0 + $0x48] sm:$0xf]
  %v37 = vld [vmem:[%s0 + $0x4c] sm:$0xf]
  %v38 = vld [vmem:[%s0 + $0x50] sm:$0xf]
  %v39 = vld [vmem:[%s0 + $0x54] sm:$0xf]
  %v40 = vld [vmem:[%s0 + $0x58] sm:$0xf]
  %v41 = vld [vmem:[%s0 + $0x5c] sm:$0xf]
  %v42 = vld [vmem:[%s0 + $0x60] sm:$0xf]
  %v43 = vld [vmem:[%s0 + $0x64] sm:$0xf]
  %v44 = vld [vmem:[%s0 + $0x68] sm:$0xf]
  %v45 = vld [vmem:[%s0 + $0x6c] sm:$0xf]
  %v46 = vld [vmem:[%s0 + $0x70] sm:$0xf]
  %v47 = vld [vmem:[%s0 + $0x74] sm:$0xf]
  %v48 = vld [vmem:[%s0 + $0x78] sm:$0xf]
  %v49 = vld [vmem:[%s0 + $0x7c] sm:$0xf]
  %v50 = vld [vmem:[%s0 + $0x80] sm:$0xf]
  %v51 = vld [vmem:[%s0 + $0x84] sm:$0xf]
  %v52 = vld [vmem:[%s0 + $0x88] sm:$0xf]
  %v53 = vld [vmem:[%s0 + $0x8c] sm:$0xf]
  %v54 = vld [vmem:[%s0 + $0x90] sm:$0xf]
  %v55 = vld [vmem:[%s0 + $0x94] sm:$0xf]
  %v56 = vld [vmem:[%s0 + $0x98] sm:$0xf]
  %v57 = vld [vmem:[%s0 + $0x9c] sm:$0xf]
  %v58 = vld [vmem:[%s0 + $0xa0] sm:$0xf]
  %v59 = vld [vmem:[%s0 + $0xa4] sm:$0xf]
  %v60 = vld [vmem:[%s0 + $0xa8] sm:$0xf]
  %v61 = vld [vmem:[%s0 + $0xac] sm:$0xf]
  %v62 = vld [vmem:[%s0 + $0xb0] sm:$0xf]
  %v63 = vld [vmem:[%s0 + $0xb4] sm:$0xf]
  %v64 = vld [vmem:[%s0 + $0xb8] sm:$0xf]
  %v65 = vld [vmem:[%s0 + $0xbc] sm:$0xf]
  %v66 = vld [vmem:[%s0 + $0xc0] sm:$0xf]
  %v67 = vld [vmem:[%s0 + $0xc4] sm:$0xf]
  %v68 = vld [vmem:[%s0 + $0xc8] sm:$0xf]
  %v69 = vld [vmem:[%s0 + $0xcc] sm:$0xf]
  %v70 = vld [vmem:[%s0 + $0xd0] sm:$0xf]
  %v71 = vld [vmem:[%s0 + $0xd4] sm:$0xf]
  %v72 = vld [vmem:[%s0 + $0xd8] sm:$0xf]
  %v73 = vld [vmem:[%s0 + $0xdc] sm:$0xf]
  %v74 = vld [vmem:[%s0 + $0xe0] sm:$0xf]
  %v75 = vld [vmem:[%s0 + $0xe4] sm:$0xf]
  %v76 = vld [vmem:[%s0 + $0xe8] sm:$0xf]
  %v77 = vld [vmem:[%s0 + $0xec] sm:$0xf]
  %v78 = vld [vmem:[%s0 + $0xf0] sm:$0xf]
  %v79 = vld [vmem:[%s0 + $0xf4] sm:$0xf]
  %v80 = vld [vmem:[%s0 + $0xf8] sm:$0xf]
  %v81 = vld [vmem:[%s0 + $0xfc] sm:$0xf]
  %v82 = vld [vmem:[%s0 + $0x100] sm:$0xf]
  %v83 = vld [vmem:[%s0 + $0x104] sm:$0xf]
  %v84 = vld [vmem:[%s0 + $0x108] sm:$0xf]
  %v85 = vld [vmem:[%s0 + $0x10c] sm:$0xf]
  %v86 = vld [vmem:[%s0 + $0x110] sm:$0xf]
  %v87 = vld [vmem:[%s0 + $0x114] sm:$0xf]
  %v88 = vld [vmem:[%s0 + $0x118] sm:$0xf]
  %v89 = vld [vmem:[%s0 + $0x11c] sm:$0xf]
  %v90 = vld [vmem:[%s0 + $0x120] sm:$0xf]
  %v91 = vld [vmem:[%s0 + $0x124] sm:$0xf]
  %v92 = vld [vmem:[%s0 + $0x128] sm:$0xf]
  %v93 = vld [vmem:[%s0 + $0x12c] sm:$0xf]
  %v94 = vld [vmem:[%s0 + $0x130] sm:$0xf]
  %v95 = vld [vmem:[%s0 + $0x134] sm:$0xf]
  %v96 = vld [vmem:[%s0 + $0x138] sm:$0xf]
  %v97 = vld [vmem:[%s0 + $0x13c] sm:$0xf]
  %v98 = vld [vmem:[%s0 + $0x140] sm:$0xf]
  %v99 = vld [vmem:[%s0 + $0x144] sm:$0xf]
  %v100 = vld [vmem:[%s0 + $0x148] sm:$0xf]
  %v101 = vld [vmem:[%s0 + $0x14c] sm:$0xf]
  %v102 = vld [vmem:[%s0 + $0x150] sm:$0xf]
  %v103 = vld [vmem:[%s0 + $0x154] sm:$0xf]
  %v104 = vld [vmem:[%s0 + $0x158] sm:$0xf]
  %v105 = vld [vmem:[%s0 + $0x15c] sm:$0xf]
  %v106 = vld [vmem:[%s0 + $0x160] sm:$0xf]
  %v107 = vld [vmem:[%s0 + $0x164] sm:$0xf]
  %v108 = vld [vmem:[%s0 + $0x168] sm:$0xf]
  %v109 = vld [vmem:[%s0 + $0x16c] sm:$0xf]
  %v110 = vld [vmem:[%s0 + $0x170] sm:$0xf]
  %v111 = vld [vmem:[%s0 + $0x174] sm:$0xf]
  %v112 = vld [vmem:[%s0 + $0x178] sm:$0xf]
  %v113 = vld [vmem:[%s0 + $0x17c] sm:$0xf]
  %v114 = vld [vmem:[%s0 + $0x180] sm:$0xf]
  %v115 = vld [vmem:[%s0 + $0x184] sm:$0xf]
  %v116 = vld [vmem:[%s0 + $0x188] sm:$0xf]
  %v117 = vld [vmem:[%s0 + $0x18c] sm:$0xf]
  %v118 = vld [vmem:[%s0 + $0x190] sm:$0xf]
  %v119 = vld [vmem:[%s0 + $0x194] sm:$0xf]
  %v120 = vld [vmem:[%s0 + $0x198] sm:$0xf]
  %v121 = vld [vmem:[%s0 + $0x19c] sm:$0xf]
  %v122 = vld [vmem:[%s0 + $0x1a0] sm:$0xf]
  %v123 = vld [vmem:[%s0 + $0x1a4] sm:$0xf]
  %v124 = vld [vmem:[%s0 + $0x1a8] sm:$0xf]
  %v125 = vld [vmem:[%s0 + $0x1ac] sm:$0xf]
  %v126 = vld [vmem:[%s0 + $0x1b0] sm:$0xf]
  %v127 = vld [vmem:[%s0 + $0x1b4] sm:$0xf]
  %v128 = vld [vmem:[%s0 + $0x1b8] sm:$0xf]
  %v129 = vld [vmem:[%s0 + $0x1bc] sm:$0xf]
  %v130 = vld [vmem:[%s0 + $0x1c0] sm:$0xf]
  %v131 = vld [vmem:[%s0 + $0x1c4] sm:$0xf]
  %v132 = vld [vmem:[%s0 + $0x1c8] sm:$0xf]
  %v133 = vld [vmem:[%s0 + $0x1cc] sm:$0xf]
  %v134 = vld [vmem:[%s0 + $0x1d0] sm:$0xf]
  %v135 = vld [vmem:[%s0 + $0x1d4] sm:$0xf]
  %v136 = vld [vmem:[%s0 + $0x1d8] sm:$0xf]
  %v137 = vld [vmem:[%s0 + $0x1dc] sm:$0xf]
  %v138 = vld [vmem:[%s0 + $0x1e0] sm:$0xf]
  %v139 = vld [vmem:[%s0 + $0x1e4] sm:$0xf]
  %v140 = vld [vmem:[%s0 + $0x1e8] sm:$0xf]
  %v141 = vld [vmem:[%s0 + $0x1ec] sm:$0xf]
  %v142 = vld [vmem:[%s0 + $0x1f0] sm:$0xf]
  %v143 = vld [vmem:[%s0 + $0x1f4] sm:$0xf]
  %v144 = vld [vmem:[%s0 + $0x1f8] sm:$0xf]
  %v145 = vld [vmem:[%s0 + $0x1fc] sm:$0xf]
  %v146 = vld [vmem:[%s0 + $0x200] sm:$0xf]
  %v147 = vld [vmem:[%s0 + $0x204] sm:$0xf]
  %v148 = vld [vmem:[%s0 + $0x208] sm:$0xf]
  %v149 = vld [vmem:[%s0 + $0x20c] sm:$0xf]
  %v150 = vld [vmem:[%s0 + $0x210] sm:$0xf]
  %v151 = vld [vmem:[%s0 + $0x214] sm:$0xf]
  %v152 = vld [vmem:[%s0 + $0x218] sm:$0xf]
  %v153 = vld [vmem:[%s0 + $0x21c] sm:$0xf]
  %v154 = vld [vmem:[%s0 + $0x220] sm:$0xf]
  %v155 = vld [vmem:[%s0 + $0x224] sm:$0xf]
  %v156 = vld [vmem:[%s0 + $0x228] sm:$0xf]
  %v157 = vld [vmem:[%s0 + $0x22c] sm:$0xf]
  %v158 = vld [vmem:[%s0 + $0x230] sm:$0xf]
  %v159 = vld [vmem:[%s0 + $0x234] sm:$0xf]
  %v160 = vld [vmem:[%s0 + $0x238] sm:$0xf]
  %v161 = vld [vmem:[%s0 + $0x23c] sm:$0xf]
  %v162 = vld [vmem:[%s0 + $0x240] sm:$0xf]
  %v163 = vld [vmem:[%s0 + $0x244] sm:$0xf]
  %v164 = vld [vmem:[%s0 + $0x248] sm:$0xf]
  %v165 = vld [vmem:[%s0 + $0x24c] sm:$0xf]
  %v166 = vld [vmem:[%s0 + $0x250] sm:$0xf]
  %v167 = vld [vmem:[%s0 + $0x254] sm:$0xf]
  %v168 = vld [vmem:[%s0 + $0x258] sm:$0xf]
  %v169 = vld [vmem:[%s0 + $0x25c] sm:$0xf]
  %v170 = vld [vmem:[%s0 + $0x260] sm:$0xf]
  %v171 = vld [vmem:[%s0 + $0x264] sm:$0xf]
  %v172 = vld [vmem:[%s0 + $0x268] sm:$0xf]
  %v173 = vld [vmem:[%s0 + $0x26c] sm:$0xf]
  %v174 = vld [vmem:[%s0 + $0x270] sm:$0xf]
  %v175 = vld [vmem:[%s0 + $0x274] sm:$0xf]
  %v176 = vld [vmem:[%s0 + $0x278] sm:$0xf]
  %v177 = vld [vmem:[%s0 + $0x27c] sm:$0xf]
  %v178 = vld [vmem:[%s0 + $0x280] sm:$0xf]
  %v179 = vld [vmem:[%s0 + $0x284] sm:$0xf]
  %v180 = vld [vmem:[%s0 + $0x288] sm:$0xf]
  %v181 = vld [vmem:[%s0 + $0x28c] sm:$0xf]
  %v182 = vld [vmem:[%s0 + $0x290] sm:$0xf]
  %v183 = vld [vmem:[%s0 + $0x294] sm:$0xf]
  %v184 = vld [vmem:[%s0 + $0x298] sm:$0xf]
  %v185 = vld [vmem:[%s0 + $0x29c] sm:$0xf]
  %v186 = vld [vmem:[%s0 + $0x2a0] sm:$0xf]
  %v187 = vld [vmem:[%s0 + $0x2a4] sm:$0xf]
  %v188 = vld [vmem:[%s0 + $0x2a8] sm:$0xf]
  %v189 = vld [vmem:[%s0 + $0x2ac] sm:$0xf]
  %v190 = vld [vmem:[%s0 + $0x2b0] sm:$0xf]
  %v191 = vld [vmem:[%s0 + $0x2b4] sm:$0xf]
  %v192 = vld [vmem:[%s0 + $0x2b8] sm:$0xf]
  %v193 = vld [vmem:[%s0 + $0x2bc] sm:$0xf]
  %v194 = vld [vmem:[%s0 + $0x2c0] sm:$0xf]
  %v195 = vld [vmem:[%s0 + $0x2c4] sm:$0xf]
  %v196 = vld [vmem:[%s0 + $0x2c8] sm:$0xf]
  %v197 = vld [vmem:[%s0 + $0x2cc] sm:$0xf]
  %v198 = vld [vmem:[%s0 + $0x2d0] sm:$0xf]
  %v199 = vld [vmem:[%s0 + $0x2d4] sm:$0xf]
  %v200 = vld [vmem:[%s0 + $0x2d8] sm:$0xf]
  %v201 = vld [vmem:[%s0 + $0x2dc] sm:$0xf]
  %v202 = vld [vmem:[%s0 + $0x2e0] sm:$0xf]
  %v203 = vld [vmem:[%s0 + $0x2e4] sm:$0xf]
  %v204 = vld [vmem:[%s0 + $0x2e8] sm:$0xf]
  %v205 = vld [vmem:[%s0 + $0x2ec] sm:$0xf]
  %v206 = vld [vmem:[%s0 + $0x2f0] sm:$0xf]
  %v207 = vld [vmem:[%s0 + $0x2f4] sm:$0xf]
  %v208 = vld [vmem:[%s0 + $0x2f8] sm:$0xf]
  %v209 = vld [vmem:[%s0 + $0x2fc] sm:$0xf]
  %v210 = vld [vmem:[%s0 + $0x300] sm:$0xf]
  %v211 = vld [vmem:[%s0 + $0x304] sm:$0xf]
  %v212 = vld [vmem:[%s0 + $0x308] sm:$0xf]
  %v213 = vld [vmem:[%s0 + $0x30c] sm:$0xf]
  %v214 = vld [vmem:[%s0 + $0x310] sm:$0xf]
  %v215 = vld [vmem:[%s0 + $0x314] sm:$0xf]
  %v216 = vld [vmem:[%s0 + $0x318] sm:$0xf]
  %v217 = vld [vmem:[%s0 + $0x31c] sm:$0xf]
  %v218 = vld [vmem:[%s0 + $0x320] sm:$0xf]
  %v219 = vld [vmem:[%s0 + $0x324] sm:$0xf]
  %v220 = vld [vmem:[%s0 + $0x328] sm:$0xf]
  %v221 = vld [vmem:[%s0 + $0x32c] sm:$0xf]
  %v222 = vld [vmem:[%s0 + $0x330] sm:$0xf]
  %v223 = vld [vmem:[%s0 + $0x334] sm:$0xf]
  %v224 = vld [vmem:[%s0 + $0x338] sm:$0xf]
  %v225 = vld [vmem:[%s0 + $0x33c] sm:$0xf]
  %v226 = vld [vmem:[%s0 + $0x340] sm:$0xf]
  %v227 = vld [vmem:[%s0 + $0x344] sm:$0xf]
  %v228 = vld [vmem:[%s0 + $0x348] sm:$0xf]
  %v229 = vld [vmem:[%s0 + $0x34c] sm:$0xf]
  %v230 = vld [vmem:[%s0 + $0x350] sm:$0xf]
  %v231 = vld [vmem:[%s0 + $0x354] sm:$0xf]
  %v232 = vld [vmem:[%s0 + $0x358] sm:$0xf]
  %v233 = vld [vmem:[%s0 + $0x35c] sm:$0xf]
  %v234 = vld [vmem:[%s0 + $0x360] sm:$0xf]
  %v235 = vld [vmem:[%s0 + $0x364] sm:$0xf]
  %v236 = vld [vmem:[%s0 + $0x368] sm:$0xf]
  %v237 = vld [vmem:[%s0 + $0x36c] sm:$0xf]
  %v238 = vld [vmem:[%s0 + $0x370] sm:$0xf]
  %v239 = vld [vmem:[%s0 + $0x374] sm:$0xf]
  %v240 = vld [vmem:[%s0 + $0x378] sm:$0xf]
  %v241 = vld [vmem:[%s0 + $0x37c] sm:$0xf]
  %v242 = vld [vmem:[%s0 + $0x380] sm:$0xf]
  %v243 = vld [vmem:[%s0 + $0x384] sm:$0xf]
  %v244 = vld [vmem:[%s0 + $0x388] sm:$0xf]
  %v245 = vld [vmem:[%s0 + $0x38c] sm:$0xf]
  %v246 = vld [vmem:[%s0 + $0x390] sm:$0xf]
  %v247 = vld [vmem:[%s0 + $0x394] sm:$0xf]
  %v248 = vld [vmem:[%s0 + $0x398] sm:$0xf]
  %v249 = vld [vmem:[%s0 + $0x39c] sm:$0xf]
  %v250 = vld [vmem:[%s0 + $0x3a0] sm:$0xf]
  %v251 = vld [vmem:[%s0 + $0x3a4] sm:$0xf]
  %v252 = vld [vmem:[%s0 + $0x3a8] sm:$0xf]
  %v253 = vld [vmem:[%s0 + $0x3ac] sm:$0xf]
  %v254 = vld [vmem:[%s0 + $0x3b0] sm:$0xf]
  %v255 = vld [vmem:[%s0 + $0x3b4] sm:$0xf]
  %v256 = vld [vmem:[%s0 + $0x3b8] sm:$0xf]
  %v257 = vld [vmem:[%s0 + $0x3bc] sm:$0xf]
  %v258 = vld [vmem:[%s0 + $0x3c0] sm:$0x1]
  %v259 = vld [vmem:[%s1] sm:$0xf]
  %v260 = vld [vmem:[%s1 + $0x4] sm:$0xf]
  %v261 = vld [vmem:[%s1 + $0x8] sm:$0xf]
  %v262 = vld [vmem:[%s1 + $0xc] sm:$0xf]
  %v263 = vld [vmem:[%s1 + $0x10] sm:$0xf]
  %v264 = vld [vmem:[%s1 + $0x14] sm:$0xf]
  %v506 = vunpack.c.l.b16 %v18
  %v507 = vunpack.c.l.b16 %v19
  %v508 = vunpack.c.l.b16 %v20
  %v509 = vunpack.c.l.b16 %v21
  %v510 = vunpack.c.l.b16 %v22
  %v511 = vunpack.c.l.b16 %v23
  %v512 = vunpack.c.l.b16 %v24
  %v513 = vunpack.c.l.b16 %v25
  %v514 = vunpack.c.l.b16 %v26
  %v515 = vunpack.c.l.b16 %v27
  %v516 = vunpack.c.l.b16 %v28
  %v517 = vunpack.c.l.b16 %v29
  %v518 = vunpack.c.l.b16 %v30
  %v519 = vunpack.c.l.b16 %v31
  %v520 = vunpack.c.l.b16 %v32
  %v521 = vunpack.c.l.b16 %v33
  %v522 = vunpack.c.l.b16 %v34
  %v523 = vunpack.c.l.b16 %v35
  %v524 = vunpack.c.l.b16 %v36
  %v525 = vunpack.c.l.b16 %v37
  %v526 = vunpack.c.l.b16 %v38
  %v527 = vunpack.c.l.b16 %v39
  %v528 = vunpack.c.l.b16 %v40
  %v529 = vunpack.c.l.b16 %v41
  %v530 = vunpack.c.l.b16 %v42
  %v531 = vunpack.c.l.b16 %v43
  %v532 = vunpack.c.l.b16 %v44
  %v533 = vunpack.c.l.b16 %v45
  %v534 = vunpack.c.l.b16 %v46
  %v535 = vunpack.c.l.b16 %v47
  %v536 = vunpack.c.l.b16 %v48
  %v537 = vunpack.c.l.b16 %v49
  %v538 = vunpack.c.l.b16 %v50
  %v539 = vunpack.c.l.b16 %v51
  %v540 = vunpack.c.l.b16 %v52
  %v541 = vunpack.c.l.b16 %v53
  %v542 = vunpack.c.l.b16 %v54
  %v543 = vunpack.c.l.b16 %v55
  %v544 = vunpack.c.l.b16 %v56
  %v545 = vunpack.c.l.b16 %v57
  %v546 = vunpack.c.l.b16 %v58
  %v547 = vunpack.c.l.b16 %v59
  %v548 = vunpack.c.l.b16 %v60
  %v549 = vunpack.c.l.b16 %v61
  %v550 = vunpack.c.l.b16 %v62
  %v551 = vunpack.c.l.b16 %v63
  %v552 = vunpack.c.l.b16 %v64
  %v553 = vunpack.c.l.b16 %v65
  %v554 = vunpack.c.l.b16 %v66
  %v555 = vunpack.c.l.b16 %v67
  %v556 = vunpack.c.l.b16 %v68
  %v557 = vunpack.c.l.b16 %v69
  %v558 = vunpack.c.l.b16 %v70
  %v559 = vunpack.c.l.b16 %v71
  %v560 = vunpack.c.l.b16 %v72
  %v561 = vunpack.c.l.b16 %v73
  %v562 = vunpack.c.l.b16 %v74
  %v563 = vunpack.c.l.b16 %v75
  %v564 = vunpack.c.l.b16 %v76
  %v565 = vunpack.c.l.b16 %v77
  %v566 = vunpack.c.l.b16 %v78
  %v567 = vunpack.c.l.b16 %v79
  %v568 = vunpack.c.l.b16 %v80
  %v569 = vunpack.c.l.b16 %v81
  %v570 = vunpack.c.l.b16 %v82
  %v571 = vunpack.c.l.b16 %v83
  %v572 = vunpack.c.l.b16 %v84
  %v573 = vunpack.c.l.b16 %v85
  %v574 = vunpack.c.l.b16 %v86
  %v575 = vunpack.c.l.b16 %v87
  %v576 = vunpack.c.l.b16 %v88
  %v577 = vunpack.c.l.b16 %v89
  %v578 = vunpack.c.l.b16 %v90
  %v579 = vunpack.c.l.b16 %v91
  %v580 = vunpack.c.l.b16 %v92
  %v581 = vunpack.c.l.b16 %v93
  %v582 = vunpack.c.l.b16 %v94
  %v583 = vunpack.c.l.b16 %v95
  %v584 = vunpack.c.l.b16 %v96
  %v585 = vunpack.c.l.b16 %v97
  %v586 = vunpack.c.l.b16 %v98
  %v587 = vunpack.c.l.b16 %v99
  %v588 = vunpack.c.l.b16 %v100
  %v589 = vunpack.c.l.b16 %v101
  %v590 = vunpack.c.l.b16 %v102
  %v591 = vunpack.c.l.b16 %v103
  %v592 = vunpack.c.l.b16 %v104
  %v593 = vunpack.c.l.b16 %v105
  %v594 = vunpack.c.l.b16 %v106
  %v595 = vunpack.c.l.b16 %v107
  %v596 = vunpack.c.l.b16 %v108
  %v597 = vunpack.c.l.b16 %v109
  %v598 = vunpack.c.l.b16 %v110
  %v599 = vunpack.c.l.b16 %v111
  %v600 = vunpack.c.l.b16 %v112
  %v601 = vunpack.c.l.b16 %v113
  %v602 = vunpack.c.l.b16 %v114
  %v603 = vunpack.c.l.b16 %v115
  %v604 = vunpack.c.l.b16 %v116
  %v605 = vunpack.c.l.b16 %v117
  %v606 = vunpack.c.l.b16 %v118
  %v607 = vunpack.c.l.b16 %v119
  %v608 = vunpack.c.l.b16 %v120
  %v609 = vunpack.c.l.b16 %v121
  %v610 = vunpack.c.l.b16 %v122
  %v611 = vunpack.c.l.b16 %v123
  %v612 = vunpack.c.l.b16 %v124
  %v613 = vunpack.c.l.b16 %v125
  %v614 = vunpack.c.l.b16 %v126
  %v615 = vunpack.c.l.b16 %v127
  %v616 = vunpack.c.l.b16 %v128
  %v617 = vunpack.c.l.b16 %v129
  %v618 = vunpack.c.l.b16 %v130
  %v619 = vunpack.c.l.b16 %v131
  %v620 = vunpack.c.l.b16 %v132
  %v621 = vunpack.c.l.b16 %v133
  %v622 = vunpack.c.l.b16 %v134
  %v623 = vunpack.c.l.b16 %v135
  %v624 = vunpack.c.l.b16 %v136
  %v625 = vunpack.c.l.b16 %v137
  %v626 = vunpack.c.l.b16 %v138
  %v627 = vunpack.c.l.b16 %v139
  %v628 = vunpack.c.l.b16 %v140
  %v629 = vunpack.c.l.b16 %v141
  %v630 = vunpack.c.l.b16 %v142
  %v631 = vunpack.c.l.b16 %v143
  %v632 = vunpack.c.l.b16 %v144
  %v633 = vunpack.c.l.b16 %v145
  %v634 = vunpack.c.l.b16 %v146
  %v635 = vunpack.c.l.b16 %v147
  %v636 = vunpack.c.l.b16 %v148
  %v637 = vunpack.c.l.b16 %v149
  %v638 = vunpack.c.l.b16 %v150
  %v639 = vunpack.c.l.b16 %v151
  %v640 = vunpack.c.l.b16 %v152
  %v641 = vunpack.c.l.b16 %v153
  %v642 = vunpack.c.l.b16 %v154
  %v643 = vunpack.c.l.b16 %v155
  %v644 = vunpack.c.l.b16 %v156
  %v645 = vunpack.c.l.b16 %v157
  %v646 = vunpack.c.l.b16 %v158
  %v647 = vunpack.c.l.b16 %v159
  %v648 = vunpack.c.l.b16 %v160
  %v649 = vunpack.c.l.b16 %v161
  %v650 = vunpack.c.l.b16 %v162
  %v651 = vunpack.c.l.b16 %v163
  %v652 = vunpack.c.l.b16 %v164
  %v653 = vunpack.c.l.b16 %v165
  %v654 = vunpack.c.l.b16 %v166
  %v655 = vunpack.c.l.b16 %v167
  %v656 = vunpack.c.l.b16 %v168
  %v657 = vunpack.c.l.b16 %v169
  %v658 = vunpack.c.l.b16 %v170
  %v659 = vunpack.c.l.b16 %v171
  %v660 = vunpack.c.l.b16 %v172
  %v661 = vunpack.c.l.b16 %v173
  %v662 = vunpack.c.l.b16 %v174
  %v663 = vunpack.c.l.b16 %v175
  %v664 = vunpack.c.l.b16 %v176
  %v665 = vunpack.c.l.b16 %v177
  %v666 = vunpack.c.l.b16 %v178
  %v667 = vunpack.c.l.b16 %v179
  %v668 = vunpack.c.l.b16 %v180
  %v669 = vunpack.c.l.b16 %v181
  %v670 = vunpack.c.l.b16 %v182
  %v671 = vunpack.c.l.b16 %v183
  %v672 = vunpack.c.l.b16 %v184
  %v673 = vunpack.c.l.b16 %v185
  %v674 = vunpack.c.l.b16 %v186
  %v675 = vunpack.c.l.b16 %v187
  %v676 = vunpack.c.l.b16 %v188
  %v677 = vunpack.c.l.b16 %v189
  %v678 = vunpack.c.l.b16 %v190
  %v679 = vunpack.c.l.b16 %v191
  %v680 = vunpack.c.l.b16 %v192
  %v681 = vunpack.c.l.b16 %v193
  %v682 = vunpack.c.l.b16 %v194
  %v683 = vunpack.c.l.b16 %v195
  %v684 = vunpack.c.l.b16 %v196
  %v685 = vunpack.c.l.b16 %v197
  %v686 = vunpack.c.l.b16 %v198
  %v687 = vunpack.c.l.b16 %v199
  %v688 = vunpack.c.l.b16 %v200
  %v689 = vunpack.c.l.b16 %v201
  %v690 = vunpack.c.l.b16 %v202
  %v691 = vunpack.c.l.b16 %v203
  %v692 = vunpack.c.l.b16 %v204
  %v693 = vunpack.c.l.b16 %v205
  %v694 = vunpack.c.l.b16 %v206
  %v695 = vunpack.c.l.b16 %v207
  %v696 = vunpack.c.l.b16 %v208
  %v697 = vunpack.c.l.b16 %v209
  %v698 = vunpack.c.l.b16 %v210
  %v699 = vunpack.c.l.b16 %v211
  %v700 = vunpack.c.l.b16 %v212
  %v701 = vunpack.c.l.b16 %v213
  %v702 = vunpack.c.l.b16 %v214
  %v703 = vunpack.c.l.b16 %v215
  %v704 = vunpack.c.l.b16 %v216
  %v705 = vunpack.c.l.b16 %v217
  %v706 = vunpack.c.l.b16 %v218
  %v707 = vunpack.c.l.b16 %v219
  %v708 = vunpack.c.l.b16 %v220
  %v709 = vunpack.c.l.b16 %v221
  %v710 = vunpack.c.l.b16 %v222
  %v711 = vunpack.c.l.b16 %v223
  %v712 = vunpack.c.l.b16 %v224
  %v713 = vunpack.c.l.b16 %v225
  %v714 = vunpack.c.l.b16 %v226
  %v715 = vunpack.c.l.b16 %v227
  %v716 = vunpack.c.l.b16 %v228
  %v717 = vunpack.c.l.b16 %v229
  %v718 = vunpack.c.l.b16 %v230
  %v719 = vunpack.c.l.b16 %v231
  %v720 = vunpack.c.l.b16 %v232
  %v721 = vunpack.c.l.b16 %v233
  %v722 = vunpack.c.l.b16 %v234
  %v723 = vunpack.c.l.b16 %v235
  %v724 = vunpack.c.l.b16 %v236
  %v725 = vunpack.c.l.b16 %v237
  %v726 = vunpack.c.l.b16 %v238
  %v727 = vunpack.c.l.b16 %v239
  %v728 = vunpack.c.l.b16 %v240
  %v729 = vunpack.c.l.b16 %v241
  %v730 = vunpack.c.l.b16 %v242
  %v731 = vunpack.c.l.b16 %v243
  %v732 = vunpack.c.l.b16 %v244
  %v733 = vunpack.c.l.b16 %v245
  %v734 = vunpack.c.l.b16 %v246
  %v735 = vunpack.c.l.b16 %v247
  %v736 = vunpack.c.l.b16 %v248
  %v737 = vunpack.c.l.b16 %v249
  %v738 = vunpack.c.l.b16 %v250
  %v739 = vunpack.c.l.b16 %v251
  %v740 = vunpack.c.l.b16 %v252
  %v741 = vunpack.c.l.b16 %v253
  %v742 = vunpack.c.l.b16 %v254
  %v743 = vunpack.c.l.b16 %v255
  %v744 = vunpack.c.l.b16 %v256
  %v745 = vunpack.c.l.b16 %v257
  %v746 = vunpack.c.l.b16 %v258
  %v747 = vpack.c.b16 %v507, %v506
  %v748 = vpack.c.b16 %v509, %v508
  %v749 = vpack.c.b16 %v511, %v510
  %v750 = vpack.c.b16 %v513, %v512
  %v751 = vpack.c.b16 %v515, %v514
  %v752 = vpack.c.b16 %v517, %v516
  %v753 = vpack.c.b16 %v519, %v518
  %v754 = vpack.c.b16 %v521, %v520
  %v755 = vpack.c.b16 %v523, %v522
  %v756 = vpack.c.b16 %v525, %v524
  %v757 = vpack.c.b16 %v527, %v526
  %v758 = vpack.c.b16 %v529, %v528
  %v759 = vpack.c.b16 %v531, %v530
  %v760 = vpack.c.b16 %v533, %v532
  %v761 = vpack.c.b16 %v535, %v534
  %v762 = vpack.c.b16 %v537, %v536
  %v763 = vpack.c.b16 %v539, %v538
  %v764 = vpack.c.b16 %v541, %v540
  %v765 = vpack.c.b16 %v543, %v542
  %v766 = vpack.c.b16 %v545, %v544
  %v767 = vpack.c.b16 %v547, %v546
  %v768 = vpack.c.b16 %v549, %v548
  %v769 = vpack.c.b16 %v551, %v550
  %v770 = vpack.c.b16 %v553, %v552
  %v771 = vpack.c.b16 %v555, %v554
  %v772 = vpack.c.b16 %v557, %v556
  %v773 = vpack.c.b16 %v559, %v558
  %v774 = vpack.c.b16 %v561, %v560
  %v775 = vpack.c.b16 %v563, %v562
  %v776 = vpack.c.b16 %v565, %v564
  %v777 = vpack.c.b16 %v567, %v566
  %v778 = vpack.c.b16 %v569, %v568
  %v779 = vpack.c.b16 %v571, %v570
  %v780 = vpack.c.b16 %v573, %v572
  %v781 = vpack.c.b16 %v575, %v574
  %v782 = vpack.c.b16 %v577, %v576
  %v783 = vpack.c.b16 %v579, %v578
  %v784 = vpack.c.b16 %v581, %v580
  %v785 = vpack.c.b16 %v583, %v582
  %v786 = vpack.c.b16 %v585, %v584
  %v787 = vpack.c.b16 %v587, %v586
  %v788 = vpack.c.b16 %v589, %v588
  %v789 = vpack.c.b16 %v591, %v590
  %v790 = vpack.c.b16 %v593, %v592
  %v791 = vpack.c.b16 %v595, %v594
  %v792 = vpack.c.b16 %v597, %v596
  %v793 = vpack.c.b16 %v599, %v598
  %v794 = vpack.c.b16 %v601, %v600
  %v795 = vpack.c.b16 %v603, %v602
  %v796 = vpack.c.b16 %v605, %v604
  %v797 = vpack.c.b16 %v607, %v606
  %v798 = vpack.c.b16 %v609, %v608
  %v799 = vpack.c.b16 %v611, %v610
  %v800 = vpack.c.b16 %v613, %v612
  %v801 = vpack.c.b16 %v615, %v614
  %v802 = vpack.c.b16 %v617, %v616
  %v803 = vpack.c.b16 %v619, %v618
  %v804 = vpack.c.b16 %v621, %v620
  %v805 = vpack.c.b16 %v623, %v622
  %v806 = vpack.c.b16 %v625, %v624
  %v807 = vpack.c.b16 %v627, %v626
  %v808 = vpack.c.b16 %v629, %v628
  %v809 = vpack.c.b16 %v631, %v630
  %v810 = vpack.c.b16 %v633, %v632
  %v811 = vpack.c.b16 %v635, %v634
  %v812 = vpack.c.b16 %v637, %v636
  %v813 = vpack.c.b16 %v639, %v638
  %v814 = vpack.c.b16 %v641, %v640
  %v815 = vpack.c.b16 %v643, %v642
  %v816 = vpack.c.b16 %v645, %v644
  %v817 = vpack.c.b16 %v647, %v646
  %v818 = vpack.c.b16 %v649, %v648
  %v819 = vpack.c.b16 %v651, %v650
  %v820 = vpack.c.b16 %v653, %v652
  %v821 = vpack.c.b16 %v655, %v654
  %v822 = vpack.c.b16 %v657, %v656
  %v823 = vpack.c.b16 %v659, %v658
  %v824 = vpack.c.b16 %v661, %v660
  %v825 = vpack.c.b16 %v663, %v662
  %v826 = vpack.c.b16 %v665, %v664
  %v827 = vpack.c.b16 %v667, %v666
  %v828 = vpack.c.b16 %v669, %v668
  %v829 = vpack.c.b16 %v671, %v670
  %v830 = vpack.c.b16 %v673, %v672
  %v831 = vpack.c.b16 %v675, %v674
  %v832 = vpack.c.b16 %v677, %v676
  %v833 = vpack.c.b16 %v679, %v678
  %v834 = vpack.c.b16 %v681, %v680
  %v835 = vpack.c.b16 %v683, %v682
  %v836 = vpack.c.b16 %v685, %v684
  %v837 = vpack.c.b16 %v687, %v686
  %v838 = vpack.c.b16 %v689, %v688
  %v839 = vpack.c.b16 %v691, %v690
  %v840 = vpack.c.b16 %v693, %v692
  %v841 = vpack.c.b16 %v695, %v694
  %v842 = vpack.c.b16 %v697, %v696
  %v843 = vpack.c.b16 %v699, %v698
  %v844 = vpack.c.b16 %v701, %v700
  %v845 = vpack.c.b16 %v703, %v702
  %v846 = vpack.c.b16 %v705, %v704
  %v847 = vpack.c.b16 %v707, %v706
  %v848 = vpack.c.b16 %v709, %v708
  %v849 = vpack.c.b16 %v711, %v710
  %v850 = vpack.c.b16 %v713, %v712
  %v851 = vpack.c.b16 %v715, %v714
  %v852 = vpack.c.b16 %v717, %v716
  %v853 = vpack.c.b16 %v719, %v718
  %v854 = vpack.c.b16 %v721, %v720
  %v855 = vpack.c.b16 %v723, %v722
  %v856 = vpack.c.b16 %v725, %v724
  %v857 = vpack.c.b16 %v727, %v726
  %v858 = vpack.c.b16 %v729, %v728
  %v859 = vpack.c.b16 %v731, %v730
  %v860 = vpack.c.b16 %v733, %v732
  %v861 = vpack.c.b16 %v735, %v734
  %v862 = vpack.c.b16 %v737, %v736
  %v863 = vpack.c.b16 %v739, %v738
  %v864 = vpack.c.b16 %v741, %v740
  %v865 = vpack.c.b16 %v743, %v742
  %v866 = vpack.c.b16 %v745, %v744
  %v867 = vpack.c.b16 %v746, %v746
  %v874 = vunpack.c.l.b16 %v259
  %v875 = vunpack.c.l.b16 %v260
  %v876 = vunpack.c.l.b16 %v261
  %v877 = vunpack.c.l.b16 %v262
  %v878 = vunpack.c.l.b16 %v263
  %v879 = vunpack.c.l.b16 %v264
  %v880 = vpack.c.b16 %v875, %v874
  %v881 = vpack.c.b16 %v877, %v876
  %v882 = vpack.c.b16 %v879, %v878
  %vm886 = vcmask 392192
  %v888 = vsel %vm886, %v747, 0
  %v891 = vsel %vm886, %v748, 0
  %v894 = vsel %vm886, %v749, 0
  %v897 = vsel %vm886, %v750, 0
  %v900 = vsel %vm886, %v751, 0
  %v903 = vsel %vm886, %v752, 0
  %v906 = vsel %vm886, %v753, 0
  %v909 = vsel %vm886, %v754, 0
  %v912 = vsel %vm886, %v755, 0
  %v915 = vsel %vm886, %v756, 0
  %v918 = vsel %vm886, %v757, 0
  %v921 = vsel %vm886, %v758, 0
  %v924 = vsel %vm886, %v759, 0
  %v927 = vsel %vm886, %v760, 0
  %v930 = vsel %vm886, %v761, 0
  %v933 = vsel %vm886, %v762, 0
  %v936 = vsel %vm886, %v763, 0
  %v939 = vsel %vm886, %v764, 0
  %v942 = vsel %vm886, %v765, 0
  %v945 = vsel %vm886, %v766, 0
  %v948 = vsel %vm886, %v767, 0
  %v951 = vsel %vm886, %v768, 0
  %v954 = vsel %vm886, %v769, 0
  %v957 = vsel %vm886, %v770, 0
  %v960 = vsel %vm886, %v771, 0
  %v963 = vsel %vm886, %v772, 0
  %v966 = vsel %vm886, %v773, 0
  %v969 = vsel %vm886, %v774, 0
  %v972 = vsel %vm886, %v775, 0
  %v975 = vsel %vm886, %v776, 0
  %v978 = vsel %vm886, %v777, 0
  %v981 = vsel %vm886, %v778, 0
  %v984 = vsel %vm886, %v779, 0
  %v987 = vsel %vm886, %v780, 0
  %v990 = vsel %vm886, %v781, 0
  %v993 = vsel %vm886, %v782, 0
  %v996 = vsel %vm886, %v783, 0
  %v999 = vsel %vm886, %v784, 0
  %v1002 = vsel %vm886, %v785, 0
  %v1005 = vsel %vm886, %v786, 0
  %v1008 = vsel %vm886, %v787, 0
  %v1011 = vsel %vm886, %v788, 0
  %v1014 = vsel %vm886, %v789, 0
  %v1017 = vsel %vm886, %v790, 0
  %v1020 = vsel %vm886, %v791, 0
  %v1023 = vsel %vm886, %v792, 0
  %v1026 = vsel %vm886, %v793, 0
  %v1029 = vsel %vm886, %v794, 0
  %v1032 = vsel %vm886, %v795, 0
  %v1035 = vsel %vm886, %v796, 0
  %v1038 = vsel %vm886, %v797, 0
  %v1041 = vsel %vm886, %v798, 0
  %v1044 = vsel %vm886, %v799, 0
  %v1047 = vsel %vm886, %v800, 0
  %v1050 = vsel %vm886, %v801, 0
  %v1053 = vsel %vm886, %v802, 0
  %v1056 = vsel %vm886, %v803, 0
  %v1059 = vsel %vm886, %v804, 0
  %v1062 = vsel %vm886, %v805, 0
  %v1065 = vsel %vm886, %v806, 0
  %v1068 = vsel %vm886, %v807, 0
  %v1071 = vsel %vm886, %v808, 0
  %v1074 = vsel %vm886, %v809, 0
  %v1077 = vsel %vm886, %v810, 0
  %v1080 = vsel %vm886, %v811, 0
  %v1083 = vsel %vm886, %v812, 0
  %v1086 = vsel %vm886, %v813, 0
  %v1089 = vsel %vm886, %v814, 0
  %v1092 = vsel %vm886, %v815, 0
  %v1095 = vsel %vm886, %v816, 0
  %v1098 = vsel %vm886, %v817, 0
  %v1101 = vsel %vm886, %v818, 0
  %v1104 = vsel %vm886, %v819, 0
  %v1107 = vsel %vm886, %v820, 0
  %v1110 = vsel %vm886, %v821, 0
  %v1113 = vsel %vm886, %v822, 0
  %v1116 = vsel %vm886, %v823, 0
  %v1119 = vsel %vm886, %v824, 0
  %v1122 = vsel %vm886, %v825, 0
  %v1125 = vsel %vm886, %v826, 0
  %v1128 = vsel %vm886, %v827, 0
  %v1131 = vsel %vm886, %v828, 0
  %v1134 = vsel %vm886, %v829, 0
  %v1137 = vsel %vm886, %v830, 0
  %v1140 = vsel %vm886, %v831, 0
  %v1143 = vsel %vm886, %v832, 0
  %v1146 = vsel %vm886, %v833, 0
  %v1149 = vsel %vm886, %v834, 0
  %v1152 = vsel %vm886, %v835, 0
  %v1155 = vsel %vm886, %v836, 0
  %v1158 = vsel %vm886, %v837, 0
  %v1161 = vsel %vm886, %v838, 0
  %v1164 = vsel %vm886, %v839, 0
  %v1167 = vsel %vm886, %v840, 0
  %v1170 = vsel %vm886, %v841, 0
  %v1173 = vsel %vm886, %v842, 0
  %v1176 = vsel %vm886, %v843, 0
  %v1179 = vsel %vm886, %v844, 0
  %v1182 = vsel %vm886, %v845, 0
  %v1185 = vsel %vm886, %v846, 0
  %v1188 = vsel %vm886, %v847, 0
  %v1191 = vsel %vm886, %v848, 0
  %v1194 = vsel %vm886, %v849, 0
  %v1197 = vsel %vm886, %v850, 0
  %v1200 = vsel %vm886, %v851, 0
  %v1203 = vsel %vm886, %v852, 0
  %v1206 = vsel %vm886, %v853, 0
  %v1209 = vsel %vm886, %v854, 0
  %v1212 = vsel %vm886, %v855, 0
  %v1215 = vsel %vm886, %v856, 0
  %v1218 = vsel %vm886, %v857, 0
  %v1221 = vsel %vm886, %v858, 0
  %v1224 = vsel %vm886, %v859, 0
  %v1227 = vsel %vm886, %v860, 0
  %v1230 = vsel %vm886, %v861, 0
  %v1233 = vsel %vm886, %v862, 0
  %v1236 = vsel %vm886, %v863, 0
  %v1239 = vsel %vm886, %v864, 0
  %v1242 = vsel %vm886, %v865, 0
  %v1245 = vsel %vm886, %v866, 0
  %v1248 = vsel %vm886, %v867, 0
  %1250 = vmatpush.bf16.msra.mxu0 0
  %1251 = vmatpush.bf16.msra.mxu0 0
  %1252 = vmatpush.bf16.msra.mxu0 0
  %1253 = vmatpush.bf16.msra.mxu0 0
  %1254 = vmatpush.bf16.msra.mxu0 0
  %1255 = vmatpush.bf16.msra.mxu0 %v882
  %1256 = vmatpush.bf16.msra.mxu0 %v881
  %1257 = vmatpush.bf16.msra.mxu0 %v880
  %1258 = vmatmul.bf16.gmra.mxu0 %v888
  %v1259 = vpop.f32.mrf.mxu0
  %v1260 = vadd.f32 0.0, %v1259
  %v1261 = vpop.f32.mrf.mxu0
  %v1262 = vadd.f32 0.0, %v1261
  %1263 = vmatmul.bf16.gmra.mxu0 %v891
  %v1264 = vpop.f32.mrf.mxu0
  %v1265 = vadd.f32 0.0, %v1264
  %v1266 = vpop.f32.mrf.mxu0
  %v1267 = vadd.f32 0.0, %v1266
  %1268 = vmatmul.bf16.gmra.mxu0 %v894
  %v1269 = vpop.f32.mrf.mxu0
  %v1270 = vadd.f32 0.0, %v1269
  %v1271 = vpop.f32.mrf.mxu0
  %v1272 = vadd.f32 0.0, %v1271
  %1273 = vmatmul.bf16.gmra.mxu0 %v897
  %v1274 = vpop.f32.mrf.mxu0
  %v1275 = vadd.f32 0.0, %v1274
  %v1276 = vpop.f32.mrf.mxu0
  %v1277 = vadd.f32 0.0, %v1276
  %1278 = vmatmul.bf16.gmra.mxu0 %v900
  %v1279 = vpop.f32.mrf.mxu0
  %v1280 = vadd.f32 0.0, %v1279
  %v1281 = vpop.f32.mrf.mxu0
  %v1282 = vadd.f32 0.0, %v1281
  %1283 = vmatmul.bf16.gmra.mxu0 %v903
  %v1284 = vpop.f32.mrf.mxu0
  %v1285 = vadd.f32 0.0, %v1284
  %v1286 = vpop.f32.mrf.mxu0
  %v1287 = vadd.f32 0.0, %v1286
  %1288 = vmatmul.bf16.gmra.mxu0 %v906
  %v1289 = vpop.f32.mrf.mxu0
  %v1290 = vadd.f32 0.0, %v1289
  %v1291 = vpop.f32.mrf.mxu0
  %v1292 = vadd.f32 0.0, %v1291
  %1293 = vmatmul.bf16.gmra.mxu0 %v909
  %v1294 = vpop.f32.mrf.mxu0
  %v1295 = vadd.f32 0.0, %v1294
  %v1296 = vpop.f32.mrf.mxu0
  %v1297 = vadd.f32 0.0, %v1296
  %1298 = vmatmul.bf16.gmra.mxu0 %v912
  %v1299 = vpop.f32.mrf.mxu0
  %v1300 = vadd.f32 0.0, %v1299
  %v1301 = vpop.f32.mrf.mxu0
  %v1302 = vadd.f32 0.0, %v1301
  %1303 = vmatmul.bf16.gmra.mxu0 %v915
  %v1304 = vpop.f32.mrf.mxu0
  %v1305 = vadd.f32 0.0, %v1304
  %v1306 = vpop.f32.mrf.mxu0
  %v1307 = vadd.f32 0.0, %v1306
  %1308 = vmatmul.bf16.gmra.mxu0 %v918
  %v1309 = vpop.f32.mrf.mxu0
  %v1310 = vadd.f32 0.0, %v1309
  %v1311 = vpop.f32.mrf.mxu0
  %v1312 = vadd.f32 0.0, %v1311
  %1313 = vmatmul.bf16.gmra.mxu0 %v921
  %v1314 = vpop.f32.mrf.mxu0
  %v1315 = vadd.f32 0.0, %v1314
  %v1316 = vpop.f32.mrf.mxu0
  %v1317 = vadd.f32 0.0, %v1316
  %1318 = vmatmul.bf16.gmra.mxu0 %v924
  %v1319 = vpop.f32.mrf.mxu0
  %v1320 = vadd.f32 0.0, %v1319
  %v1321 = vpop.f32.mrf.mxu0
  %v1322 = vadd.f32 0.0, %v1321
  %1323 = vmatmul.bf16.gmra.mxu0 %v927
  %v1324 = vpop.f32.mrf.mxu0
  %v1325 = vadd.f32 0.0, %v1324
  %v1326 = vpop.f32.mrf.mxu0
  %v1327 = vadd.f32 0.0, %v1326
  %1328 = vmatmul.bf16.gmra.mxu0 %v930
  %v1329 = vpop.f32.mrf.mxu0
  %v1330 = vadd.f32 0.0, %v1329
  %v1331 = vpop.f32.mrf.mxu0
  %v1332 = vadd.f32 0.0, %v1331
  %1333 = vmatmul.bf16.gmra.mxu0 %v933
  %v1334 = vpop.f32.mrf.mxu0
  %v1335 = vadd.f32 0.0, %v1334
  %v1336 = vpop.f32.mrf.mxu0
  %v1337 = vadd.f32 0.0, %v1336
  %1338 = vmatmul.bf16.gmra.mxu0 %v936
  %v1339 = vpop.f32.mrf.mxu0
  %v1340 = vadd.f32 0.0, %v1339
  %v1341 = vpop.f32.mrf.mxu0
  %v1342 = vadd.f32 0.0, %v1341
  %1343 = vmatmul.bf16.gmra.mxu0 %v939
  %v1344 = vpop.f32.mrf.mxu0
  %v1345 = vadd.f32 0.0, %v1344
  %v1346 = vpop.f32.mrf.mxu0
  %v1347 = vadd.f32 0.0, %v1346
  %1348 = vmatmul.bf16.gmra.mxu0 %v942
  %v1349 = vpop.f32.mrf.mxu0
  %v1350 = vadd.f32 0.0, %v1349
  %v1351 = vpop.f32.mrf.mxu0
  %v1352 = vadd.f32 0.0, %v1351
  %1353 = vmatmul.bf16.gmra.mxu0 %v945
  %v1354 = vpop.f32.mrf.mxu0
  %v1355 = vadd.f32 0.0, %v1354
  %v1356 = vpop.f32.mrf.mxu0
  %v1357 = vadd.f32 0.0, %v1356
  %1358 = vmatmul.bf16.gmra.mxu0 %v948
  %v1359 = vpop.f32.mrf.mxu0
  %v1360 = vadd.f32 0.0, %v1359
  %v1361 = vpop.f32.mrf.mxu0
  %v1362 = vadd.f32 0.0, %v1361
  %1363 = vmatmul.bf16.gmra.mxu0 %v951
  %v1364 = vpop.f32.mrf.mxu0
  %v1365 = vadd.f32 0.0, %v1364
  %v1366 = vpop.f32.mrf.mxu0
  %v1367 = vadd.f32 0.0, %v1366
  %1368 = vmatmul.bf16.gmra.mxu0 %v954
  %v1369 = vpop.f32.mrf.mxu0
  %v1370 = vadd.f32 0.0, %v1369
  %v1371 = vpop.f32.mrf.mxu0
  %v1372 = vadd.f32 0.0, %v1371
  %1373 = vmatmul.bf16.gmra.mxu0 %v957
  %v1374 = vpop.f32.mrf.mxu0
  %v1375 = vadd.f32 0.0, %v1374
  %v1376 = vpop.f32.mrf.mxu0
  %v1377 = vadd.f32 0.0, %v1376
  %1378 = vmatmul.bf16.gmra.mxu0 %v960
  %v1379 = vpop.f32.mrf.mxu0
  %v1380 = vadd.f32 0.0, %v1379
  %v1381 = vpop.f32.mrf.mxu0
  %v1382 = vadd.f32 0.0, %v1381
  %1383 = vmatmul.bf16.gmra.mxu0 %v963
  %v1384 = vpop.f32.mrf.mxu0
  %v1385 = vadd.f32 0.0, %v1384
  %v1386 = vpop.f32.mrf.mxu0
  %v1387 = vadd.f32 0.0, %v1386
  %1388 = vmatmul.bf16.gmra.mxu0 %v966
  %v1389 = vpop.f32.mrf.mxu0
  %v1390 = vadd.f32 0.0, %v1389
  %v1391 = vpop.f32.mrf.mxu0
  %v1392 = vadd.f32 0.0, %v1391
  %1393 = vmatmul.bf16.gmra.mxu0 %v969
  %v1394 = vpop.f32.mrf.mxu0
  %v1395 = vadd.f32 0.0, %v1394
  %v1396 = vpop.f32.mrf.mxu0
  %v1397 = vadd.f32 0.0, %v1396
  %1398 = vmatmul.bf16.gmra.mxu0 %v972
  %v1399 = vpop.f32.mrf.mxu0
  %v1400 = vadd.f32 0.0, %v1399
  %v1401 = vpop.f32.mrf.mxu0
  %v1402 = vadd.f32 0.0, %v1401
  %1403 = vmatmul.bf16.gmra.mxu0 %v975
  %v1404 = vpop.f32.mrf.mxu0
  %v1405 = vadd.f32 0.0, %v1404
  %v1406 = vpop.f32.mrf.mxu0
  %v1407 = vadd.f32 0.0, %v1406
  %1408 = vmatmul.bf16.gmra.mxu0 %v978
  %v1409 = vpop.f32.mrf.mxu0
  %v1410 = vadd.f32 0.0, %v1409
  %v1411 = vpop.f32.mrf.mxu0
  %v1412 = vadd.f32 0.0, %v1411
  %1413 = vmatmul.bf16.gmra.mxu0 %v981
  %v1414 = vpop.f32.mrf.mxu0
  %v1415 = vadd.f32 0.0, %v1414
  %v1416 = vpop.f32.mrf.mxu0
  %v1417 = vadd.f32 0.0, %v1416
  %1418 = vmatmul.bf16.gmra.mxu0 %v984
  %v1419 = vpop.f32.mrf.mxu0
  %v1420 = vadd.f32 0.0, %v1419
  %v1421 = vpop.f32.mrf.mxu0
  %v1422 = vadd.f32 0.0, %v1421
  %1423 = vmatmul.bf16.gmra.mxu0 %v987
  %v1424 = vpop.f32.mrf.mxu0
  %v1425 = vadd.f32 0.0, %v1424
  %v1426 = vpop.f32.mrf.mxu0
  %v1427 = vadd.f32 0.0, %v1426
  %1428 = vmatmul.bf16.gmra.mxu0 %v990
  %v1429 = vpop.f32.mrf.mxu0
  %v1430 = vadd.f32 0.0, %v1429
  %v1431 = vpop.f32.mrf.mxu0
  %v1432 = vadd.f32 0.0, %v1431
  %1433 = vmatmul.bf16.gmra.mxu0 %v993
  %v1434 = vpop.f32.mrf.mxu0
  %v1435 = vadd.f32 0.0, %v1434
  %v1436 = vpop.f32.mrf.mxu0
  %v1437 = vadd.f32 0.0, %v1436
  %1438 = vmatmul.bf16.gmra.mxu0 %v996
  %v1439 = vpop.f32.mrf.mxu0
  %v1440 = vadd.f32 0.0, %v1439
  %v1441 = vpop.f32.mrf.mxu0
  %v1442 = vadd.f32 0.0, %v1441
  %1443 = vmatmul.bf16.gmra.mxu0 %v999
  %v1444 = vpop.f32.mrf.mxu0
  %v1445 = vadd.f32 0.0, %v1444
  %v1446 = vpop.f32.mrf.mxu0
  %v1447 = vadd.f32 0.0, %v1446
  %1448 = vmatmul.bf16.gmra.mxu0 %v1002
  %v1449 = vpop.f32.mrf.mxu0
  %v1450 = vadd.f32 0.0, %v1449
  %v1451 = vpop.f32.mrf.mxu0
  %v1452 = vadd.f32 0.0, %v1451
  %1453 = vmatmul.bf16.gmra.mxu0 %v1005
  %v1454 = vpop.f32.mrf.mxu0
  %v1455 = vadd.f32 0.0, %v1454
  %v1456 = vpop.f32.mrf.mxu0
  %v1457 = vadd.f32 0.0, %v1456
  %1458 = vmatmul.bf16.gmra.mxu0 %v1008
  %v1459 = vpop.f32.mrf.mxu0
  %v1460 = vadd.f32 0.0, %v1459
  %v1461 = vpop.f32.mrf.mxu0
  %v1462 = vadd.f32 0.0, %v1461
  %1463 = vmatmul.bf16.gmra.mxu0 %v1011
  %v1464 = vpop.f32.mrf.mxu0
  %v1465 = vadd.f32 0.0, %v1464
  %v1466 = vpop.f32.mrf.mxu0
  %v1467 = vadd.f32 0.0, %v1466
  %1468 = vmatmul.bf16.gmra.mxu0 %v1014
  %v1469 = vpop.f32.mrf.mxu0
  %v1470 = vadd.f32 0.0, %v1469
  %v1471 = vpop.f32.mrf.mxu0
  %v1472 = vadd.f32 0.0, %v1471
  %1473 = vmatmul.bf16.gmra.mxu0 %v1017
  %v1474 = vpop.f32.mrf.mxu0
  %v1475 = vadd.f32 0.0, %v1474
  %v1476 = vpop.f32.mrf.mxu0
  %v1477 = vadd.f32 0.0, %v1476
  %1478 = vmatmul.bf16.gmra.mxu0 %v1020
  %v1479 = vpop.f32.mrf.mxu0
  %v1480 = vadd.f32 0.0, %v1479
  %v1481 = vpop.f32.mrf.mxu0
  %v1482 = vadd.f32 0.0, %v1481
  %1483 = vmatmul.bf16.gmra.mxu0 %v1023
  %v1484 = vpop.f32.mrf.mxu0
  %v1485 = vadd.f32 0.0, %v1484
  %v1486 = vpop.f32.mrf.mxu0
  %v1487 = vadd.f32 0.0, %v1486
  %1488 = vmatmul.bf16.gmra.mxu0 %v1026
  %v1489 = vpop.f32.mrf.mxu0
  %v1490 = vadd.f32 0.0, %v1489
  %v1491 = vpop.f32.mrf.mxu0
  %v1492 = vadd.f32 0.0, %v1491
  %1493 = vmatmul.bf16.gmra.mxu0 %v1029
  %v1494 = vpop.f32.mrf.mxu0
  %v1495 = vadd.f32 0.0, %v1494
  %v1496 = vpop.f32.mrf.mxu0
  %v1497 = vadd.f32 0.0, %v1496
  %1498 = vmatmul.bf16.gmra.mxu0 %v1032
  %v1499 = vpop.f32.mrf.mxu0
  %v1500 = vadd.f32 0.0, %v1499
  %v1501 = vpop.f32.mrf.mxu0
  %v1502 = vadd.f32 0.0, %v1501
  %1503 = vmatmul.bf16.gmra.mxu0 %v1035
  %v1504 = vpop.f32.mrf.mxu0
  %v1505 = vadd.f32 0.0, %v1504
  %v1506 = vpop.f32.mrf.mxu0
  %v1507 = vadd.f32 0.0, %v1506
  %1508 = vmatmul.bf16.gmra.mxu0 %v1038
  %v1509 = vpop.f32.mrf.mxu0
  %v1510 = vadd.f32 0.0, %v1509
  %v1511 = vpop.f32.mrf.mxu0
  %v1512 = vadd.f32 0.0, %v1511
  %1513 = vmatmul.bf16.gmra.mxu0 %v1041
  %v1514 = vpop.f32.mrf.mxu0
  %v1515 = vadd.f32 0.0, %v1514
  %v1516 = vpop.f32.mrf.mxu0
  %v1517 = vadd.f32 0.0, %v1516
  %1518 = vmatmul.bf16.gmra.mxu0 %v1044
  %v1519 = vpop.f32.mrf.mxu0
  %v1520 = vadd.f32 0.0, %v1519
  %v1521 = vpop.f32.mrf.mxu0
  %v1522 = vadd.f32 0.0, %v1521
  %1523 = vmatmul.bf16.gmra.mxu0 %v1047
  %v1524 = vpop.f32.mrf.mxu0
  %v1525 = vadd.f32 0.0, %v1524
  %v1526 = vpop.f32.mrf.mxu0
  %v1527 = vadd.f32 0.0, %v1526
  %1528 = vmatmul.bf16.gmra.mxu0 %v1050
  %v1529 = vpop.f32.mrf.mxu0
  %v1530 = vadd.f32 0.0, %v1529
  %v1531 = vpop.f32.mrf.mxu0
  %v1532 = vadd.f32 0.0, %v1531
  %1533 = vmatmul.bf16.gmra.mxu0 %v1053
  %v1534 = vpop.f32.mrf.mxu0
  %v1535 = vadd.f32 0.0, %v1534
  %v1536 = vpop.f32.mrf.mxu0
  %v1537 = vadd.f32 0.0, %v1536
  %1538 = vmatmul.bf16.gmra.mxu0 %v1056
  %v1539 = vpop.f32.mrf.mxu0
  %v1540 = vadd.f32 0.0, %v1539
  %v1541 = vpop.f32.mrf.mxu0
  %v1542 = vadd.f32 0.0, %v1541
  %1543 = vmatmul.bf16.gmra.mxu0 %v1059
  %v1544 = vpop.f32.mrf.mxu0
  %v1545 = vadd.f32 0.0, %v1544
  %v1546 = vpop.f32.mrf.mxu0
  %v1547 = vadd.f32 0.0, %v1546
  %1548 = vmatmul.bf16.gmra.mxu0 %v1062
  %v1549 = vpop.f32.mrf.mxu0
  %v1550 = vadd.f32 0.0, %v1549
  %v1551 = vpop.f32.mrf.mxu0
  %v1552 = vadd.f32 0.0, %v1551
  %1553 = vmatmul.bf16.gmra.mxu0 %v1065
  %v1554 = vpop.f32.mrf.mxu0
  %v1555 = vadd.f32 0.0, %v1554
  %v1556 = vpop.f32.mrf.mxu0
  %v1557 = vadd.f32 0.0, %v1556
  %1558 = vmatmul.bf16.gmra.mxu0 %v1068
  %v1559 = vpop.f32.mrf.mxu0
  %v1560 = vadd.f32 0.0, %v1559
  %v1561 = vpop.f32.mrf.mxu0
  %v1562 = vadd.f32 0.0, %v1561
  %1563 = vmatmul.bf16.gmra.mxu0 %v1071
  %v1564 = vpop.f32.mrf.mxu0
  %v1565 = vadd.f32 0.0, %v1564
  %v1566 = vpop.f32.mrf.mxu0
  %v1567 = vadd.f32 0.0, %v1566
  %1568 = vmatmul.bf16.gmra.mxu0 %v1074
  %v1569 = vpop.f32.mrf.mxu0
  %v1570 = vadd.f32 0.0, %v1569
  %v1571 = vpop.f32.mrf.mxu0
  %v1572 = vadd.f32 0.0, %v1571
  %1573 = vmatmul.bf16.gmra.mxu0 %v1077
  %v1574 = vpop.f32.mrf.mxu0
  %v1575 = vadd.f32 0.0, %v1574
  %v1576 = vpop.f32.mrf.mxu0
  %v1577 = vadd.f32 0.0, %v1576
  %1578 = vmatmul.bf16.gmra.mxu0 %v1080
  %v1579 = vpop.f32.mrf.mxu0
  %v1580 = vadd.f32 0.0, %v1579
  %v1581 = vpop.f32.mrf.mxu0
  %v1582 = vadd.f32 0.0, %v1581
  %1583 = vmatmul.bf16.gmra.mxu0 %v1083
  %v1584 = vpop.f32.mrf.mxu0
  %v1585 = vadd.f32 0.0, %v1584
  %v1586 = vpop.f32.mrf.mxu0
  %v1587 = vadd.f32 0.0, %v1586
  %1588 = vmatmul.bf16.gmra.mxu0 %v1086
  %v1589 = vpop.f32.mrf.mxu0
  %v1590 = vadd.f32 0.0, %v1589
  %v1591 = vpop.f32.mrf.mxu0
  %v1592 = vadd.f32 0.0, %v1591
  %1593 = vmatmul.bf16.gmra.mxu0 %v1089
  %v1594 = vpop.f32.mrf.mxu0
  %v1595 = vadd.f32 0.0, %v1594
  %v1596 = vpop.f32.mrf.mxu0
  %v1597 = vadd.f32 0.0, %v1596
  %1598 = vmatmul.bf16.gmra.mxu0 %v1092
  %v1599 = vpop.f32.mrf.mxu0
  %v1600 = vadd.f32 0.0, %v1599
  %v1601 = vpop.f32.mrf.mxu0
  %v1602 = vadd.f32 0.0, %v1601
  %1603 = vmatmul.bf16.gmra.mxu0 %v1095
  %v1604 = vpop.f32.mrf.mxu0
  %v1605 = vadd.f32 0.0, %v1604
  %v1606 = vpop.f32.mrf.mxu0
  %v1607 = vadd.f32 0.0, %v1606
  %1608 = vmatmul.bf16.gmra.mxu0 %v1098
  %v1609 = vpop.f32.mrf.mxu0
  %v1610 = vadd.f32 0.0, %v1609
  %v1611 = vpop.f32.mrf.mxu0
  %v1612 = vadd.f32 0.0, %v1611
  %1613 = vmatmul.bf16.gmra.mxu0 %v1101
  %v1614 = vpop.f32.mrf.mxu0
  %v1615 = vadd.f32 0.0, %v1614
  %v1616 = vpop.f32.mrf.mxu0
  %v1617 = vadd.f32 0.0, %v1616
  %1618 = vmatmul.bf16.gmra.mxu0 %v1104
  %v1619 = vpop.f32.mrf.mxu0
  %v1620 = vadd.f32 0.0, %v1619
  %v1621 = vpop.f32.mrf.mxu0
  %v1622 = vadd.f32 0.0, %v1621
  %1623 = vmatmul.bf16.gmra.mxu0 %v1107
  %v1624 = vpop.f32.mrf.mxu0
  %v1625 = vadd.f32 0.0, %v1624
  %v1626 = vpop.f32.mrf.mxu0
  %v1627 = vadd.f32 0.0, %v1626
  %1628 = vmatmul.bf16.gmra.mxu0 %v1110
  %v1629 = vpop.f32.mrf.mxu0
  %v1630 = vadd.f32 0.0, %v1629
  %v1631 = vpop.f32.mrf.mxu0
  %v1632 = vadd.f32 0.0, %v1631
  %1633 = vmatmul.bf16.gmra.mxu0 %v1113
  %v1634 = vpop.f32.mrf.mxu0
  %v1635 = vadd.f32 0.0, %v1634
  %v1636 = vpop.f32.mrf.mxu0
  %v1637 = vadd.f32 0.0, %v1636
  %1638 = vmatmul.bf16.gmra.mxu0 %v1116
  %v1639 = vpop.f32.mrf.mxu0
  %v1640 = vadd.f32 0.0, %v1639
  %v1641 = vpop.f32.mrf.mxu0
  %v1642 = vadd.f32 0.0, %v1641
  %1643 = vmatmul.bf16.gmra.mxu0 %v1119
  %v1644 = vpop.f32.mrf.mxu0
  %v1645 = vadd.f32 0.0, %v1644
  %v1646 = vpop.f32.mrf.mxu0
  %v1647 = vadd.f32 0.0, %v1646
  %1648 = vmatmul.bf16.gmra.mxu0 %v1122
  %v1649 = vpop.f32.mrf.mxu0
  %v1650 = vadd.f32 0.0, %v1649
  %v1651 = vpop.f32.mrf.mxu0
  %v1652 = vadd.f32 0.0, %v1651
  %1653 = vmatmul.bf16.gmra.mxu0 %v1125
  %v1654 = vpop.f32.mrf.mxu0
  %v1655 = vadd.f32 0.0, %v1654
  %v1656 = vpop.f32.mrf.mxu0
  %v1657 = vadd.f32 0.0, %v1656
  %1658 = vmatmul.bf16.gmra.mxu0 %v1128
  %v1659 = vpop.f32.mrf.mxu0
  %v1660 = vadd.f32 0.0, %v1659
  %v1661 = vpop.f32.mrf.mxu0
  %v1662 = vadd.f32 0.0, %v1661
  %1663 = vmatmul.bf16.gmra.mxu0 %v1131
  %v1664 = vpop.f32.mrf.mxu0
  %v1665 = vadd.f32 0.0, %v1664
  %v1666 = vpop.f32.mrf.mxu0
  %v1667 = vadd.f32 0.0, %v1666
  %1668 = vmatmul.bf16.gmra.mxu0 %v1134
  %v1669 = vpop.f32.mrf.mxu0
  %v1670 = vadd.f32 0.0, %v1669
  %v1671 = vpop.f32.mrf.mxu0
  %v1672 = vadd.f32 0.0, %v1671
  %1673 = vmatmul.bf16.gmra.mxu0 %v1137
  %v1674 = vpop.f32.mrf.mxu0
  %v1675 = vadd.f32 0.0, %v1674
  %v1676 = vpop.f32.mrf.mxu0
  %v1677 = vadd.f32 0.0, %v1676
  %1678 = vmatmul.bf16.gmra.mxu0 %v1140
  %v1679 = vpop.f32.mrf.mxu0
  %v1680 = vadd.f32 0.0, %v1679
  %v1681 = vpop.f32.mrf.mxu0
  %v1682 = vadd.f32 0.0, %v1681
  %1683 = vmatmul.bf16.gmra.mxu0 %v1143
  %v1684 = vpop.f32.mrf.mxu0
  %v1685 = vadd.f32 0.0, %v1684
  %v1686 = vpop.f32.mrf.mxu0
  %v1687 = vadd.f32 0.0, %v1686
  %1688 = vmatmul.bf16.gmra.mxu0 %v1146
  %v1689 = vpop.f32.mrf.mxu0
  %v1690 = vadd.f32 0.0, %v1689
  %v1691 = vpop.f32.mrf.mxu0
  %v1692 = vadd.f32 0.0, %v1691
  %1693 = vmatmul.bf16.gmra.mxu0 %v1149
  %v1694 = vpop.f32.mrf.mxu0
  %v1695 = vadd.f32 0.0, %v1694
  %v1696 = vpop.f32.mrf.mxu0
  %v1697 = vadd.f32 0.0, %v1696
  %1698 = vmatmul.bf16.gmra.mxu0 %v1152
  %v1699 = vpop.f32.mrf.mxu0
  %v1700 = vadd.f32 0.0, %v1699
  %v1701 = vpop.f32.mrf.mxu0
  %v1702 = vadd.f32 0.0, %v1701
  %1703 = vmatmul.bf16.gmra.mxu0 %v1155
  %v1704 = vpop.f32.mrf.mxu0
  %v1705 = vadd.f32 0.0, %v1704
  %v1706 = vpop.f32.mrf.mxu0
  %v1707 = vadd.f32 0.0, %v1706
  %1708 = vmatmul.bf16.gmra.mxu0 %v1158
  %v1709 = vpop.f32.mrf.mxu0
  %v1710 = vadd.f32 0.0, %v1709
  %v1711 = vpop.f32.mrf.mxu0
  %v1712 = vadd.f32 0.0, %v1711
  %1713 = vmatmul.bf16.gmra.mxu0 %v1161
  %v1714 = vpop.f32.mrf.mxu0
  %v1715 = vadd.f32 0.0, %v1714
  %v1716 = vpop.f32.mrf.mxu0
  %v1717 = vadd.f32 0.0, %v1716
  %1718 = vmatmul.bf16.gmra.mxu0 %v1164
  %v1719 = vpop.f32.mrf.mxu0
  %v1720 = vadd.f32 0.0, %v1719
  %v1721 = vpop.f32.mrf.mxu0
  %v1722 = vadd.f32 0.0, %v1721
  %1723 = vmatmul.bf16.gmra.mxu0 %v1167
  %v1724 = vpop.f32.mrf.mxu0
  %v1725 = vadd.f32 0.0, %v1724
  %v1726 = vpop.f32.mrf.mxu0
  %v1727 = vadd.f32 0.0, %v1726
  %1728 = vmatmul.bf16.gmra.mxu0 %v1170
  %v1729 = vpop.f32.mrf.mxu0
  %v1730 = vadd.f32 0.0, %v1729
  %v1731 = vpop.f32.mrf.mxu0
  %v1732 = vadd.f32 0.0, %v1731
  %1733 = vmatmul.bf16.gmra.mxu0 %v1173
  %v1734 = vpop.f32.mrf.mxu0
  %v1735 = vadd.f32 0.0, %v1734
  %v1736 = vpop.f32.mrf.mxu0
  %v1737 = vadd.f32 0.0, %v1736
  %1738 = vmatmul.bf16.gmra.mxu0 %v1176
  %v1739 = vpop.f32.mrf.mxu0
  %v1740 = vadd.f32 0.0, %v1739
  %v1741 = vpop.f32.mrf.mxu0
  %v1742 = vadd.f32 0.0, %v1741
  %1743 = vmatmul.bf16.gmra.mxu0 %v1179
  %v1744 = vpop.f32.mrf.mxu0
  %v1745 = vadd.f32 0.0, %v1744
  %v1746 = vpop.f32.mrf.mxu0
  %v1747 = vadd.f32 0.0, %v1746
  %1748 = vmatmul.bf16.gmra.mxu0 %v1182
  %v1749 = vpop.f32.mrf.mxu0
  %v1750 = vadd.f32 0.0, %v1749
  %v1751 = vpop.f32.mrf.mxu0
  %v1752 = vadd.f32 0.0, %v1751
  %1753 = vmatmul.bf16.gmra.mxu0 %v1185
  %v1754 = vpop.f32.mrf.mxu0
  %v1755 = vadd.f32 0.0, %v1754
  %v1756 = vpop.f32.mrf.mxu0
  %v1757 = vadd.f32 0.0, %v1756
  %1758 = vmatmul.bf16.gmra.mxu0 %v1188
  %v1759 = vpop.f32.mrf.mxu0
  %v1760 = vadd.f32 0.0, %v1759
  %v1761 = vpop.f32.mrf.mxu0
  %v1762 = vadd.f32 0.0, %v1761
  %1763 = vmatmul.bf16.gmra.mxu0 %v1191
  %v1764 = vpop.f32.mrf.mxu0
  %v1765 = vadd.f32 0.0, %v1764
  %v1766 = vpop.f32.mrf.mxu0
  %v1767 = vadd.f32 0.0, %v1766
  %1768 = vmatmul.bf16.gmra.mxu0 %v1194
  %v1769 = vpop.f32.mrf.mxu0
  %v1770 = vadd.f32 0.0, %v1769
  %v1771 = vpop.f32.mrf.mxu0
  %v1772 = vadd.f32 0.0, %v1771
  %1773 = vmatmul.bf16.gmra.mxu0 %v1197
  %v1774 = vpop.f32.mrf.mxu0
  %v1775 = vadd.f32 0.0, %v1774
  %v1776 = vpop.f32.mrf.mxu0
  %v1777 = vadd.f32 0.0, %v1776
  %1778 = vmatmul.bf16.gmra.mxu0 %v1200
  %v1779 = vpop.f32.mrf.mxu0
  %v1780 = vadd.f32 0.0, %v1779
  %v1781 = vpop.f32.mrf.mxu0
  %v1782 = vadd.f32 0.0, %v1781
  %1783 = vmatmul.bf16.gmra.mxu0 %v1203
  %v1784 = vpop.f32.mrf.mxu0
  %v1785 = vadd.f32 0.0, %v1784
  %v1786 = vpop.f32.mrf.mxu0
  %v1787 = vadd.f32 0.0, %v1786
  %1788 = vmatmul.bf16.gmra.mxu0 %v1206
  %v1789 = vpop.f32.mrf.mxu0
  %v1790 = vadd.f32 0.0, %v1789
  %v1791 = vpop.f32.mrf.mxu0
  %v1792 = vadd.f32 0.0, %v1791
  %1793 = vmatmul.bf16.gmra.mxu0 %v1209
  %v1794 = vpop.f32.mrf.mxu0
  %v1795 = vadd.f32 0.0, %v1794
  %v1796 = vpop.f32.mrf.mxu0
  %v1797 = vadd.f32 0.0, %v1796
  %1798 = vmatmul.bf16.gmra.mxu0 %v1212
  %v1799 = vpop.f32.mrf.mxu0
  %v1800 = vadd.f32 0.0, %v1799
  %v1801 = vpop.f32.mrf.mxu0
  %v1802 = vadd.f32 0.0, %v1801
  %1803 = vmatmul.bf16.gmra.mxu0 %v1215
  %v1804 = vpop.f32.mrf.mxu0
  %v1805 = vadd.f32 0.0, %v1804
  %v1806 = vpop.f32.mrf.mxu0
  %v1807 = vadd.f32 0.0, %v1806
  %1808 = vmatmul.bf16.gmra.mxu0 %v1218
  %v1809 = vpop.f32.mrf.mxu0
  %v1810 = vadd.f32 0.0, %v1809
  %v1811 = vpop.f32.mrf.mxu0
  %v1812 = vadd.f32 0.0, %v1811
  %1813 = vmatmul.bf16.gmra.mxu0 %v1221
  %v1814 = vpop.f32.mrf.mxu0
  %v1815 = vadd.f32 0.0, %v1814
  %v1816 = vpop.f32.mrf.mxu0
  %v1817 = vadd.f32 0.0, %v1816
  %1818 = vmatmul.bf16.gmra.mxu0 %v1224
  %v1819 = vpop.f32.mrf.mxu0
  %v1820 = vadd.f32 0.0, %v1819
  %v1821 = vpop.f32.mrf.mxu0
  %v1822 = vadd.f32 0.0, %v1821
  %1823 = vmatmul.bf16.gmra.mxu0 %v1227
  %v1824 = vpop.f32.mrf.mxu0
  %v1825 = vadd.f32 0.0, %v1824
  %v1826 = vpop.f32.mrf.mxu0
  %v1827 = vadd.f32 0.0, %v1826
  %1828 = vmatmul.bf16.gmra.mxu0 %v1230
  %v1829 = vpop.f32.mrf.mxu0
  %v1830 = vadd.f32 0.0, %v1829
  %v1831 = vpop.f32.mrf.mxu0
  %v1832 = vadd.f32 0.0, %v1831
  %1833 = vmatmul.bf16.gmra.mxu0 %v1233
  %v1834 = vpop.f32.mrf.mxu0
  %v1835 = vadd.f32 0.0, %v1834
  %v1836 = vpop.f32.mrf.mxu0
  %v1837 = vadd.f32 0.0, %v1836
  %1838 = vmatmul.bf16.gmra.mxu0 %v1236
  %v1839 = vpop.f32.mrf.mxu0
  %v1840 = vadd.f32 0.0, %v1839
  %v1841 = vpop.f32.mrf.mxu0
  %v1842 = vadd.f32 0.0, %v1841
  %1843 = vmatmul.bf16.gmra.mxu0 %v1239
  %v1844 = vpop.f32.mrf.mxu0
  %v1845 = vadd.f32 0.0, %v1844
  %v1846 = vpop.f32.mrf.mxu0
  %v1847 = vadd.f32 0.0, %v1846
  %1848 = vmatmul.bf16.gmra.mxu0 %v1242
  %v1849 = vpop.f32.mrf.mxu0
  %v1850 = vadd.f32 0.0, %v1849
  %v1851 = vpop.f32.mrf.mxu0
  %v1852 = vadd.f32 0.0, %v1851
  %1853 = vmatmul.bf16.gmra.mxu0 %v1245
  %v1854 = vpop.f32.mrf.mxu0
  %v1855 = vadd.f32 0.0, %v1854
  %v1856 = vpop.f32.mrf.mxu0
  %v1857 = vadd.f32 0.0, %v1856
  %1858 = vmatmul.bf16.gmra.mxu0 %v1248
  %v1859 = vpop.f32.mrf.mxu0
  %v1860 = vadd.f32 0.0, %v1859
  %v1861 = vpop.f32.mrf.mxu0
  %1862 = vdwg.mxu0
  %vm1863 = vcmask 130048
  %v1864 = vsel %vm1863, %v1260, 0.0
  %v1865 = vsel %vm1863, %v1262, 0.0
  %v1866 = vadd.f32 %v1864, %v1865
  %v1867 = vsel %vm1863, %v1265, 0.0
  %v1868 = vadd.f32 %v1866, %v1867
  %v1869 = vsel %vm1863, %v1267, 0.0
  %v1870 = vadd.f32 %v1868, %v1869
  %v1871 = vsel %vm1863, %v1270, 0.0
  %v1872 = vadd.f32 %v1870, %v1871
  %v1873 = vsel %vm1863, %v1272, 0.0
  %v1874 = vadd.f32 %v1872, %v1873
  %v1875 = vsel %vm1863, %v1275, 0.0
  %v1876 = vadd.f32 %v1874, %v1875
  %v1877 = vsel %vm1863, %v1277, 0.0
  %v1878 = vadd.f32 %v1876, %v1877
  %v1879 = vsel %vm1863, %v1280, 0.0
  %v1880 = vadd.f32 %v1878, %v1879
  %v1881 = vsel %vm1863, %v1282, 0.0
  %v1882 = vadd.f32 %v1880, %v1881
  %v1883 = vsel %vm1863, %v1285, 0.0
  %v1884 = vadd.f32 %v1882, %v1883
  %v1885 = vsel %vm1863, %v1287, 0.0
  %v1886 = vadd.f32 %v1884, %v1885
  %v1887 = vsel %vm1863, %v1290, 0.0
  %v1888 = vadd.f32 %v1886, %v1887
  %v1889 = vsel %vm1863, %v1292, 0.0
  %v1890 = vadd.f32 %v1888, %v1889
  %v1891 = vsel %vm1863, %v1295, 0.0
  %v1892 = vadd.f32 %v1890, %v1891
  %v1893 = vsel %vm1863, %v1297, 0.0
  %v1894 = vadd.f32 %v1892, %v1893
  %v1895 = vsel %vm1863, %v1300, 0.0
  %v1896 = vadd.f32 %v1894, %v1895
  %v1897 = vsel %vm1863, %v1302, 0.0
  %v1898 = vadd.f32 %v1896, %v1897
  %v1899 = vsel %vm1863, %v1305, 0.0
  %v1900 = vadd.f32 %v1898, %v1899
  %v1901 = vsel %vm1863, %v1307, 0.0
  %v1902 = vadd.f32 %v1900, %v1901
  %v1903 = vsel %vm1863, %v1310, 0.0
  %v1904 = vadd.f32 %v1902, %v1903
  %v1905 = vsel %vm1863, %v1312, 0.0
  %v1906 = vadd.f32 %v1904, %v1905
  %v1907 = vsel %vm1863, %v1315, 0.0
  %v1908 = vadd.f32 %v1906, %v1907
  %v1909 = vsel %vm1863, %v1317, 0.0
  %v1910 = vadd.f32 %v1908, %v1909
  %v1911 = vsel %vm1863, %v1320, 0.0
  %v1912 = vadd.f32 %v1910, %v1911
  %v1913 = vsel %vm1863, %v1322, 0.0
  %v1914 = vadd.f32 %v1912, %v1913
  %v1915 = vsel %vm1863, %v1325, 0.0
  %v1916 = vadd.f32 %v1914, %v1915
  %v1917 = vsel %vm1863, %v1327, 0.0
  %v1918 = vadd.f32 %v1916, %v1917
  %v1919 = vsel %vm1863, %v1330, 0.0
  %v1920 = vadd.f32 %v1918, %v1919
  %v1921 = vsel %vm1863, %v1332, 0.0
  %v1922 = vadd.f32 %v1920, %v1921
  %v1923 = vsel %vm1863, %v1335, 0.0
  %v1924 = vadd.f32 %v1922, %v1923
  %v1925 = vsel %vm1863, %v1337, 0.0
  %v1926 = vadd.f32 %v1924, %v1925
  %v1927 = vsel %vm1863, %v1340, 0.0
  %v1928 = vadd.f32 %v1926, %v1927
  %v1929 = vsel %vm1863, %v1342, 0.0
  %v1930 = vadd.f32 %v1928, %v1929
  %v1931 = vsel %vm1863, %v1345, 0.0
  %v1932 = vadd.f32 %v1930, %v1931
  %v1933 = vsel %vm1863, %v1347, 0.0
  %v1934 = vadd.f32 %v1932, %v1933
  %v1935 = vsel %vm1863, %v1350, 0.0
  %v1936 = vadd.f32 %v1934, %v1935
  %v1937 = vsel %vm1863, %v1352, 0.0
  %v1938 = vadd.f32 %v1936, %v1937
  %v1939 = vsel %vm1863, %v1355, 0.0
  %v1940 = vadd.f32 %v1938, %v1939
  %v1941 = vsel %vm1863, %v1357, 0.0
  %v1942 = vadd.f32 %v1940, %v1941
  %v1943 = vsel %vm1863, %v1360, 0.0
  %v1944 = vadd.f32 %v1942, %v1943
  %v1945 = vsel %vm1863, %v1362, 0.0
  %v1946 = vadd.f32 %v1944, %v1945
  %v1947 = vsel %vm1863, %v1365, 0.0
  %v1948 = vadd.f32 %v1946, %v1947
  %v1949 = vsel %vm1863, %v1367, 0.0
  %v1950 = vadd.f32 %v1948, %v1949
  %v1951 = vsel %vm1863, %v1370, 0.0
  %v1952 = vadd.f32 %v1950, %v1951
  %v1953 = vsel %vm1863, %v1372, 0.0
  %v1954 = vadd.f32 %v1952, %v1953
  %v1955 = vsel %vm1863, %v1375, 0.0
  %v1956 = vadd.f32 %v1954, %v1955
  %v1957 = vsel %vm1863, %v1377, 0.0
  %v1958 = vadd.f32 %v1956, %v1957
  %v1959 = vsel %vm1863, %v1380, 0.0
  %v1960 = vadd.f32 %v1958, %v1959
  %v1961 = vsel %vm1863, %v1382, 0.0
  %v1962 = vadd.f32 %v1960, %v1961
  %v1963 = vsel %vm1863, %v1385, 0.0
  %v1964 = vadd.f32 %v1962, %v1963
  %v1965 = vsel %vm1863, %v1387, 0.0
  %v1966 = vadd.f32 %v1964, %v1965
  %v1967 = vsel %vm1863, %v1390, 0.0
  %v1968 = vadd.f32 %v1966, %v1967
  %v1969 = vsel %vm1863, %v1392, 0.0
  %v1970 = vadd.f32 %v1968, %v1969
  %v1971 = vsel %vm1863, %v1395, 0.0
  %v1972 = vadd.f32 %v1970, %v1971
  %v1973 = vsel %vm1863, %v1397, 0.0
  %v1974 = vadd.f32 %v1972, %v1973
  %v1975 = vsel %vm1863, %v1400, 0.0
  %v1976 = vadd.f32 %v1974, %v1975
  %v1977 = vsel %vm1863, %v1402, 0.0
  %v1978 = vadd.f32 %v1976, %v1977
  %v1979 = vsel %vm1863, %v1405, 0.0
  %v1980 = vadd.f32 %v1978, %v1979
  %v1981 = vsel %vm1863, %v1407, 0.0
  %v1982 = vadd.f32 %v1980, %v1981
  %v1983 = vsel %vm1863, %v1410, 0.0
  %v1984 = vadd.f32 %v1982, %v1983
  %v1985 = vsel %vm1863, %v1412, 0.0
  %v1986 = vadd.f32 %v1984, %v1985
  %v1987 = vsel %vm1863, %v1415, 0.0
  %v1988 = vadd.f32 %v1986, %v1987
  %v1989 = vsel %vm1863, %v1417, 0.0
  %v1990 = vadd.f32 %v1988, %v1989
  %v1991 = vsel %vm1863, %v1420, 0.0
  %v1992 = vadd.f32 %v1990, %v1991
  %v1993 = vsel %vm1863, %v1422, 0.0
  %v1994 = vadd.f32 %v1992, %v1993
  %v1995 = vsel %vm1863, %v1425, 0.0
  %v1996 = vadd.f32 %v1994, %v1995
  %v1997 = vsel %vm1863, %v1427, 0.0
  %v1998 = vadd.f32 %v1996, %v1997
  %v1999 = vsel %vm1863, %v1430, 0.0
  %v2000 = vadd.f32 %v1998, %v1999
  %v2001 = vsel %vm1863, %v1432, 0.0
  %v2002 = vadd.f32 %v2000, %v2001
  %v2003 = vsel %vm1863, %v1435, 0.0
  %v2004 = vadd.f32 %v2002, %v2003
  %v2005 = vsel %vm1863, %v1437, 0.0
  %v2006 = vadd.f32 %v2004, %v2005
  %v2007 = vsel %vm1863, %v1440, 0.0
  %v2008 = vadd.f32 %v2006, %v2007
  %v2009 = vsel %vm1863, %v1442, 0.0
  %v2010 = vadd.f32 %v2008, %v2009
  %v2011 = vsel %vm1863, %v1445, 0.0
  %v2012 = vadd.f32 %v2010, %v2011
  %v2013 = vsel %vm1863, %v1447, 0.0
  %v2014 = vadd.f32 %v2012, %v2013
  %v2015 = vsel %vm1863, %v1450, 0.0
  %v2016 = vadd.f32 %v2014, %v2015
  %v2017 = vsel %vm1863, %v1452, 0.0
  %v2018 = vadd.f32 %v2016, %v2017
  %v2019 = vsel %vm1863, %v1455, 0.0
  %v2020 = vadd.f32 %v2018, %v2019
  %v2021 = vsel %vm1863, %v1457, 0.0
  %v2022 = vadd.f32 %v2020, %v2021
  %v2023 = vsel %vm1863, %v1460, 0.0
  %v2024 = vadd.f32 %v2022, %v2023
  %v2025 = vsel %vm1863, %v1462, 0.0
  %v2026 = vadd.f32 %v2024, %v2025
  %v2027 = vsel %vm1863, %v1465, 0.0
  %v2028 = vadd.f32 %v2026, %v2027
  %v2029 = vsel %vm1863, %v1467, 0.0
  %v2030 = vadd.f32 %v2028, %v2029
  %v2031 = vsel %vm1863, %v1470, 0.0
  %v2032 = vadd.f32 %v2030, %v2031
  %v2033 = vsel %vm1863, %v1472, 0.0
  %v2034 = vadd.f32 %v2032, %v2033
  %v2035 = vsel %vm1863, %v1475, 0.0
  %v2036 = vadd.f32 %v2034, %v2035
  %v2037 = vsel %vm1863, %v1477, 0.0
  %v2038 = vadd.f32 %v2036, %v2037
  %v2039 = vsel %vm1863, %v1480, 0.0
  %v2040 = vadd.f32 %v2038, %v2039
  %v2041 = vsel %vm1863, %v1482, 0.0
  %v2042 = vadd.f32 %v2040, %v2041
  %v2043 = vsel %vm1863, %v1485, 0.0
  %v2044 = vadd.f32 %v2042, %v2043
  %v2045 = vsel %vm1863, %v1487, 0.0
  %v2046 = vadd.f32 %v2044, %v2045
  %v2047 = vsel %vm1863, %v1490, 0.0
  %v2048 = vadd.f32 %v2046, %v2047
  %v2049 = vsel %vm1863, %v1492, 0.0
  %v2050 = vadd.f32 %v2048, %v2049
  %v2051 = vsel %vm1863, %v1495, 0.0
  %v2052 = vadd.f32 %v2050, %v2051
  %v2053 = vsel %vm1863, %v1497, 0.0
  %v2054 = vadd.f32 %v2052, %v2053
  %v2055 = vsel %vm1863, %v1500, 0.0
  %v2056 = vadd.f32 %v2054, %v2055
  %v2057 = vsel %vm1863, %v1502, 0.0
  %v2058 = vadd.f32 %v2056, %v2057
  %v2059 = vsel %vm1863, %v1505, 0.0
  %v2060 = vadd.f32 %v2058, %v2059
  %v2061 = vsel %vm1863, %v1507, 0.0
  %v2062 = vadd.f32 %v2060, %v2061
  %v2063 = vsel %vm1863, %v1510, 0.0
  %v2064 = vadd.f32 %v2062, %v2063
  %v2065 = vsel %vm1863, %v1512, 0.0
  %v2066 = vadd.f32 %v2064, %v2065
  %v2067 = vsel %vm1863, %v1515, 0.0
  %v2068 = vadd.f32 %v2066, %v2067
  %v2069 = vsel %vm1863, %v1517, 0.0
  %v2070 = vadd.f32 %v2068, %v2069
  %v2071 = vsel %vm1863, %v1520, 0.0
  %v2072 = vadd.f32 %v2070, %v2071
  %v2073 = vsel %vm1863, %v1522, 0.0
  %v2074 = vadd.f32 %v2072, %v2073
  %v2075 = vsel %vm1863, %v1525, 0.0
  %v2076 = vadd.f32 %v2074, %v2075
  %v2077 = vsel %vm1863, %v1527, 0.0
  %v2078 = vadd.f32 %v2076, %v2077
  %v2079 = vsel %vm1863, %v1530, 0.0
  %v2080 = vadd.f32 %v2078, %v2079
  %v2081 = vsel %vm1863, %v1532, 0.0
  %v2082 = vadd.f32 %v2080, %v2081
  %v2083 = vsel %vm1863, %v1535, 0.0
  %v2084 = vadd.f32 %v2082, %v2083
  %v2085 = vsel %vm1863, %v1537, 0.0
  %v2086 = vadd.f32 %v2084, %v2085
  %v2087 = vsel %vm1863, %v1540, 0.0
  %v2088 = vadd.f32 %v2086, %v2087
  %v2089 = vsel %vm1863, %v1542, 0.0
  %v2090 = vadd.f32 %v2088, %v2089
  %v2091 = vsel %vm1863, %v1545, 0.0
  %v2092 = vadd.f32 %v2090, %v2091
  %v2093 = vsel %vm1863, %v1547, 0.0
  %v2094 = vadd.f32 %v2092, %v2093
  %v2095 = vsel %vm1863, %v1550, 0.0
  %v2096 = vadd.f32 %v2094, %v2095
  %v2097 = vsel %vm1863, %v1552, 0.0
  %v2098 = vadd.f32 %v2096, %v2097
  %v2099 = vsel %vm1863, %v1555, 0.0
  %v2100 = vadd.f32 %v2098, %v2099
  %v2101 = vsel %vm1863, %v1557, 0.0
  %v2102 = vadd.f32 %v2100, %v2101
  %v2103 = vsel %vm1863, %v1560, 0.0
  %v2104 = vadd.f32 %v2102, %v2103
  %v2105 = vsel %vm1863, %v1562, 0.0
  %v2106 = vadd.f32 %v2104, %v2105
  %v2107 = vsel %vm1863, %v1565, 0.0
  %v2108 = vadd.f32 %v2106, %v2107
  %v2109 = vsel %vm1863, %v1567, 0.0
  %v2110 = vadd.f32 %v2108, %v2109
  %v2111 = vsel %vm1863, %v1570, 0.0
  %v2112 = vadd.f32 %v2110, %v2111
  %v2113 = vsel %vm1863, %v1572, 0.0
  %v2114 = vadd.f32 %v2112, %v2113
  %v2115 = vsel %vm1863, %v1575, 0.0
  %v2116 = vadd.f32 %v2114, %v2115
  %v2117 = vsel %vm1863, %v1577, 0.0
  %v2118 = vadd.f32 %v2116, %v2117
  %v2119 = vsel %vm1863, %v1580, 0.0
  %v2120 = vadd.f32 %v2118, %v2119
  %v2121 = vsel %vm1863, %v1582, 0.0
  %v2122 = vadd.f32 %v2120, %v2121
  %v2123 = vsel %vm1863, %v1585, 0.0
  %v2124 = vadd.f32 %v2122, %v2123
  %v2125 = vsel %vm1863, %v1587, 0.0
  %v2126 = vadd.f32 %v2124, %v2125
  %v2127 = vsel %vm1863, %v1590, 0.0
  %v2128 = vadd.f32 %v2126, %v2127
  %v2129 = vsel %vm1863, %v1592, 0.0
  %v2130 = vadd.f32 %v2128, %v2129
  %v2131 = vsel %vm1863, %v1595, 0.0
  %v2132 = vadd.f32 %v2130, %v2131
  %v2133 = vsel %vm1863, %v1597, 0.0
  %v2134 = vadd.f32 %v2132, %v2133
  %v2135 = vsel %vm1863, %v1600, 0.0
  %v2136 = vadd.f32 %v2134, %v2135
  %v2137 = vsel %vm1863, %v1602, 0.0
  %v2138 = vadd.f32 %v2136, %v2137
  %v2139 = vsel %vm1863, %v1605, 0.0
  %v2140 = vadd.f32 %v2138, %v2139
  %v2141 = vsel %vm1863, %v1607, 0.0
  %v2142 = vadd.f32 %v2140, %v2141
  %v2143 = vsel %vm1863, %v1610, 0.0
  %v2144 = vadd.f32 %v2142, %v2143
  %v2145 = vsel %vm1863, %v1612, 0.0
  %v2146 = vadd.f32 %v2144, %v2145
  %v2147 = vsel %vm1863, %v1615, 0.0
  %v2148 = vadd.f32 %v2146, %v2147
  %v2149 = vsel %vm1863, %v1617, 0.0
  %v2150 = vadd.f32 %v2148, %v2149
  %v2151 = vsel %vm1863, %v1620, 0.0
  %v2152 = vadd.f32 %v2150, %v2151
  %v2153 = vsel %vm1863, %v1622, 0.0
  %v2154 = vadd.f32 %v2152, %v2153
  %v2155 = vsel %vm1863, %v1625, 0.0
  %v2156 = vadd.f32 %v2154, %v2155
  %v2157 = vsel %vm1863, %v1627, 0.0
  %v2158 = vadd.f32 %v2156, %v2157
  %v2159 = vsel %vm1863, %v1630, 0.0
  %v2160 = vadd.f32 %v2158, %v2159
  %v2161 = vsel %vm1863, %v1632, 0.0
  %v2162 = vadd.f32 %v2160, %v2161
  %v2163 = vsel %vm1863, %v1635, 0.0
  %v2164 = vadd.f32 %v2162, %v2163
  %v2165 = vsel %vm1863, %v1637, 0.0
  %v2166 = vadd.f32 %v2164, %v2165
  %v2167 = vsel %vm1863, %v1640, 0.0
  %v2168 = vadd.f32 %v2166, %v2167
  %v2169 = vsel %vm1863, %v1642, 0.0
  %v2170 = vadd.f32 %v2168, %v2169
  %v2171 = vsel %vm1863, %v1645, 0.0
  %v2172 = vadd.f32 %v2170, %v2171
  %v2173 = vsel %vm1863, %v1647, 0.0
  %v2174 = vadd.f32 %v2172, %v2173
  %v2175 = vsel %vm1863, %v1650, 0.0
  %v2176 = vadd.f32 %v2174, %v2175
  %v2177 = vsel %vm1863, %v1652, 0.0
  %v2178 = vadd.f32 %v2176, %v2177
  %v2179 = vsel %vm1863, %v1655, 0.0
  %v2180 = vadd.f32 %v2178, %v2179
  %v2181 = vsel %vm1863, %v1657, 0.0
  %v2182 = vadd.f32 %v2180, %v2181
  %v2183 = vsel %vm1863, %v1660, 0.0
  %v2184 = vadd.f32 %v2182, %v2183
  %v2185 = vsel %vm1863, %v1662, 0.0
  %v2186 = vadd.f32 %v2184, %v2185
  %v2187 = vsel %vm1863, %v1665, 0.0
  %v2188 = vadd.f32 %v2186, %v2187
  %v2189 = vsel %vm1863, %v1667, 0.0
  %v2190 = vadd.f32 %v2188, %v2189
  %v2191 = vsel %vm1863, %v1670, 0.0
  %v2192 = vadd.f32 %v2190, %v2191
  %v2193 = vsel %vm1863, %v1672, 0.0
  %v2194 = vadd.f32 %v2192, %v2193
  %v2195 = vsel %vm1863, %v1675, 0.0
  %v2196 = vadd.f32 %v2194, %v2195
  %v2197 = vsel %vm1863, %v1677, 0.0
  %v2198 = vadd.f32 %v2196, %v2197
  %v2199 = vsel %vm1863, %v1680, 0.0
  %v2200 = vadd.f32 %v2198, %v2199
  %v2201 = vsel %vm1863, %v1682, 0.0
  %v2202 = vadd.f32 %v2200, %v2201
  %v2203 = vsel %vm1863, %v1685, 0.0
  %v2204 = vadd.f32 %v2202, %v2203
  %v2205 = vsel %vm1863, %v1687, 0.0
  %v2206 = vadd.f32 %v2204, %v2205
  %v2207 = vsel %vm1863, %v1690, 0.0
  %v2208 = vadd.f32 %v2206, %v2207
  %v2209 = vsel %vm1863, %v1692, 0.0
  %v2210 = vadd.f32 %v2208, %v2209
  %v2211 = vsel %vm1863, %v1695, 0.0
  %v2212 = vadd.f32 %v2210, %v2211
  %v2213 = vsel %vm1863, %v1697, 0.0
  %v2214 = vadd.f32 %v2212, %v2213
  %v2215 = vsel %vm1863, %v1700, 0.0
  %v2216 = vadd.f32 %v2214, %v2215
  %v2217 = vsel %vm1863, %v1702, 0.0
  %v2218 = vadd.f32 %v2216, %v2217
  %v2219 = vsel %vm1863, %v1705, 0.0
  %v2220 = vadd.f32 %v2218, %v2219
  %v2221 = vsel %vm1863, %v1707, 0.0
  %v2222 = vadd.f32 %v2220, %v2221
  %v2223 = vsel %vm1863, %v1710, 0.0
  %v2224 = vadd.f32 %v2222, %v2223
  %v2225 = vsel %vm1863, %v1712, 0.0
  %v2226 = vadd.f32 %v2224, %v2225
  %v2227 = vsel %vm1863, %v1715, 0.0
  %v2228 = vadd.f32 %v2226, %v2227
  %v2229 = vsel %vm1863, %v1717, 0.0
  %v2230 = vadd.f32 %v2228, %v2229
  %v2231 = vsel %vm1863, %v1720, 0.0
  %v2232 = vadd.f32 %v2230, %v2231
  %v2233 = vsel %vm1863, %v1722, 0.0
  %v2234 = vadd.f32 %v2232, %v2233
  %v2235 = vsel %vm1863, %v1725, 0.0
  %v2236 = vadd.f32 %v2234, %v2235
  %v2237 = vsel %vm1863, %v1727, 0.0
  %v2238 = vadd.f32 %v2236, %v2237
  %v2239 = vsel %vm1863, %v1730, 0.0
  %v2240 = vadd.f32 %v2238, %v2239
  %v2241 = vsel %vm1863, %v1732, 0.0
  %v2242 = vadd.f32 %v2240, %v2241
  %v2243 = vsel %vm1863, %v1735, 0.0
  %v2244 = vadd.f32 %v2242, %v2243
  %v2245 = vsel %vm1863, %v1737, 0.0
  %v2246 = vadd.f32 %v2244, %v2245
  %v2247 = vsel %vm1863, %v1740, 0.0
  %v2248 = vadd.f32 %v2246, %v2247
  %v2249 = vsel %vm1863, %v1742, 0.0
  %v2250 = vadd.f32 %v2248, %v2249
  %v2251 = vsel %vm1863, %v1745, 0.0
  %v2252 = vadd.f32 %v2250, %v2251
  %v2253 = vsel %vm1863, %v1747, 0.0
  %v2254 = vadd.f32 %v2252, %v2253
  %v2255 = vsel %vm1863, %v1750, 0.0
  %v2256 = vadd.f32 %v2254, %v2255
  %v2257 = vsel %vm1863, %v1752, 0.0
  %v2258 = vadd.f32 %v2256, %v2257
  %v2259 = vsel %vm1863, %v1755, 0.0
  %v2260 = vadd.f32 %v2258, %v2259
  %v2261 = vsel %vm1863, %v1757, 0.0
  %v2262 = vadd.f32 %v2260, %v2261
  %v2263 = vsel %vm1863, %v1760, 0.0
  %v2264 = vadd.f32 %v2262, %v2263
  %v2265 = vsel %vm1863, %v1762, 0.0
  %v2266 = vadd.f32 %v2264, %v2265
  %v2267 = vsel %vm1863, %v1765, 0.0
  %v2268 = vadd.f32 %v2266, %v2267
  %v2269 = vsel %vm1863, %v1767, 0.0
  %v2270 = vadd.f32 %v2268, %v2269
  %v2271 = vsel %vm1863, %v1770, 0.0
  %v2272 = vadd.f32 %v2270, %v2271
  %v2273 = vsel %vm1863, %v1772, 0.0
  %v2274 = vadd.f32 %v2272, %v2273
  %v2275 = vsel %vm1863, %v1775, 0.0
  %v2276 = vadd.f32 %v2274, %v2275
  %v2277 = vsel %vm1863, %v1777, 0.0
  %v2278 = vadd.f32 %v2276, %v2277
  %v2279 = vsel %vm1863, %v1780, 0.0
  %v2280 = vadd.f32 %v2278, %v2279
  %v2281 = vsel %vm1863, %v1782, 0.0
  %v2282 = vadd.f32 %v2280, %v2281
  %v2283 = vsel %vm1863, %v1785, 0.0
  %v2284 = vadd.f32 %v2282, %v2283
  %v2285 = vsel %vm1863, %v1787, 0.0
  %v2286 = vadd.f32 %v2284, %v2285
  %v2287 = vsel %vm1863, %v1790, 0.0
  %v2288 = vadd.f32 %v2286, %v2287
  %v2289 = vsel %vm1863, %v1792, 0.0
  %v2290 = vadd.f32 %v2288, %v2289
  %v2291 = vsel %vm1863, %v1795, 0.0
  %v2292 = vadd.f32 %v2290, %v2291
  %v2293 = vsel %vm1863, %v1797, 0.0
  %v2294 = vadd.f32 %v2292, %v2293
  %v2295 = vsel %vm1863, %v1800, 0.0
  %v2296 = vadd.f32 %v2294, %v2295
  %v2297 = vsel %vm1863, %v1802, 0.0
  %v2298 = vadd.f32 %v2296, %v2297
  %v2299 = vsel %vm1863, %v1805, 0.0
  %v2300 = vadd.f32 %v2298, %v2299
  %v2301 = vsel %vm1863, %v1807, 0.0
  %v2302 = vadd.f32 %v2300, %v2301
  %v2303 = vsel %vm1863, %v1810, 0.0
  %v2304 = vadd.f32 %v2302, %v2303
  %v2305 = vsel %vm1863, %v1812, 0.0
  %v2306 = vadd.f32 %v2304, %v2305
  %v2307 = vsel %vm1863, %v1815, 0.0
  %v2308 = vadd.f32 %v2306, %v2307
  %v2309 = vsel %vm1863, %v1817, 0.0
  %v2310 = vadd.f32 %v2308, %v2309
  %v2311 = vsel %vm1863, %v1820, 0.0
  %v2312 = vadd.f32 %v2310, %v2311
  %v2313 = vsel %vm1863, %v1822, 0.0
  %v2314 = vadd.f32 %v2312, %v2313
  %v2315 = vsel %vm1863, %v1825, 0.0
  %v2316 = vadd.f32 %v2314, %v2315
  %v2317 = vsel %vm1863, %v1827, 0.0
  %v2318 = vadd.f32 %v2316, %v2317
  %v2319 = vsel %vm1863, %v1830, 0.0
  %v2320 = vadd.f32 %v2318, %v2319
  %v2321 = vsel %vm1863, %v1832, 0.0
  %v2322 = vadd.f32 %v2320, %v2321
  %v2323 = vsel %vm1863, %v1835, 0.0
  %v2324 = vadd.f32 %v2322, %v2323
  %v2325 = vsel %vm1863, %v1837, 0.0
  %v2326 = vadd.f32 %v2324, %v2325
  %v2327 = vsel %vm1863, %v1840, 0.0
  %v2328 = vadd.f32 %v2326, %v2327
  %v2329 = vsel %vm1863, %v1842, 0.0
  %v2330 = vadd.f32 %v2328, %v2329
  %v2331 = vsel %vm1863, %v1845, 0.0
  %v2332 = vadd.f32 %v2330, %v2331
  %v2333 = vsel %vm1863, %v1847, 0.0
  %v2334 = vadd.f32 %v2332, %v2333
  %v2335 = vsel %vm1863, %v1850, 0.0
  %v2336 = vadd.f32 %v2334, %v2335
  %v2337 = vsel %vm1863, %v1852, 0.0
  %v2338 = vadd.f32 %v2336, %v2337
  %v2339 = vsel %vm1863, %v1855, 0.0
  %v2340 = vadd.f32 %v2338, %v2339
  %v2341 = vsel %vm1863, %v1857, 0.0
  %v2342 = vadd.f32 %v2340, %v2341
  %vm2343 = vcmask 123904
  %v2344 = vsel %vm2343, %v1860, 0.0
  %v2345 = vadd.f32 %v2342, %v2344
  %v2346 = vrot.slane %v2345, 4
  %v2347 = vadd.f32 %v2345, %v2346
  %v2348 = vrot.slane %v2347, 2
  %v2349 = vadd.f32 %v2347, %v2348
  %v2350 = vrot.slane %v2349, 1
  %v2351 = vadd.f32 %v2349, %v2350
  %v2352 = vrcp.pop 1922.0
  %v2353 = vmul.f32 1922.0, %v2352
  %v2354 = vsub.f32 1.0, %v2353
  %v2355 = vmul.f32 %v2352, %v2354
  %v2356 = vadd.f32 %v2352, %v2355
  %vm2357 = vweird.f32 %v2352
  %v2358 = vsel %vm2357, %v2352, %v2356
  %v2359 = vmul.f32 %v2351, %v2358
  %v2360 = vsub.f32 %v1260, %v2359
  %v2361 = vsub.f32 %v1262, %v2359
  %v2362 = vsub.f32 %v1265, %v2359
  %v2363 = vsub.f32 %v1267, %v2359
  %v2364 = vsub.f32 %v1270, %v2359
  %v2365 = vsub.f32 %v1272, %v2359
  %v2366 = vsub.f32 %v1275, %v2359
  %v2367 = vsub.f32 %v1277, %v2359
  %v2368 = vsub.f32 %v1280, %v2359
  %v2369 = vsub.f32 %v1282, %v2359
  %v2370 = vsub.f32 %v1285, %v2359
  %v2371 = vsub.f32 %v1287, %v2359
  %v2372 = vsub.f32 %v1290, %v2359
  %v2373 = vsub.f32 %v1292, %v2359
  %v2374 = vsub.f32 %v1295, %v2359
  %v2375 = vsub.f32 %v1297, %v2359
  %v2376 = vsub.f32 %v1300, %v2359
  %v2377 = vsub.f32 %v1302, %v2359
  %v2378 = vsub.f32 %v1305, %v2359
  %v2379 = vsub.f32 %v1307, %v2359
  %v2380 = vsub.f32 %v1310, %v2359
  %v2381 = vsub.f32 %v1312, %v2359
  %v2382 = vsub.f32 %v1315, %v2359
  %v2383 = vsub.f32 %v1317, %v2359
  %v2384 = vsub.f32 %v1320, %v2359
  %v2385 = vsub.f32 %v1322, %v2359
  %v2386 = vsub.f32 %v1325, %v2359
  %v2387 = vsub.f32 %v1327, %v2359
  %v2388 = vsub.f32 %v1330, %v2359
  %v2389 = vsub.f32 %v1332, %v2359
  %v2390 = vsub.f32 %v1335, %v2359
  %v2391 = vsub.f32 %v1337, %v2359
  %v2392 = vsub.f32 %v1340, %v2359
  %v2393 = vsub.f32 %v1342, %v2359
  %v2394 = vsub.f32 %v1345, %v2359
  %v2395 = vsub.f32 %v1347, %v2359
  %v2396 = vsub.f32 %v1350, %v2359
  %v2397 = vsub.f32 %v1352, %v2359
  %v2398 = vsub.f32 %v1355, %v2359
  %v2399 = vsub.f32 %v1357, %v2359
  %v2400 = vsub.f32 %v1360, %v2359
  %v2401 = vsub.f32 %v1362, %v2359
  %v2402 = vsub.f32 %v1365, %v2359
  %v2403 = vsub.f32 %v1367, %v2359
  %v2404 = vsub.f32 %v1370, %v2359
  %v2405 = vsub.f32 %v1372, %v2359
  %v2406 = vsub.f32 %v1375, %v2359
  %v2407 = vsub.f32 %v1377, %v2359
  %v2408 = vsub.f32 %v1380, %v2359
  %v2409 = vsub.f32 %v1382, %v2359
  %v2410 = vsub.f32 %v1385, %v2359
  %v2411 = vsub.f32 %v1387, %v2359
  %v2412 = vsub.f32 %v1390, %v2359
  %v2413 = vsub.f32 %v1392, %v2359
  %v2414 = vsub.f32 %v1395, %v2359
  %v2415 = vsub.f32 %v1397, %v2359
  %v2416 = vsub.f32 %v1400, %v2359
  %v2417 = vsub.f32 %v1402, %v2359
  %v2418 = vsub.f32 %v1405, %v2359
  %v2419 = vsub.f32 %v1407, %v2359
  %v2420 = vsub.f32 %v1410, %v2359
  %v2421 = vsub.f32 %v1412, %v2359
  %v2422 = vsub.f32 %v1415, %v2359
  %v2423 = vsub.f32 %v1417, %v2359
  %v2424 = vsub.f32 %v1420, %v2359
  %v2425 = vsub.f32 %v1422, %v2359
  %v2426 = vsub.f32 %v1425, %v2359
  %v2427 = vsub.f32 %v1427, %v2359
  %v2428 = vsub.f32 %v1430, %v2359
  %v2429 = vsub.f32 %v1432, %v2359
  %v2430 = vsub.f32 %v1435, %v2359
  %v2431 = vsub.f32 %v1437, %v2359
  %v2432 = vsub.f32 %v1440, %v2359
  %v2433 = vsub.f32 %v1442, %v2359
  %v2434 = vsub.f32 %v1445, %v2359
  %v2435 = vsub.f32 %v1447, %v2359
  %v2436 = vsub.f32 %v1450, %v2359
  %v2437 = vsub.f32 %v1452, %v2359
  %v2438 = vsub.f32 %v1455, %v2359
  %v2439 = vsub.f32 %v1457, %v2359
  %v2440 = vsub.f32 %v1460, %v2359
  %v2441 = vsub.f32 %v1462, %v2359
  %v2442 = vsub.f32 %v1465, %v2359
  %v2443 = vsub.f32 %v1467, %v2359
  %v2444 = vsub.f32 %v1470, %v2359
  %v2445 = vsub.f32 %v1472, %v2359
  %v2446 = vsub.f32 %v1475, %v2359
  %v2447 = vsub.f32 %v1477, %v2359
  %v2448 = vsub.f32 %v1480, %v2359
  %v2449 = vsub.f32 %v1482, %v2359
  %v2450 = vsub.f32 %v1485, %v2359
  %v2451 = vsub.f32 %v1487, %v2359
  %v2452 = vsub.f32 %v1490, %v2359
  %v2453 = vsub.f32 %v1492, %v2359
  %v2454 = vsub.f32 %v1495, %v2359
  %v2455 = vsub.f32 %v1497, %v2359
  %v2456 = vsub.f32 %v1500, %v2359
  %v2457 = vsub.f32 %v1502, %v2359
  %v2458 = vsub.f32 %v1505, %v2359
  %v2459 = vsub.f32 %v1507, %v2359
  %v2460 = vsub.f32 %v1510, %v2359
  %v2461 = vsub.f32 %v1512, %v2359
  %v2462 = vsub.f32 %v1515, %v2359
  %v2463 = vsub.f32 %v1517, %v2359
  %v2464 = vsub.f32 %v1520, %v2359
  %v2465 = vsub.f32 %v1522, %v2359
  %v2466 = vsub.f32 %v1525, %v2359
  %v2467 = vsub.f32 %v1527, %v2359
  %v2468 = vsub.f32 %v1530, %v2359
  %v2469 = vsub.f32 %v1532, %v2359
  %v2470 = vsub.f32 %v1535, %v2359
  %v2471 = vsub.f32 %v1537, %v2359
  %v2472 = vsub.f32 %v1540, %v2359
  %v2473 = vsub.f32 %v1542, %v2359
  %v2474 = vsub.f32 %v1545, %v2359
  %v2475 = vsub.f32 %v1547, %v2359
  %v2476 = vsub.f32 %v1550, %v2359
  %v2477 = vsub.f32 %v1552, %v2359
  %v2478 = vsub.f32 %v1555, %v2359
  %v2479 = vsub.f32 %v1557, %v2359
  %v2480 = vsub.f32 %v1560, %v2359
  %v2481 = vsub.f32 %v1562, %v2359
  %v2482 = vsub.f32 %v1565, %v2359
  %v2483 = vsub.f32 %v1567, %v2359
  %v2484 = vsub.f32 %v1570, %v2359
  %v2485 = vsub.f32 %v1572, %v2359
  %v2486 = vsub.f32 %v1575, %v2359
  %v2487 = vsub.f32 %v1577, %v2359
  %v2488 = vsub.f32 %v1580, %v2359
  %v2489 = vsub.f32 %v1582, %v2359
  %v2490 = vsub.f32 %v1585, %v2359
  %v2491 = vsub.f32 %v1587, %v2359
  %v2492 = vsub.f32 %v1590, %v2359
  %v2493 = vsub.f32 %v1592, %v2359
  %v2494 = vsub.f32 %v1595, %v2359
  %v2495 = vsub.f32 %v1597, %v2359
  %v2496 = vsub.f32 %v1600, %v2359
  %v2497 = vsub.f32 %v1602, %v2359
  %v2498 = vsub.f32 %v1605, %v2359
  %v2499 = vsub.f32 %v1607, %v2359
  %v2500 = vsub.f32 %v1610, %v2359
  %v2501 = vsub.f32 %v1612, %v2359
  %v2502 = vsub.f32 %v1615, %v2359
  %v2503 = vsub.f32 %v1617, %v2359
  %v2504 = vsub.f32 %v1620, %v2359
  %v2505 = vsub.f32 %v1622, %v2359
  %v2506 = vsub.f32 %v1625, %v2359
  %v2507 = vsub.f32 %v1627, %v2359
  %v2508 = vsub.f32 %v1630, %v2359
  %v2509 = vsub.f32 %v1632, %v2359
  %v2510 = vsub.f32 %v1635, %v2359
  %v2511 = vsub.f32 %v1637, %v2359
  %v2512 = vsub.f32 %v1640, %v2359
  %v2513 = vsub.f32 %v1642, %v2359
  %v2514 = vsub.f32 %v1645, %v2359
  %v2515 = vsub.f32 %v1647, %v2359
  %v2516 = vsub.f32 %v1650, %v2359
  %v2517 = vsub.f32 %v1652, %v2359
  %v2518 = vsub.f32 %v1655, %v2359
  %v2519 = vsub.f32 %v1657, %v2359
  %v2520 = vsub.f32 %v1660, %v2359
  %v2521 = vsub.f32 %v1662, %v2359
  %v2522 = vsub.f32 %v1665, %v2359
  %v2523 = vsub.f32 %v1667, %v2359
  %v2524 = vsub.f32 %v1670, %v2359
  %v2525 = vsub.f32 %v1672, %v2359
  %v2526 = vsub.f32 %v1675, %v2359
  %v2527 = vsub.f32 %v1677, %v2359
  %v2528 = vsub.f32 %v1680, %v2359
  %v2529 = vsub.f32 %v1682, %v2359
  %v2530 = vsub.f32 %v1685, %v2359
  %v2531 = vsub.f32 %v1687, %v2359
  %v2532 = vsub.f32 %v1690, %v2359
  %v2533 = vsub.f32 %v1692, %v2359
  %v2534 = vsub.f32 %v1695, %v2359
  %v2535 = vsub.f32 %v1697, %v2359
  %v2536 = vsub.f32 %v1700, %v2359
  %v2537 = vsub.f32 %v1702, %v2359
  %v2538 = vsub.f32 %v1705, %v2359
  %v2539 = vsub.f32 %v1707, %v2359
  %v2540 = vsub.f32 %v1710, %v2359
  %v2541 = vsub.f32 %v1712, %v2359
  %v2542 = vsub.f32 %v1715, %v2359
  %v2543 = vsub.f32 %v1717, %v2359
  %v2544 = vsub.f32 %v1720, %v2359
  %v2545 = vsub.f32 %v1722, %v2359
  %v2546 = vsub.f32 %v1725, %v2359
  %v2547 = vsub.f32 %v1727, %v2359
  %v2548 = vsub.f32 %v1730, %v2359
  %v2549 = vsub.f32 %v1732, %v2359
  %v2550 = vsub.f32 %v1735, %v2359
  %v2551 = vsub.f32 %v1737, %v2359
  %v2552 = vsub.f32 %v1740, %v2359
  %v2553 = vsub.f32 %v1742, %v2359
  %v2554 = vsub.f32 %v1745, %v2359
  %v2555 = vsub.f32 %v1747, %v2359
  %v2556 = vsub.f32 %v1750, %v2359
  %v2557 = vsub.f32 %v1752, %v2359
  %v2558 = vsub.f32 %v1755, %v2359
  %v2559 = vsub.f32 %v1757, %v2359
  %v2560 = vsub.f32 %v1760, %v2359
  %v2561 = vsub.f32 %v1762, %v2359
  %v2562 = vsub.f32 %v1765, %v2359
  %v2563 = vsub.f32 %v1767, %v2359
  %v2564 = vsub.f32 %v1770, %v2359
  %v2565 = vsub.f32 %v1772, %v2359
  %v2566 = vsub.f32 %v1775, %v2359
  %v2567 = vsub.f32 %v1777, %v2359
  %v2568 = vsub.f32 %v1780, %v2359
  %v2569 = vsub.f32 %v1782, %v2359
  %v2570 = vsub.f32 %v1785, %v2359
  %v2571 = vsub.f32 %v1787, %v2359
  %v2572 = vsub.f32 %v1790, %v2359
  %v2573 = vsub.f32 %v1792, %v2359
  %v2574 = vsub.f32 %v1795, %v2359
  %v2575 = vsub.f32 %v1797, %v2359
  %v2576 = vsub.f32 %v1800, %v2359
  %v2577 = vsub.f32 %v1802, %v2359
  %v2578 = vsub.f32 %v1805, %v2359
  %v2579 = vsub.f32 %v1807, %v2359
  %v2580 = vsub.f32 %v1810, %v2359
  %v2581 = vsub.f32 %v1812, %v2359
  %v2582 = vsub.f32 %v1815, %v2359
  %v2583 = vsub.f32 %v1817, %v2359
  %v2584 = vsub.f32 %v1820, %v2359
  %v2585 = vsub.f32 %v1822, %v2359
  %v2586 = vsub.f32 %v1825, %v2359
  %v2587 = vsub.f32 %v1827, %v2359
  %v2588 = vsub.f32 %v1830, %v2359
  %v2589 = vsub.f32 %v1832, %v2359
  %v2590 = vsub.f32 %v1835, %v2359
  %v2591 = vsub.f32 %v1837, %v2359
  %v2592 = vsub.f32 %v1840, %v2359
  %v2593 = vsub.f32 %v1842, %v2359
  %v2594 = vsub.f32 %v1845, %v2359
  %v2595 = vsub.f32 %v1847, %v2359
  %v2596 = vsub.f32 %v1850, %v2359
  %v2597 = vsub.f32 %v1852, %v2359
  %v2598 = vsub.f32 %v1855, %v2359
  %v2599 = vsub.f32 %v1857, %v2359
  %v2600 = vsub.f32 %v1860, %v2359
  %v2601 = vmul.f32 %v2360, %v2360
  %v2602 = vmul.f32 %v2361, %v2361
  %v2603 = vmul.f32 %v2362, %v2362
  %v2604 = vmul.f32 %v2363, %v2363
  %v2605 = vmul.f32 %v2364, %v2364
  %v2606 = vmul.f32 %v2365, %v2365
  %v2607 = vmul.f32 %v2366, %v2366
  %v2608 = vmul.f32 %v2367, %v2367
  %v2609 = vmul.f32 %v2368, %v2368
  %v2610 = vmul.f32 %v2369, %v2369
  %v2611 = vmul.f32 %v2370, %v2370
  %v2612 = vmul.f32 %v2371, %v2371
  %v2613 = vmul.f32 %v2372, %v2372
  %v2614 = vmul.f32 %v2373, %v2373
  %v2615 = vmul.f32 %v2374, %v2374
  %v2616 = vmul.f32 %v2375, %v2375
  %v2617 = vmul.f32 %v2376, %v2376
  %v2618 = vmul.f32 %v2377, %v2377
  %v2619 = vmul.f32 %v2378, %v2378
  %v2620 = vmul.f32 %v2379, %v2379
  %v2621 = vmul.f32 %v2380, %v2380
  %v2622 = vmul.f32 %v2381, %v2381
  %v2623 = vmul.f32 %v2382, %v2382
  %v2624 = vmul.f32 %v2383, %v2383
  %v2625 = vmul.f32 %v2384, %v2384
  %v2626 = vmul.f32 %v2385, %v2385
  %v2627 = vmul.f32 %v2386, %v2386
  %v2628 = vmul.f32 %v2387, %v2387
  %v2629 = vmul.f32 %v2388, %v2388
  %v2630 = vmul.f32 %v2389, %v2389
  %v2631 = vmul.f32 %v2390, %v2390
  %v2632 = vmul.f32 %v2391, %v2391
  %v2633 = vmul.f32 %v2392, %v2392
  %v2634 = vmul.f32 %v2393, %v2393
  %v2635 = vmul.f32 %v2394, %v2394
  %v2636 = vmul.f32 %v2395, %v2395
  %v2637 = vmul.f32 %v2396, %v2396
  %v2638 = vmul.f32 %v2397, %v2397
  %v2639 = vmul.f32 %v2398, %v2398
  %v2640 = vmul.f32 %v2399, %v2399
  %v2641 = vmul.f32 %v2400, %v2400
  %v2642 = vmul.f32 %v2401, %v2401
  %v2643 = vmul.f32 %v2402, %v2402
  %v2644 = vmul.f32 %v2403, %v2403
  %v2645 = vmul.f32 %v2404, %v2404
  %v2646 = vmul.f32 %v2405, %v2405
  %v2647 = vmul.f32 %v2406, %v2406
  %v2648 = vmul.f32 %v2407, %v2407
  %v2649 = vmul.f32 %v2408, %v2408
  %v2650 = vmul.f32 %v2409, %v2409
  %v2651 = vmul.f32 %v2410, %v2410
  %v2652 = vmul.f32 %v2411, %v2411
  %v2653 = vmul.f32 %v2412, %v2412
  %v2654 = vmul.f32 %v2413, %v2413
  %v2655 = vmul.f32 %v2414, %v2414
  %v2656 = vmul.f32 %v2415, %v2415
  %v2657 = vmul.f32 %v2416, %v2416
  %v2658 = vmul.f32 %v2417, %v2417
  %v2659 = vmul.f32 %v2418, %v2418
  %v2660 = vmul.f32 %v2419, %v2419
  %v2661 = vmul.f32 %v2420, %v2420
  %v2662 = vmul.f32 %v2421, %v2421
  %v2663 = vmul.f32 %v2422, %v2422
  %v2664 = vmul.f32 %v2423, %v2423
  %v2665 = vmul.f32 %v2424, %v2424
  %v2666 = vmul.f32 %v2425, %v2425
  %v2667 = vmul.f32 %v2426, %v2426
  %v2668 = vmul.f32 %v2427, %v2427
  %v2669 = vmul.f32 %v2428, %v2428
  %v2670 = vmul.f32 %v2429, %v2429
  %v2671 = vmul.f32 %v2430, %v2430
  %v2672 = vmul.f32 %v2431, %v2431
  %v2673 = vmul.f32 %v2432, %v2432
  %v2674 = vmul.f32 %v2433, %v2433
  %v2675 = vmul.f32 %v2434, %v2434
  %v2676 = vmul.f32 %v2435, %v2435
  %v2677 = vmul.f32 %v2436, %v2436
  %v2678 = vmul.f32 %v2437, %v2437
  %v2679 = vmul.f32 %v2438, %v2438
  %v2680 = vmul.f32 %v2439, %v2439
  %v2681 = vmul.f32 %v2440, %v2440
  %v2682 = vmul.f32 %v2441, %v2441
  %v2683 = vmul.f32 %v2442, %v2442
  %v2684 = vmul.f32 %v2443, %v2443
  %v2685 = vmul.f32 %v2444, %v2444
  %v2686 = vmul.f32 %v2445, %v2445
  %v2687 = vmul.f32 %v2446, %v2446
  %v2688 = vmul.f32 %v2447, %v2447
  %v2689 = vmul.f32 %v2448, %v2448
  %v2690 = vmul.f32 %v2449, %v2449
  %v2691 = vmul.f32 %v2450, %v2450
  %v2692 = vmul.f32 %v2451, %v2451
  %v2693 = vmul.f32 %v2452, %v2452
  %v2694 = vmul.f32 %v2453, %v2453
  %v2695 = vmul.f32 %v2454, %v2454
  %v2696 = vmul.f32 %v2455, %v2455
  %v2697 = vmul.f32 %v2456, %v2456
  %v2698 = vmul.f32 %v2457, %v2457
  %v2699 = vmul.f32 %v2458, %v2458
  %v2700 = vmul.f32 %v2459, %v2459
  %v2701 = vmul.f32 %v2460, %v2460
  %v2702 = vmul.f32 %v2461, %v2461
  %v2703 = vmul.f32 %v2462, %v2462
  %v2704 = vmul.f32 %v2463, %v2463
  %v2705 = vmul.f32 %v2464, %v2464
  %v2706 = vmul.f32 %v2465, %v2465
  %v2707 = vmul.f32 %v2466, %v2466
  %v2708 = vmul.f32 %v2467, %v2467
  %v2709 = vmul.f32 %v2468, %v2468
  %v2710 = vmul.f32 %v2469, %v2469
  %v2711 = vmul.f32 %v2470, %v2470
  %v2712 = vmul.f32 %v2471, %v2471
  %v2713 = vmul.f32 %v2472, %v2472
  %v2714 = vmul.f32 %v2473, %v2473
  %v2715 = vmul.f32 %v2474, %v2474
  %v2716 = vmul.f32 %v2475, %v2475
  %v2717 = vmul.f32 %v2476, %v2476
  %v2718 = vmul.f32 %v2477, %v2477
  %v2719 = vmul.f32 %v2478, %v2478
  %v2720 = vmul.f32 %v2479, %v2479
  %v2721 = vmul.f32 %v2480, %v2480
  %v2722 = vmul.f32 %v2481, %v2481
  %v2723 = vmul.f32 %v2482, %v2482
  %v2724 = vmul.f32 %v2483, %v2483
  %v2725 = vmul.f32 %v2484, %v2484
  %v2726 = vmul.f32 %v2485, %v2485
  %v2727 = vmul.f32 %v2486, %v2486
  %v2728 = vmul.f32 %v2487, %v2487
  %v2729 = vmul.f32 %v2488, %v2488
  %v2730 = vmul.f32 %v2489, %v2489
  %v2731 = vmul.f32 %v2490, %v2490
  %v2732 = vmul.f32 %v2491, %v2491
  %v2733 = vmul.f32 %v2492, %v2492
  %v2734 = vmul.f32 %v2493, %v2493
  %v2735 = vmul.f32 %v2494, %v2494
  %v2736 = vmul.f32 %v2495, %v2495
  %v2737 = vmul.f32 %v2496, %v2496
  %v2738 = vmul.f32 %v2497, %v2497
  %v2739 = vmul.f32 %v2498, %v2498
  %v2740 = vmul.f32 %v2499, %v2499
  %v2741 = vmul.f32 %v2500, %v2500
  %v2742 = vmul.f32 %v2501, %v2501
  %v2743 = vmul.f32 %v2502, %v2502
  %v2744 = vmul.f32 %v2503, %v2503
  %v2745 = vmul.f32 %v2504, %v2504
  %v2746 = vmul.f32 %v2505, %v2505
  %v2747 = vmul.f32 %v2506, %v2506
  %v2748 = vmul.f32 %v2507, %v2507
  %v2749 = vmul.f32 %v2508, %v2508
  %v2750 = vmul.f32 %v2509, %v2509
  %v2751 = vmul.f32 %v2510, %v2510
  %v2752 = vmul.f32 %v2511, %v2511
  %v2753 = vmul.f32 %v2512, %v2512
  %v2754 = vmul.f32 %v2513, %v2513
  %v2755 = vmul.f32 %v2514, %v2514
  %v2756 = vmul.f32 %v2515, %v2515
  %v2757 = vmul.f32 %v2516, %v2516
  %v2758 = vmul.f32 %v2517, %v2517
  %v2759 = vmul.f32 %v2518, %v2518
  %v2760 = vmul.f32 %v2519, %v2519
  %v2761 = vmul.f32 %v2520, %v2520
  %v2762 = vmul.f32 %v2521, %v2521
  %v2763 = vmul.f32 %v2522, %v2522
  %v2764 = vmul.f32 %v2523, %v2523
  %v2765 = vmul.f32 %v2524, %v2524
  %v2766 = vmul.f32 %v2525, %v2525
  %v2767 = vmul.f32 %v2526, %v2526
  %v2768 = vmul.f32 %v2527, %v2527
  %v2769 = vmul.f32 %v2528, %v2528
  %v2770 = vmul.f32 %v2529, %v2529
  %v2771 = vmul.f32 %v2530, %v2530
  %v2772 = vmul.f32 %v2531, %v2531
  %v2773 = vmul.f32 %v2532, %v2532
  %v2774 = vmul.f32 %v2533, %v2533
  %v2775 = vmul.f32 %v2534, %v2534
  %v2776 = vmul.f32 %v2535, %v2535
  %v2777 = vmul.f32 %v2536, %v2536
  %v2778 = vmul.f32 %v2537, %v2537
  %v2779 = vmul.f32 %v2538, %v2538
  %v2780 = vmul.f32 %v2539, %v2539
  %v2781 = vmul.f32 %v2540, %v2540
  %v2782 = vmul.f32 %v2541, %v2541
  %v2783 = vmul.f32 %v2542, %v2542
  %v2784 = vmul.f32 %v2543, %v2543
  %v2785 = vmul.f32 %v2544, %v2544
  %v2786 = vmul.f32 %v2545, %v2545
  %v2787 = vmul.f32 %v2546, %v2546
  %v2788 = vmul.f32 %v2547, %v2547
  %v2789 = vmul.f32 %v2548, %v2548
  %v2790 = vmul.f32 %v2549, %v2549
  %v2791 = vmul.f32 %v2550, %v2550
  %v2792 = vmul.f32 %v2551, %v2551
  %v2793 = vmul.f32 %v2552, %v2552
  %v2794 = vmul.f32 %v2553, %v2553
  %v2795 = vmul.f32 %v2554, %v2554
  %v2796 = vmul.f32 %v2555, %v2555
  %v2797 = vmul.f32 %v2556, %v2556
  %v2798 = vmul.f32 %v2557, %v2557
  %v2799 = vmul.f32 %v2558, %v2558
  %v2800 = vmul.f32 %v2559, %v2559
  %v2801 = vmul.f32 %v2560, %v2560
  %v2802 = vmul.f32 %v2561, %v2561
  %v2803 = vmul.f32 %v2562, %v2562
  %v2804 = vmul.f32 %v2563, %v2563
  %v2805 = vmul.f32 %v2564, %v2564
  %v2806 = vmul.f32 %v2565, %v2565
  %v2807 = vmul.f32 %v2566, %v2566
  %v2808 = vmul.f32 %v2567, %v2567
  %v2809 = vmul.f32 %v2568, %v2568
  %v2810 = vmul.f32 %v2569, %v2569
  %v2811 = vmul.f32 %v2570, %v2570
  %v2812 = vmul.f32 %v2571, %v2571
  %v2813 = vmul.f32 %v2572, %v2572
  %v2814 = vmul.f32 %v2573, %v2573
  %v2815 = vmul.f32 %v2574, %v2574
  %v2816 = vmul.f32 %v2575, %v2575
  %v2817 = vmul.f32 %v2576, %v2576
  %v2818 = vmul.f32 %v2577, %v2577
  %v2819 = vmul.f32 %v2578, %v2578
  %v2820 = vmul.f32 %v2579, %v2579
  %v2821 = vmul.f32 %v2580, %v2580
  %v2822 = vmul.f32 %v2581, %v2581
  %v2823 = vmul.f32 %v2582, %v2582
  %v2824 = vmul.f32 %v2583, %v2583
  %v2825 = vmul.f32 %v2584, %v2584
  %v2826 = vmul.f32 %v2585, %v2585
  %v2827 = vmul.f32 %v2586, %v2586
  %v2828 = vmul.f32 %v2587, %v2587
  %v2829 = vmul.f32 %v2588, %v2588
  %v2830 = vmul.f32 %v2589, %v2589
  %v2831 = vmul.f32 %v2590, %v2590
  %v2832 = vmul.f32 %v2591, %v2591
  %v2833 = vmul.f32 %v2592, %v2592
  %v2834 = vmul.f32 %v2593, %v2593
  %v2835 = vmul.f32 %v2594, %v2594
  %v2836 = vmul.f32 %v2595, %v2595
  %v2837 = vmul.f32 %v2596, %v2596
  %v2838 = vmul.f32 %v2597, %v2597
  %v2839 = vmul.f32 %v2598, %v2598
  %v2840 = vmul.f32 %v2599, %v2599
  %v2841 = vmul.f32 %v2600, %v2600
  %v2842 = vsel %vm1863, %v2601, 0.0
  %v2843 = vsel %vm1863, %v2602, 0.0
  %v2844 = vadd.f32 %v2842, %v2843
  %v2845 = vsel %vm1863, %v2603, 0.0
  %v2846 = vadd.f32 %v2844, %v2845
  %v2847 = vsel %vm1863, %v2604, 0.0
  %v2848 = vadd.f32 %v2846, %v2847
  %v2849 = vsel %vm1863, %v2605, 0.0
  %v2850 = vadd.f32 %v2848, %v2849
  %v2851 = vsel %vm1863, %v2606, 0.0
  %v2852 = vadd.f32 %v2850, %v2851
  %v2853 = vsel %vm1863, %v2607, 0.0
  %v2854 = vadd.f32 %v2852, %v2853
  %v2855 = vsel %vm1863, %v2608, 0.0
  %v2856 = vadd.f32 %v2854, %v2855
  %v2857 = vsel %vm1863, %v2609, 0.0
  %v2858 = vadd.f32 %v2856, %v2857
  %v2859 = vsel %vm1863, %v2610, 0.0
  %v2860 = vadd.f32 %v2858, %v2859
  %v2861 = vsel %vm1863, %v2611, 0.0
  %v2862 = vadd.f32 %v2860, %v2861
  %v2863 = vsel %vm1863, %v2612, 0.0
  %v2864 = vadd.f32 %v2862, %v2863
  %v2865 = vsel %vm1863, %v2613, 0.0
  %v2866 = vadd.f32 %v2864, %v2865
  %v2867 = vsel %vm1863, %v2614, 0.0
  %v2868 = vadd.f32 %v2866, %v2867
  %v2869 = vsel %vm1863, %v2615, 0.0
  %v2870 = vadd.f32 %v2868, %v2869
  %v2871 = vsel %vm1863, %v2616, 0.0
  %v2872 = vadd.f32 %v2870, %v2871
  %v2873 = vsel %vm1863, %v2617, 0.0
  %v2874 = vadd.f32 %v2872, %v2873
  %v2875 = vsel %vm1863, %v2618, 0.0
  %v2876 = vadd.f32 %v2874, %v2875
  %v2877 = vsel %vm1863, %v2619, 0.0
  %v2878 = vadd.f32 %v2876, %v2877
  %v2879 = vsel %vm1863, %v2620, 0.0
  %v2880 = vadd.f32 %v2878, %v2879
  %v2881 = vsel %vm1863, %v2621, 0.0
  %v2882 = vadd.f32 %v2880, %v2881
  %v2883 = vsel %vm1863, %v2622, 0.0
  %v2884 = vadd.f32 %v2882, %v2883
  %v2885 = vsel %vm1863, %v2623, 0.0
  %v2886 = vadd.f32 %v2884, %v2885
  %v2887 = vsel %vm1863, %v2624, 0.0
  %v2888 = vadd.f32 %v2886, %v2887
  %v2889 = vsel %vm1863, %v2625, 0.0
  %v2890 = vadd.f32 %v2888, %v2889
  %v2891 = vsel %vm1863, %v2626, 0.0
  %v2892 = vadd.f32 %v2890, %v2891
  %v2893 = vsel %vm1863, %v2627, 0.0
  %v2894 = vadd.f32 %v2892, %v2893
  %v2895 = vsel %vm1863, %v2628, 0.0
  %v2896 = vadd.f32 %v2894, %v2895
  %v2897 = vsel %vm1863, %v2629, 0.0
  %v2898 = vadd.f32 %v2896, %v2897
  %v2899 = vsel %vm1863, %v2630, 0.0
  %v2900 = vadd.f32 %v2898, %v2899
  %v2901 = vsel %vm1863, %v2631, 0.0
  %v2902 = vadd.f32 %v2900, %v2901
  %v2903 = vsel %vm1863, %v2632, 0.0
  %v2904 = vadd.f32 %v2902, %v2903
  %v2905 = vsel %vm1863, %v2633, 0.0
  %v2906 = vadd.f32 %v2904, %v2905
  %v2907 = vsel %vm1863, %v2634, 0.0
  %v2908 = vadd.f32 %v2906, %v2907
  %v2909 = vsel %vm1863, %v2635, 0.0
  %v2910 = vadd.f32 %v2908, %v2909
  %v2911 = vsel %vm1863, %v2636, 0.0
  %v2912 = vadd.f32 %v2910, %v2911
  %v2913 = vsel %vm1863, %v2637, 0.0
  %v2914 = vadd.f32 %v2912, %v2913
  %v2915 = vsel %vm1863, %v2638, 0.0
  %v2916 = vadd.f32 %v2914, %v2915
  %v2917 = vsel %vm1863, %v2639, 0.0
  %v2918 = vadd.f32 %v2916, %v2917
  %v2919 = vsel %vm1863, %v2640, 0.0
  %v2920 = vadd.f32 %v2918, %v2919
  %v2921 = vsel %vm1863, %v2641, 0.0
  %v2922 = vadd.f32 %v2920, %v2921
  %v2923 = vsel %vm1863, %v2642, 0.0
  %v2924 = vadd.f32 %v2922, %v2923
  %v2925 = vsel %vm1863, %v2643, 0.0
  %v2926 = vadd.f32 %v2924, %v2925
  %v2927 = vsel %vm1863, %v2644, 0.0
  %v2928 = vadd.f32 %v2926, %v2927
  %v2929 = vsel %vm1863, %v2645, 0.0
  %v2930 = vadd.f32 %v2928, %v2929
  %v2931 = vsel %vm1863, %v2646, 0.0
  %v2932 = vadd.f32 %v2930, %v2931
  %v2933 = vsel %vm1863, %v2647, 0.0
  %v2934 = vadd.f32 %v2932, %v2933
  %v2935 = vsel %vm1863, %v2648, 0.0
  %v2936 = vadd.f32 %v2934, %v2935
  %v2937 = vsel %vm1863, %v2649, 0.0
  %v2938 = vadd.f32 %v2936, %v2937
  %v2939 = vsel %vm1863, %v2650, 0.0
  %v2940 = vadd.f32 %v2938, %v2939
  %v2941 = vsel %vm1863, %v2651, 0.0
  %v2942 = vadd.f32 %v2940, %v2941
  %v2943 = vsel %vm1863, %v2652, 0.0
  %v2944 = vadd.f32 %v2942, %v2943
  %v2945 = vsel %vm1863, %v2653, 0.0
  %v2946 = vadd.f32 %v2944, %v2945
  %v2947 = vsel %vm1863, %v2654, 0.0
  %v2948 = vadd.f32 %v2946, %v2947
  %v2949 = vsel %vm1863, %v2655, 0.0
  %v2950 = vadd.f32 %v2948, %v2949
  %v2951 = vsel %vm1863, %v2656, 0.0
  %v2952 = vadd.f32 %v2950, %v2951
  %v2953 = vsel %vm1863, %v2657, 0.0
  %v2954 = vadd.f32 %v2952, %v2953
  %v2955 = vsel %vm1863, %v2658, 0.0
  %v2956 = vadd.f32 %v2954, %v2955
  %v2957 = vsel %vm1863, %v2659, 0.0
  %v2958 = vadd.f32 %v2956, %v2957
  %v2959 = vsel %vm1863, %v2660, 0.0
  %v2960 = vadd.f32 %v2958, %v2959
  %v2961 = vsel %vm1863, %v2661, 0.0
  %v2962 = vadd.f32 %v2960, %v2961
  %v2963 = vsel %vm1863, %v2662, 0.0
  %v2964 = vadd.f32 %v2962, %v2963
  %v2965 = vsel %vm1863, %v2663, 0.0
  %v2966 = vadd.f32 %v2964, %v2965
  %v2967 = vsel %vm1863, %v2664, 0.0
  %v2968 = vadd.f32 %v2966, %v2967
  %v2969 = vsel %vm1863, %v2665, 0.0
  %v2970 = vadd.f32 %v2968, %v2969
  %v2971 = vsel %vm1863, %v2666, 0.0
  %v2972 = vadd.f32 %v2970, %v2971
  %v2973 = vsel %vm1863, %v2667, 0.0
  %v2974 = vadd.f32 %v2972, %v2973
  %v2975 = vsel %vm1863, %v2668, 0.0
  %v2976 = vadd.f32 %v2974, %v2975
  %v2977 = vsel %vm1863, %v2669, 0.0
  %v2978 = vadd.f32 %v2976, %v2977
  %v2979 = vsel %vm1863, %v2670, 0.0
  %v2980 = vadd.f32 %v2978, %v2979
  %v2981 = vsel %vm1863, %v2671, 0.0
  %v2982 = vadd.f32 %v2980, %v2981
  %v2983 = vsel %vm1863, %v2672, 0.0
  %v2984 = vadd.f32 %v2982, %v2983
  %v2985 = vsel %vm1863, %v2673, 0.0
  %v2986 = vadd.f32 %v2984, %v2985
  %v2987 = vsel %vm1863, %v2674, 0.0
  %v2988 = vadd.f32 %v2986, %v2987
  %v2989 = vsel %vm1863, %v2675, 0.0
  %v2990 = vadd.f32 %v2988, %v2989
  %v2991 = vsel %vm1863, %v2676, 0.0
  %v2992 = vadd.f32 %v2990, %v2991
  %v2993 = vsel %vm1863, %v2677, 0.0
  %v2994 = vadd.f32 %v2992, %v2993
  %v2995 = vsel %vm1863, %v2678, 0.0
  %v2996 = vadd.f32 %v2994, %v2995
  %v2997 = vsel %vm1863, %v2679, 0.0
  %v2998 = vadd.f32 %v2996, %v2997
  %v2999 = vsel %vm1863, %v2680, 0.0
  %v3000 = vadd.f32 %v2998, %v2999
  %v3001 = vsel %vm1863, %v2681, 0.0
  %v3002 = vadd.f32 %v3000, %v3001
  %v3003 = vsel %vm1863, %v2682, 0.0
  %v3004 = vadd.f32 %v3002, %v3003
  %v3005 = vsel %vm1863, %v2683, 0.0
  %v3006 = vadd.f32 %v3004, %v3005
  %v3007 = vsel %vm1863, %v2684, 0.0
  %v3008 = vadd.f32 %v3006, %v3007
  %v3009 = vsel %vm1863, %v2685, 0.0
  %v3010 = vadd.f32 %v3008, %v3009
  %v3011 = vsel %vm1863, %v2686, 0.0
  %v3012 = vadd.f32 %v3010, %v3011
  %v3013 = vsel %vm1863, %v2687, 0.0
  %v3014 = vadd.f32 %v3012, %v3013
  %v3015 = vsel %vm1863, %v2688, 0.0
  %v3016 = vadd.f32 %v3014, %v3015
  %v3017 = vsel %vm1863, %v2689, 0.0
  %v3018 = vadd.f32 %v3016, %v3017
  %v3019 = vsel %vm1863, %v2690, 0.0
  %v3020 = vadd.f32 %v3018, %v3019
  %v3021 = vsel %vm1863, %v2691, 0.0
  %v3022 = vadd.f32 %v3020, %v3021
  %v3023 = vsel %vm1863, %v2692, 0.0
  %v3024 = vadd.f32 %v3022, %v3023
  %v3025 = vsel %vm1863, %v2693, 0.0
  %v3026 = vadd.f32 %v3024, %v3025
  %v3027 = vsel %vm1863, %v2694, 0.0
  %v3028 = vadd.f32 %v3026, %v3027
  %v3029 = vsel %vm1863, %v2695, 0.0
  %v3030 = vadd.f32 %v3028, %v3029
  %v3031 = vsel %vm1863, %v2696, 0.0
  %v3032 = vadd.f32 %v3030, %v3031
  %v3033 = vsel %vm1863, %v2697, 0.0
  %v3034 = vadd.f32 %v3032, %v3033
  %v3035 = vsel %vm1863, %v2698, 0.0
  %v3036 = vadd.f32 %v3034, %v3035
  %v3037 = vsel %vm1863, %v2699, 0.0
  %v3038 = vadd.f32 %v3036, %v3037
  %v3039 = vsel %vm1863, %v2700, 0.0
  %v3040 = vadd.f32 %v3038, %v3039
  %v3041 = vsel %vm1863, %v2701, 0.0
  %v3042 = vadd.f32 %v3040, %v3041
  %v3043 = vsel %vm1863, %v2702, 0.0
  %v3044 = vadd.f32 %v3042, %v3043
  %v3045 = vsel %vm1863, %v2703, 0.0
  %v3046 = vadd.f32 %v3044, %v3045
  %v3047 = vsel %vm1863, %v2704, 0.0
  %v3048 = vadd.f32 %v3046, %v3047
  %v3049 = vsel %vm1863, %v2705, 0.0
  %v3050 = vadd.f32 %v3048, %v3049
  %v3051 = vsel %vm1863, %v2706, 0.0
  %v3052 = vadd.f32 %v3050, %v3051
  %v3053 = vsel %vm1863, %v2707, 0.0
  %v3054 = vadd.f32 %v3052, %v3053
  %v3055 = vsel %vm1863, %v2708, 0.0
  %v3056 = vadd.f32 %v3054, %v3055
  %v3057 = vsel %vm1863, %v2709, 0.0
  %v3058 = vadd.f32 %v3056, %v3057
  %v3059 = vsel %vm1863, %v2710, 0.0
  %v3060 = vadd.f32 %v3058, %v3059
  %v3061 = vsel %vm1863, %v2711, 0.0
  %v3062 = vadd.f32 %v3060, %v3061
  %v3063 = vsel %vm1863, %v2712, 0.0
  %v3064 = vadd.f32 %v3062, %v3063
  %v3065 = vsel %vm1863, %v2713, 0.0
  %v3066 = vadd.f32 %v3064, %v3065
  %v3067 = vsel %vm1863, %v2714, 0.0
  %v3068 = vadd.f32 %v3066, %v3067
  %v3069 = vsel %vm1863, %v2715, 0.0
  %v3070 = vadd.f32 %v3068, %v3069
  %v3071 = vsel %vm1863, %v2716, 0.0
  %v3072 = vadd.f32 %v3070, %v3071
  %v3073 = vsel %vm1863, %v2717, 0.0
  %v3074 = vadd.f32 %v3072, %v3073
  %v3075 = vsel %vm1863, %v2718, 0.0
  %v3076 = vadd.f32 %v3074, %v3075
  %v3077 = vsel %vm1863, %v2719, 0.0
  %v3078 = vadd.f32 %v3076, %v3077
  %v3079 = vsel %vm1863, %v2720, 0.0
  %v3080 = vadd.f32 %v3078, %v3079
  %v3081 = vsel %vm1863, %v2721, 0.0
  %v3082 = vadd.f32 %v3080, %v3081
  %v3083 = vsel %vm1863, %v2722, 0.0
  %v3084 = vadd.f32 %v3082, %v3083
  %v3085 = vsel %vm1863, %v2723, 0.0
  %v3086 = vadd.f32 %v3084, %v3085
  %v3087 = vsel %vm1863, %v2724, 0.0
  %v3088 = vadd.f32 %v3086, %v3087
  %v3089 = vsel %vm1863, %v2725, 0.0
  %v3090 = vadd.f32 %v3088, %v3089
  %v3091 = vsel %vm1863, %v2726, 0.0
  %v3092 = vadd.f32 %v3090, %v3091
  %v3093 = vsel %vm1863, %v2727, 0.0
  %v3094 = vadd.f32 %v3092, %v3093
  %v3095 = vsel %vm1863, %v2728, 0.0
  %v3096 = vadd.f32 %v3094, %v3095
  %v3097 = vsel %vm1863, %v2729, 0.0
  %v3098 = vadd.f32 %v3096, %v3097
  %v3099 = vsel %vm1863, %v2730, 0.0
  %v3100 = vadd.f32 %v3098, %v3099
  %v3101 = vsel %vm1863, %v2731, 0.0
  %v3102 = vadd.f32 %v3100, %v3101
  %v3103 = vsel %vm1863, %v2732, 0.0
  %v3104 = vadd.f32 %v3102, %v3103
  %v3105 = vsel %vm1863, %v2733, 0.0
  %v3106 = vadd.f32 %v3104, %v3105
  %v3107 = vsel %vm1863, %v2734, 0.0
  %v3108 = vadd.f32 %v3106, %v3107
  %v3109 = vsel %vm1863, %v2735, 0.0
  %v3110 = vadd.f32 %v3108, %v3109
  %v3111 = vsel %vm1863, %v2736, 0.0
  %v3112 = vadd.f32 %v3110, %v3111
  %v3113 = vsel %vm1863, %v2737, 0.0
  %v3114 = vadd.f32 %v3112, %v3113
  %v3115 = vsel %vm1863, %v2738, 0.0
  %v3116 = vadd.f32 %v3114, %v3115
  %v3117 = vsel %vm1863, %v2739, 0.0
  %v3118 = vadd.f32 %v3116, %v3117
  %v3119 = vsel %vm1863, %v2740, 0.0
  %v3120 = vadd.f32 %v3118, %v3119
  %v3121 = vsel %vm1863, %v2741, 0.0
  %v3122 = vadd.f32 %v3120, %v3121
  %v3123 = vsel %vm1863, %v2742, 0.0
  %v3124 = vadd.f32 %v3122, %v3123
  %v3125 = vsel %vm1863, %v2743, 0.0
  %v3126 = vadd.f32 %v3124, %v3125
  %v3127 = vsel %vm1863, %v2744, 0.0
  %v3128 = vadd.f32 %v3126, %v3127
  %v3129 = vsel %vm1863, %v2745, 0.0
  %v3130 = vadd.f32 %v3128, %v3129
  %v3131 = vsel %vm1863, %v2746, 0.0
  %v3132 = vadd.f32 %v3130, %v3131
  %v3133 = vsel %vm1863, %v2747, 0.0
  %v3134 = vadd.f32 %v3132, %v3133
  %v3135 = vsel %vm1863, %v2748, 0.0
  %v3136 = vadd.f32 %v3134, %v3135
  %v3137 = vsel %vm1863, %v2749, 0.0
  %v3138 = vadd.f32 %v3136, %v3137
  %v3139 = vsel %vm1863, %v2750, 0.0
  %v3140 = vadd.f32 %v3138, %v3139
  %v3141 = vsel %vm1863, %v2751, 0.0
  %v3142 = vadd.f32 %v3140, %v3141
  %v3143 = vsel %vm1863, %v2752, 0.0
  %v3144 = vadd.f32 %v3142, %v3143
  %v3145 = vsel %vm1863, %v2753, 0.0
  %v3146 = vadd.f32 %v3144, %v3145
  %v3147 = vsel %vm1863, %v2754, 0.0
  %v3148 = vadd.f32 %v3146, %v3147
  %v3149 = vsel %vm1863, %v2755, 0.0
  %v3150 = vadd.f32 %v3148, %v3149
  %v3151 = vsel %vm1863, %v2756, 0.0
  %v3152 = vadd.f32 %v3150, %v3151
  %v3153 = vsel %vm1863, %v2757, 0.0
  %v3154 = vadd.f32 %v3152, %v3153
  %v3155 = vsel %vm1863, %v2758, 0.0
  %v3156 = vadd.f32 %v3154, %v3155
  %v3157 = vsel %vm1863, %v2759, 0.0
  %v3158 = vadd.f32 %v3156, %v3157
  %v3159 = vsel %vm1863, %v2760, 0.0
  %v3160 = vadd.f32 %v3158, %v3159
  %v3161 = vsel %vm1863, %v2761, 0.0
  %v3162 = vadd.f32 %v3160, %v3161
  %v3163 = vsel %vm1863, %v2762, 0.0
  %v3164 = vadd.f32 %v3162, %v3163
  %v3165 = vsel %vm1863, %v2763, 0.0
  %v3166 = vadd.f32 %v3164, %v3165
  %v3167 = vsel %vm1863, %v2764, 0.0
  %v3168 = vadd.f32 %v3166, %v3167
  %v3169 = vsel %vm1863, %v2765, 0.0
  %v3170 = vadd.f32 %v3168, %v3169
  %v3171 = vsel %vm1863, %v2766, 0.0
  %v3172 = vadd.f32 %v3170, %v3171
  %v3173 = vsel %vm1863, %v2767, 0.0
  %v3174 = vadd.f32 %v3172, %v3173
  %v3175 = vsel %vm1863, %v2768, 0.0
  %v3176 = vadd.f32 %v3174, %v3175
  %v3177 = vsel %vm1863, %v2769, 0.0
  %v3178 = vadd.f32 %v3176, %v3177
  %v3179 = vsel %vm1863, %v2770, 0.0
  %v3180 = vadd.f32 %v3178, %v3179
  %v3181 = vsel %vm1863, %v2771, 0.0
  %v3182 = vadd.f32 %v3180, %v3181
  %v3183 = vsel %vm1863, %v2772, 0.0
  %v3184 = vadd.f32 %v3182, %v3183
  %v3185 = vsel %vm1863, %v2773, 0.0
  %v3186 = vadd.f32 %v3184, %v3185
  %v3187 = vsel %vm1863, %v2774, 0.0
  %v3188 = vadd.f32 %v3186, %v3187
  %v3189 = vsel %vm1863, %v2775, 0.0
  %v3190 = vadd.f32 %v3188, %v3189
  %v3191 = vsel %vm1863, %v2776, 0.0
  %v3192 = vadd.f32 %v3190, %v3191
  %v3193 = vsel %vm1863, %v2777, 0.0
  %v3194 = vadd.f32 %v3192, %v3193
  %v3195 = vsel %vm1863, %v2778, 0.0
  %v3196 = vadd.f32 %v3194, %v3195
  %v3197 = vsel %vm1863, %v2779, 0.0
  %v3198 = vadd.f32 %v3196, %v3197
  %v3199 = vsel %vm1863, %v2780, 0.0
  %v3200 = vadd.f32 %v3198, %v3199
  %v3201 = vsel %vm1863, %v2781, 0.0
  %v3202 = vadd.f32 %v3200, %v3201
  %v3203 = vsel %vm1863, %v2782, 0.0
  %v3204 = vadd.f32 %v3202, %v3203
  %v3205 = vsel %vm1863, %v2783, 0.0
  %v3206 = vadd.f32 %v3204, %v3205
  %v3207 = vsel %vm1863, %v2784, 0.0
  %v3208 = vadd.f32 %v3206, %v3207
  %v3209 = vsel %vm1863, %v2785, 0.0
  %v3210 = vadd.f32 %v3208, %v3209
  %v3211 = vsel %vm1863, %v2786, 0.0
  %v3212 = vadd.f32 %v3210, %v3211
  %v3213 = vsel %vm1863, %v2787, 0.0
  %v3214 = vadd.f32 %v3212, %v3213
  %v3215 = vsel %vm1863, %v2788, 0.0
  %v3216 = vadd.f32 %v3214, %v3215
  %v3217 = vsel %vm1863, %v2789, 0.0
  %v3218 = vadd.f32 %v3216, %v3217
  %v3219 = vsel %vm1863, %v2790, 0.0
  %v3220 = vadd.f32 %v3218, %v3219
  %v3221 = vsel %vm1863, %v2791, 0.0
  %v3222 = vadd.f32 %v3220, %v3221
  %v3223 = vsel %vm1863, %v2792, 0.0
  %v3224 = vadd.f32 %v3222, %v3223
  %v3225 = vsel %vm1863, %v2793, 0.0
  %v3226 = vadd.f32 %v3224, %v3225
  %v3227 = vsel %vm1863, %v2794, 0.0
  %v3228 = vadd.f32 %v3226, %v3227
  %v3229 = vsel %vm1863, %v2795, 0.0
  %v3230 = vadd.f32 %v3228, %v3229
  %v3231 = vsel %vm1863, %v2796, 0.0
  %v3232 = vadd.f32 %v3230, %v3231
  %v3233 = vsel %vm1863, %v2797, 0.0
  %v3234 = vadd.f32 %v3232, %v3233
  %v3235 = vsel %vm1863, %v2798, 0.0
  %v3236 = vadd.f32 %v3234, %v3235
  %v3237 = vsel %vm1863, %v2799, 0.0
  %v3238 = vadd.f32 %v3236, %v3237
  %v3239 = vsel %vm1863, %v2800, 0.0
  %v3240 = vadd.f32 %v3238, %v3239
  %v3241 = vsel %vm1863, %v2801, 0.0
  %v3242 = vadd.f32 %v3240, %v3241
  %v3243 = vsel %vm1863, %v2802, 0.0
  %v3244 = vadd.f32 %v3242, %v3243
  %v3245 = vsel %vm1863, %v2803, 0.0
  %v3246 = vadd.f32 %v3244, %v3245
  %v3247 = vsel %vm1863, %v2804, 0.0
  %v3248 = vadd.f32 %v3246, %v3247
  %v3249 = vsel %vm1863, %v2805, 0.0
  %v3250 = vadd.f32 %v3248, %v3249
  %v3251 = vsel %vm1863, %v2806, 0.0
  %v3252 = vadd.f32 %v3250, %v3251
  %v3253 = vsel %vm1863, %v2807, 0.0
  %v3254 = vadd.f32 %v3252, %v3253
  %v3255 = vsel %vm1863, %v2808, 0.0
  %v3256 = vadd.f32 %v3254, %v3255
  %v3257 = vsel %vm1863, %v2809, 0.0
  %v3258 = vadd.f32 %v3256, %v3257
  %v3259 = vsel %vm1863, %v2810, 0.0
  %v3260 = vadd.f32 %v3258, %v3259
  %v3261 = vsel %vm1863, %v2811, 0.0
  %v3262 = vadd.f32 %v3260, %v3261
  %v3263 = vsel %vm1863, %v2812, 0.0
  %v3264 = vadd.f32 %v3262, %v3263
  %v3265 = vsel %vm1863, %v2813, 0.0
  %v3266 = vadd.f32 %v3264, %v3265
  %v3267 = vsel %vm1863, %v2814, 0.0
  %v3268 = vadd.f32 %v3266, %v3267
  %v3269 = vsel %vm1863, %v2815, 0.0
  %v3270 = vadd.f32 %v3268, %v3269
  %v3271 = vsel %vm1863, %v2816, 0.0
  %v3272 = vadd.f32 %v3270, %v3271
  %v3273 = vsel %vm1863, %v2817, 0.0
  %v3274 = vadd.f32 %v3272, %v3273
  %v3275 = vsel %vm1863, %v2818, 0.0
  %v3276 = vadd.f32 %v3274, %v3275
  %v3277 = vsel %vm1863, %v2819, 0.0
  %v3278 = vadd.f32 %v3276, %v3277
  %v3279 = vsel %vm1863, %v2820, 0.0
  %v3280 = vadd.f32 %v3278, %v3279
  %v3281 = vsel %vm1863, %v2821, 0.0
  %v3282 = vadd.f32 %v3280, %v3281
  %v3283 = vsel %vm1863, %v2822, 0.0
  %v3284 = vadd.f32 %v3282, %v3283
  %v3285 = vsel %vm1863, %v2823, 0.0
  %v3286 = vadd.f32 %v3284, %v3285
  %v3287 = vsel %vm1863, %v2824, 0.0
  %v3288 = vadd.f32 %v3286, %v3287
  %v3289 = vsel %vm1863, %v2825, 0.0
  %v3290 = vadd.f32 %v3288, %v3289
  %v3291 = vsel %vm1863, %v2826, 0.0
  %v3292 = vadd.f32 %v3290, %v3291
  %v3293 = vsel %vm1863, %v2827, 0.0
  %v3294 = vadd.f32 %v3292, %v3293
  %v3295 = vsel %vm1863, %v2828, 0.0
  %v3296 = vadd.f32 %v3294, %v3295
  %v3297 = vsel %vm1863, %v2829, 0.0
  %v3298 = vadd.f32 %v3296, %v3297
  %v3299 = vsel %vm1863, %v2830, 0.0
  %v3300 = vadd.f32 %v3298, %v3299
  %v3301 = vsel %vm1863, %v2831, 0.0
  %v3302 = vadd.f32 %v3300, %v3301
  %v3303 = vsel %vm1863, %v2832, 0.0
  %v3304 = vadd.f32 %v3302, %v3303
  %v3305 = vsel %vm1863, %v2833, 0.0
  %v3306 = vadd.f32 %v3304, %v3305
  %v3307 = vsel %vm1863, %v2834, 0.0
  %v3308 = vadd.f32 %v3306, %v3307
  %v3309 = vsel %vm1863, %v2835, 0.0
  %v3310 = vadd.f32 %v3308, %v3309
  %v3311 = vsel %vm1863, %v2836, 0.0
  %v3312 = vadd.f32 %v3310, %v3311
  %v3313 = vsel %vm1863, %v2837, 0.0
  %v3314 = vadd.f32 %v3312, %v3313
  %v3315 = vsel %vm1863, %v2838, 0.0
  %v3316 = vadd.f32 %v3314, %v3315
  %v3317 = vsel %vm1863, %v2839, 0.0
  %v3318 = vadd.f32 %v3316, %v3317
  %v3319 = vsel %vm1863, %v2840, 0.0
  %v3320 = vadd.f32 %v3318, %v3319
  %v3321 = vsel %vm2343, %v2841, 0.0
  %v3322 = vadd.f32 %v3320, %v3321
  %v3323 = vrot.slane %v3322, 4
  %v3324 = vadd.f32 %v3322, %v3323
  %v3325 = vrot.slane %v3324, 2
  %v3326 = vadd.f32 %v3324, %v3325
  %v3327 = vrot.slane %v3326, 1
  %v3328 = vadd.f32 %v3326, %v3327
  %v3329 = vmul.f32 %v3328, %v2358
  %v3330 = vld [vmem:[%s2] sm:$0x1]
  %v3331 = vadd.f32 %v3329, 1e-05
  %v3332 = vrsqrt.pop %v3331
  %v3333 = vmul.f32 %v3332, %v3331
  %v3334 = vmul.f32 %v3333, %v3332
  %v3335 = vmul.f32 0.5, %v3334
  %v3336 = vsub.f32 1.5, %v3335
  %v3337 = vmul.f32 %v3332, %v3336
  %vm3338 = vweird.f32 %v3331
  %vm3339 = vweird.f32 %v3332
  %vm3340 = vmor %vm3338, %vm3339
  %v3341 = vsel %vm3340, %v3332, %v3337
  %v3342 = vmul.f32 %v3330, %v3341
  %v3344 = vperm.slane %v3342, 0
  %v3346 = vmul.f32 %v2360, %v3344
  %v3347 = vmul.f32 %v2361, %v3344
  %v3348 = vmul.f32 %v2362, %v3344
  %v3349 = vmul.f32 %v2363, %v3344
  %v3350 = vmul.f32 %v2364, %v3344
  %v3351 = vmul.f32 %v2365, %v3344
  %v3352 = vmul.f32 %v2366, %v3344
  %v3353 = vmul.f32 %v2367, %v3344
  %v3354 = vmul.f32 %v2368, %v3344
  %v3355 = vmul.f32 %v2369, %v3344
  %v3356 = vmul.f32 %v2370, %v3344
  %v3357 = vmul.f32 %v2371, %v3344
  %v3358 = vmul.f32 %v2372, %v3344
  %v3359 = vmul.f32 %v2373, %v3344
  %v3360 = vmul.f32 %v2374, %v3344
  %v3361 = vmul.f32 %v2375, %v3344
  %v3362 = vmul.f32 %v2376, %v3344
  %v3363 = vmul.f32 %v2377, %v3344
  %v3364 = vmul.f32 %v2378, %v3344
  %v3365 = vmul.f32 %v2379, %v3344
  %v3366 = vmul.f32 %v2380, %v3344
  %v3367 = vmul.f32 %v2381, %v3344
  %v3368 = vmul.f32 %v2382, %v3344
  %v3369 = vmul.f32 %v2383, %v3344
  %v3370 = vmul.f32 %v2384, %v3344
  %v3371 = vmul.f32 %v2385, %v3344
  %v3372 = vmul.f32 %v2386, %v3344
  %v3373 = vmul.f32 %v2387, %v3344
  %v3374 = vmul.f32 %v2388, %v3344
  %v3375 = vmul.f32 %v2389, %v3344
  %v3376 = vmul.f32 %v2390, %v3344
  %v3377 = vmul.f32 %v2391, %v3344
  %v3378 = vmul.f32 %v2392, %v3344
  %v3379 = vmul.f32 %v2393, %v3344
  %v3380 = vmul.f32 %v2394, %v3344
  %v3381 = vmul.f32 %v2395, %v3344
  %v3382 = vmul.f32 %v2396, %v3344
  %v3383 = vmul.f32 %v2397, %v3344
  %v3384 = vmul.f32 %v2398, %v3344
  %v3385 = vmul.f32 %v2399, %v3344
  %v3386 = vmul.f32 %v2400, %v3344
  %v3387 = vmul.f32 %v2401, %v3344
  %v3388 = vmul.f32 %v2402, %v3344
  %v3389 = vmul.f32 %v2403, %v3344
  %v3390 = vmul.f32 %v2404, %v3344
  %v3391 = vmul.f32 %v2405, %v3344
  %v3392 = vmul.f32 %v2406, %v3344
  %v3393 = vmul.f32 %v2407, %v3344
  %v3394 = vmul.f32 %v2408, %v3344
  %v3395 = vmul.f32 %v2409, %v3344
  %v3396 = vmul.f32 %v2410, %v3344
  %v3397 = vmul.f32 %v2411, %v3344
  %v3398 = vmul.f32 %v2412, %v3344
  %v3399 = vmul.f32 %v2413, %v3344
  %v3400 = vmul.f32 %v2414, %v3344
  %v3401 = vmul.f32 %v2415, %v3344
  %v3402 = vmul.f32 %v2416, %v3344
  %v3403 = vmul.f32 %v2417, %v3344
  %v3404 = vmul.f32 %v2418, %v3344
  %v3405 = vmul.f32 %v2419, %v3344
  %v3406 = vmul.f32 %v2420, %v3344
  %v3407 = vmul.f32 %v2421, %v3344
  %v3408 = vmul.f32 %v2422, %v3344
  %v3409 = vmul.f32 %v2423, %v3344
  %v3410 = vmul.f32 %v2424, %v3344
  %v3411 = vmul.f32 %v2425, %v3344
  %v3412 = vmul.f32 %v2426, %v3344
  %v3413 = vmul.f32 %v2427, %v3344
  %v3414 = vmul.f32 %v2428, %v3344
  %v3415 = vmul.f32 %v2429, %v3344
  %v3416 = vmul.f32 %v2430, %v3344
  %v3417 = vmul.f32 %v2431, %v3344
  %v3418 = vmul.f32 %v2432, %v3344
  %v3419 = vmul.f32 %v2433, %v3344
  %v3420 = vmul.f32 %v2434, %v3344
  %v3421 = vmul.f32 %v2435, %v3344
  %v3422 = vmul.f32 %v2436, %v3344
  %v3423 = vmul.f32 %v2437, %v3344
  %v3424 = vmul.f32 %v2438, %v3344
  %v3425 = vmul.f32 %v2439, %v3344
  %v3426 = vmul.f32 %v2440, %v3344
  %v3427 = vmul.f32 %v2441, %v3344
  %v3428 = vmul.f32 %v2442, %v3344
  %v3429 = vmul.f32 %v2443, %v3344
  %v3430 = vmul.f32 %v2444, %v3344
  %v3431 = vmul.f32 %v2445, %v3344
  %v3432 = vmul.f32 %v2446, %v3344
  %v3433 = vmul.f32 %v2447, %v3344
  %v3434 = vmul.f32 %v2448, %v3344
  %v3435 = vmul.f32 %v2449, %v3344
  %v3436 = vmul.f32 %v2450, %v3344
  %v3437 = vmul.f32 %v2451, %v3344
  %v3438 = vmul.f32 %v2452, %v3344
  %v3439 = vmul.f32 %v2453, %v3344
  %v3440 = vmul.f32 %v2454, %v3344
  %v3441 = vmul.f32 %v2455, %v3344
  %v3442 = vmul.f32 %v2456, %v3344
  %v3443 = vmul.f32 %v2457, %v3344
  %v3444 = vmul.f32 %v2458, %v3344
  %v3445 = vmul.f32 %v2459, %v3344
  %v3446 = vmul.f32 %v2460, %v3344
  %v3447 = vmul.f32 %v2461, %v3344
  %v3448 = vmul.f32 %v2462, %v3344
  %v3449 = vmul.f32 %v2463, %v3344
  %v3450 = vmul.f32 %v2464, %v3344
  %v3451 = vmul.f32 %v2465, %v3344
  %v3452 = vmul.f32 %v2466, %v3344
  %v3453 = vmul.f32 %v2467, %v3344
  %v3454 = vmul.f32 %v2468, %v3344
  %v3455 = vmul.f32 %v2469, %v3344
  %v3456 = vmul.f32 %v2470, %v3344
  %v3457 = vmul.f32 %v2471, %v3344
  %v3458 = vmul.f32 %v2472, %v3344
  %v3459 = vmul.f32 %v2473, %v3344
  %v3460 = vmul.f32 %v2474, %v3344
  %v3461 = vmul.f32 %v2475, %v3344
  %v3462 = vmul.f32 %v2476, %v3344
  %v3463 = vmul.f32 %v2477, %v3344
  %v3464 = vmul.f32 %v2478, %v3344
  %v3465 = vmul.f32 %v2479, %v3344
  %v3466 = vmul.f32 %v2480, %v3344
  %v3467 = vmul.f32 %v2481, %v3344
  %v3468 = vmul.f32 %v2482, %v3344
  %v3469 = vmul.f32 %v2483, %v3344
  %v3470 = vmul.f32 %v2484, %v3344
  %v3471 = vmul.f32 %v2485, %v3344
  %v3472 = vmul.f32 %v2486, %v3344
  %v3473 = vmul.f32 %v2487, %v3344
  %v3474 = vmul.f32 %v2488, %v3344
  %v3475 = vmul.f32 %v2489, %v3344
  %v3476 = vmul.f32 %v2490, %v3344
  %v3477 = vmul.f32 %v2491, %v3344
  %v3478 = vmul.f32 %v2492, %v3344
  %v3479 = vmul.f32 %v2493, %v3344
  %v3480 = vmul.f32 %v2494, %v3344
  %v3481 = vmul.f32 %v2495, %v3344
  %v3482 = vmul.f32 %v2496, %v3344
  %v3483 = vmul.f32 %v2497, %v3344
  %v3484 = vmul.f32 %v2498, %v3344
  %v3485 = vmul.f32 %v2499, %v3344
  %v3486 = vmul.f32 %v2500, %v3344
  %v3487 = vmul.f32 %v2501, %v3344
  %v3488 = vmul.f32 %v2502, %v3344
  %v3489 = vmul.f32 %v2503, %v3344
  %v3490 = vmul.f32 %v2504, %v3344
  %v3491 = vmul.f32 %v2505, %v3344
  %v3492 = vmul.f32 %v2506, %v3344
  %v3493 = vmul.f32 %v2507, %v3344
  %v3494 = vmul.f32 %v2508, %v3344
  %v3495 = vmul.f32 %v2509, %v3344
  %v3496 = vmul.f32 %v2510, %v3344
  %v3497 = vmul.f32 %v2511, %v3344
  %v3498 = vmul.f32 %v2512, %v3344
  %v3499 = vmul.f32 %v2513, %v3344
  %v3500 = vmul.f32 %v2514, %v3344
  %v3501 = vmul.f32 %v2515, %v3344
  %v3502 = vmul.f32 %v2516, %v3344
  %v3503 = vmul.f32 %v2517, %v3344
  %v3504 = vmul.f32 %v2518, %v3344
  %v3505 = vmul.f32 %v2519, %v3344
  %v3506 = vmul.f32 %v2520, %v3344
  %v3507 = vmul.f32 %v2521, %v3344
  %v3508 = vmul.f32 %v2522, %v3344
  %v3509 = vmul.f32 %v2523, %v3344
  %v3510 = vmul.f32 %v2524, %v3344
  %v3511 = vmul.f32 %v2525, %v3344
  %v3512 = vmul.f32 %v2526, %v3344
  %v3513 = vmul.f32 %v2527, %v3344
  %v3514 = vmul.f32 %v2528, %v3344
  %v3515 = vmul.f32 %v2529, %v3344
  %v3516 = vmul.f32 %v2530, %v3344
  %v3517 = vmul.f32 %v2531, %v3344
  %v3518 = vmul.f32 %v2532, %v3344
  %v3519 = vmul.f32 %v2533, %v3344
  %v3520 = vmul.f32 %v2534, %v3344
  %v3521 = vmul.f32 %v2535, %v3344
  %v3522 = vmul.f32 %v2536, %v3344
  %v3523 = vmul.f32 %v2537, %v3344
  %v3524 = vmul.f32 %v2538, %v3344
  %v3525 = vmul.f32 %v2539, %v3344
  %v3526 = vmul.f32 %v2540, %v3344
  %v3527 = vmul.f32 %v2541, %v3344
  %v3528 = vmul.f32 %v2542, %v3344
  %v3529 = vmul.f32 %v2543, %v3344
  %v3530 = vmul.f32 %v2544, %v3344
  %v3531 = vmul.f32 %v2545, %v3344
  %v3532 = vmul.f32 %v2546, %v3344
  %v3533 = vmul.f32 %v2547, %v3344
  %v3534 = vmul.f32 %v2548, %v3344
  %v3535 = vmul.f32 %v2549, %v3344
  %v3536 = vmul.f32 %v2550, %v3344
  %v3537 = vmul.f32 %v2551, %v3344
  %v3538 = vmul.f32 %v2552, %v3344
  %v3539 = vmul.f32 %v2553, %v3344
  %v3540 = vmul.f32 %v2554, %v3344
  %v3541 = vmul.f32 %v2555, %v3344
  %v3542 = vmul.f32 %v2556, %v3344
  %v3543 = vmul.f32 %v2557, %v3344
  %v3544 = vmul.f32 %v2558, %v3344
  %v3545 = vmul.f32 %v2559, %v3344
  %v3546 = vmul.f32 %v2560, %v3344
  %v3547 = vmul.f32 %v2561, %v3344
  %v3548 = vmul.f32 %v2562, %v3344
  %v3549 = vmul.f32 %v2563, %v3344
  %v3550 = vmul.f32 %v2564, %v3344
  %v3551 = vmul.f32 %v2565, %v3344
  %v3552 = vmul.f32 %v2566, %v3344
  %v3553 = vmul.f32 %v2567, %v3344
  %v3554 = vmul.f32 %v2568, %v3344
  %v3555 = vmul.f32 %v2569, %v3344
  %v3556 = vmul.f32 %v2570, %v3344
  %v3557 = vmul.f32 %v2571, %v3344
  %v3558 = vmul.f32 %v2572, %v3344
  %v3559 = vmul.f32 %v2573, %v3344
  %v3560 = vmul.f32 %v2574, %v3344
  %v3561 = vmul.f32 %v2575, %v3344
  %v3562 = vmul.f32 %v2576, %v3344
  %v3563 = vmul.f32 %v2577, %v3344
  %v3564 = vmul.f32 %v2578, %v3344
  %v3565 = vmul.f32 %v2579, %v3344
  %v3566 = vmul.f32 %v2580, %v3344
  %v3567 = vmul.f32 %v2581, %v3344
  %v3568 = vmul.f32 %v2582, %v3344
  %v3569 = vmul.f32 %v2583, %v3344
  %v3570 = vmul.f32 %v2584, %v3344
  %v3571 = vmul.f32 %v2585, %v3344
  %v3572 = vmul.f32 %v2586, %v3344
  %v3573 = vmul.f32 %v2587, %v3344
  %v3574 = vmul.f32 %v2588, %v3344
  %v3575 = vmul.f32 %v2589, %v3344
  %v3576 = vmul.f32 %v2590, %v3344
  %v3577 = vmul.f32 %v2591, %v3344
  %v3578 = vmul.f32 %v2592, %v3344
  %v3579 = vmul.f32 %v2593, %v3344
  %v3580 = vmul.f32 %v2594, %v3344
  %v3581 = vmul.f32 %v2595, %v3344
  %v3582 = vmul.f32 %v2596, %v3344
  %v3583 = vmul.f32 %v2597, %v3344
  %v3584 = vmul.f32 %v2598, %v3344
  %v3585 = vmul.f32 %v2599, %v3344
  %v3586 = vmul.f32 %v2600, %v3344
  %v3587 = vld [vmem:[%s3] sm:$0x1]
  %v3589 = vperm.slane %v3587, 0
  %v3591 = vadd.f32 %v3346, %v3589
  %v3592 = vadd.f32 %v3347, %v3589
  %v3593 = vadd.f32 %v3348, %v3589
  %v3594 = vadd.f32 %v3349, %v3589
  %v3595 = vadd.f32 %v3350, %v3589
  %v3596 = vadd.f32 %v3351, %v3589
  %v3597 = vadd.f32 %v3352, %v3589
  %v3598 = vadd.f32 %v3353, %v3589
  %v3599 = vadd.f32 %v3354, %v3589
  %v3600 = vadd.f32 %v3355, %v3589
  %v3601 = vadd.f32 %v3356, %v3589
  %v3602 = vadd.f32 %v3357, %v3589
  %v3603 = vadd.f32 %v3358, %v3589
  %v3604 = vadd.f32 %v3359, %v3589
  %v3605 = vadd.f32 %v3360, %v3589
  %v3606 = vadd.f32 %v3361, %v3589
  %v3607 = vadd.f32 %v3362, %v3589
  %v3608 = vadd.f32 %v3363, %v3589
  %v3609 = vadd.f32 %v3364, %v3589
  %v3610 = vadd.f32 %v3365, %v3589
  %v3611 = vadd.f32 %v3366, %v3589
  %v3612 = vadd.f32 %v3367, %v3589
  %v3613 = vadd.f32 %v3368, %v3589
  %v3614 = vadd.f32 %v3369, %v3589
  %v3615 = vadd.f32 %v3370, %v3589
  %v3616 = vadd.f32 %v3371, %v3589
  %v3617 = vadd.f32 %v3372, %v3589
  %v3618 = vadd.f32 %v3373, %v3589
  %v3619 = vadd.f32 %v3374, %v3589
  %v3620 = vadd.f32 %v3375, %v3589
  %v3621 = vadd.f32 %v3376, %v3589
  %v3622 = vadd.f32 %v3377, %v3589
  %v3623 = vadd.f32 %v3378, %v3589
  %v3624 = vadd.f32 %v3379, %v3589
  %v3625 = vadd.f32 %v3380, %v3589
  %v3626 = vadd.f32 %v3381, %v3589
  %v3627 = vadd.f32 %v3382, %v3589
  %v3628 = vadd.f32 %v3383, %v3589
  %v3629 = vadd.f32 %v3384, %v3589
  %v3630 = vadd.f32 %v3385, %v3589
  %v3631 = vadd.f32 %v3386, %v3589
  %v3632 = vadd.f32 %v3387, %v3589
  %v3633 = vadd.f32 %v3388, %v3589
  %v3634 = vadd.f32 %v3389, %v3589
  %v3635 = vadd.f32 %v3390, %v3589
  %v3636 = vadd.f32 %v3391, %v3589
  %v3637 = vadd.f32 %v3392, %v3589
  %v3638 = vadd.f32 %v3393, %v3589
  %v3639 = vadd.f32 %v3394, %v3589
  %v3640 = vadd.f32 %v3395, %v3589
  %v3641 = vadd.f32 %v3396, %v3589
  %v3642 = vadd.f32 %v3397, %v3589
  %v3643 = vadd.f32 %v3398, %v3589
  %v3644 = vadd.f32 %v3399, %v3589
  %v3645 = vadd.f32 %v3400, %v3589
  %v3646 = vadd.f32 %v3401, %v3589
  %v3647 = vadd.f32 %v3402, %v3589
  %v3648 = vadd.f32 %v3403, %v3589
  %v3649 = vadd.f32 %v3404, %v3589
  %v3650 = vadd.f32 %v3405, %v3589
  %v3651 = vadd.f32 %v3406, %v3589
  %v3652 = vadd.f32 %v3407, %v3589
  %v3653 = vadd.f32 %v3408, %v3589
  %v3654 = vadd.f32 %v3409, %v3589
  %v3655 = vadd.f32 %v3410, %v3589
  %v3656 = vadd.f32 %v3411, %v3589
  %v3657 = vadd.f32 %v3412, %v3589
  %v3658 = vadd.f32 %v3413, %v3589
  %v3659 = vadd.f32 %v3414, %v3589
  %v3660 = vadd.f32 %v3415, %v3589
  %v3661 = vadd.f32 %v3416, %v3589
  %v3662 = vadd.f32 %v3417, %v3589
  %v3663 = vadd.f32 %v3418, %v3589
  %v3664 = vadd.f32 %v3419, %v3589
  %v3665 = vadd.f32 %v3420, %v3589
  %v3666 = vadd.f32 %v3421, %v3589
  %v3667 = vadd.f32 %v3422, %v3589
  %v3668 = vadd.f32 %v3423, %v3589
  %v3669 = vadd.f32 %v3424, %v3589
  %v3670 = vadd.f32 %v3425, %v3589
  %v3671 = vadd.f32 %v3426, %v3589
  %v3672 = vadd.f32 %v3427, %v3589
  %v3673 = vadd.f32 %v3428, %v3589
  %v3674 = vadd.f32 %v3429, %v3589
  %v3675 = vadd.f32 %v3430, %v3589
  %v3676 = vadd.f32 %v3431, %v3589
  %v3677 = vadd.f32 %v3432, %v3589
  %v3678 = vadd.f32 %v3433, %v3589
  %v3679 = vadd.f32 %v3434, %v3589
  %v3680 = vadd.f32 %v3435, %v3589
  %v3681 = vadd.f32 %v3436, %v3589
  %v3682 = vadd.f32 %v3437, %v3589
  %v3683 = vadd.f32 %v3438, %v3589
  %v3684 = vadd.f32 %v3439, %v3589
  %v3685 = vadd.f32 %v3440, %v3589
  %v3686 = vadd.f32 %v3441, %v3589
  %v3687 = vadd.f32 %v3442, %v3589
  %v3688 = vadd.f32 %v3443, %v3589
  %v3689 = vadd.f32 %v3444, %v3589
  %v3690 = vadd.f32 %v3445, %v3589
  %v3691 = vadd.f32 %v3446, %v3589
  %v3692 = vadd.f32 %v3447, %v3589
  %v3693 = vadd.f32 %v3448, %v3589
  %v3694 = vadd.f32 %v3449, %v3589
  %v3695 = vadd.f32 %v3450, %v3589
  %v3696 = vadd.f32 %v3451, %v3589
  %v3697 = vadd.f32 %v3452, %v3589
  %v3698 = vadd.f32 %v3453, %v3589
  %v3699 = vadd.f32 %v3454, %v3589
  %v3700 = vadd.f32 %v3455, %v3589
  %v3701 = vadd.f32 %v3456, %v3589
  %v3702 = vadd.f32 %v3457, %v3589
  %v3703 = vadd.f32 %v3458, %v3589
  %v3704 = vadd.f32 %v3459, %v3589
  %v3705 = vadd.f32 %v3460, %v3589
  %v3706 = vadd.f32 %v3461, %v3589
  %v3707 = vadd.f32 %v3462, %v3589
  %v3708 = vadd.f32 %v3463, %v3589
  %v3709 = vadd.f32 %v3464, %v3589
  %v3710 = vadd.f32 %v3465, %v3589
  %v3711 = vadd.f32 %v3466, %v3589
  %v3712 = vadd.f32 %v3467, %v3589
  %v3713 = vadd.f32 %v3468, %v3589
  %v3714 = vadd.f32 %v3469, %v3589
  %v3715 = vadd.f32 %v3470, %v3589
  %v3716 = vadd.f32 %v3471, %v3589
  %v3717 = vadd.f32 %v3472, %v3589
  %v3718 = vadd.f32 %v3473, %v3589
  %v3719 = vadd.f32 %v3474, %v3589
  %v3720 = vadd.f32 %v3475, %v3589
  %v3721 = vadd.f32 %v3476, %v3589
  %v3722 = vadd.f32 %v3477, %v3589
  %v3723 = vadd.f32 %v3478, %v3589
  %v3724 = vadd.f32 %v3479, %v3589
  %v3725 = vadd.f32 %v3480, %v3589
  %v3726 = vadd.f32 %v3481, %v3589
  %v3727 = vadd.f32 %v3482, %v3589
  %v3728 = vadd.f32 %v3483, %v3589
  %v3729 = vadd.f32 %v3484, %v3589
  %v3730 = vadd.f32 %v3485, %v3589
  %v3731 = vadd.f32 %v3486, %v3589
  %v3732 = vadd.f32 %v3487, %v3589
  %v3733 = vadd.f32 %v3488, %v3589
  %v3734 = vadd.f32 %v3489, %v3589
  %v3735 = vadd.f32 %v3490, %v3589
  %v3736 = vadd.f32 %v3491, %v3589
  %v3737 = vadd.f32 %v3492, %v3589
  %v3738 = vadd.f32 %v3493, %v3589
  %v3739 = vadd.f32 %v3494, %v3589
  %v3740 = vadd.f32 %v3495, %v3589
  %v3741 = vadd.f32 %v3496, %v3589
  %v3742 = vadd.f32 %v3497, %v3589
  %v3743 = vadd.f32 %v3498, %v3589
  %v3744 = vadd.f32 %v3499, %v3589
  %v3745 = vadd.f32 %v3500, %v3589
  %v3746 = vadd.f32 %v3501, %v3589
  %v3747 = vadd.f32 %v3502, %v3589
  %v3748 = vadd.f32 %v3503, %v3589
  %v3749 = vadd.f32 %v3504, %v3589
  %v3750 = vadd.f32 %v3505, %v3589
  %v3751 = vadd.f32 %v3506, %v3589
  %v3752 = vadd.f32 %v3507, %v3589
  %v3753 = vadd.f32 %v3508, %v3589
  %v3754 = vadd.f32 %v3509, %v3589
  %v3755 = vadd.f32 %v3510, %v3589
  %v3756 = vadd.f32 %v3511, %v3589
  %v3757 = vadd.f32 %v3512, %v3589
  %v3758 = vadd.f32 %v3513, %v3589
  %v3759 = vadd.f32 %v3514, %v3589
  %v3760 = vadd.f32 %v3515, %v3589
  %v3761 = vadd.f32 %v3516, %v3589
  %v3762 = vadd.f32 %v3517, %v3589
  %v3763 = vadd.f32 %v3518, %v3589
  %v3764 = vadd.f32 %v3519, %v3589
  %v3765 = vadd.f32 %v3520, %v3589
  %v3766 = vadd.f32 %v3521, %v3589
  %v3767 = vadd.f32 %v3522, %v3589
  %v3768 = vadd.f32 %v3523, %v3589
  %v3769 = vadd.f32 %v3524, %v3589
  %v3770 = vadd.f32 %v3525, %v3589
  %v3771 = vadd.f32 %v3526, %v3589
  %v3772 = vadd.f32 %v3527, %v3589
  %v3773 = vadd.f32 %v3528, %v3589
  %v3774 = vadd.f32 %v3529, %v3589
  %v3775 = vadd.f32 %v3530, %v3589
  %v3776 = vadd.f32 %v3531, %v3589
  %v3777 = vadd.f32 %v3532, %v3589
  %v3778 = vadd.f32 %v3533, %v3589
  %v3779 = vadd.f32 %v3534, %v3589
  %v3780 = vadd.f32 %v3535, %v3589
  %v3781 = vadd.f32 %v3536, %v3589
  %v3782 = vadd.f32 %v3537, %v3589
  %v3783 = vadd.f32 %v3538, %v3589
  %v3784 = vadd.f32 %v3539, %v3589
  %v3785 = vadd.f32 %v3540, %v3589
  %v3786 = vadd.f32 %v3541, %v3589
  %v3787 = vadd.f32 %v3542, %v3589
  %v3788 = vadd.f32 %v3543, %v3589
  %v3789 = vadd.f32 %v3544, %v3589
  %v3790 = vadd.f32 %v3545, %v3589
  %v3791 = vadd.f32 %v3546, %v3589
  %v3792 = vadd.f32 %v3547, %v3589
  %v3793 = vadd.f32 %v3548, %v3589
  %v3794 = vadd.f32 %v3549, %v3589
  %v3795 = vadd.f32 %v3550, %v3589
  %v3796 = vadd.f32 %v3551, %v3589
  %v3797 = vadd.f32 %v3552, %v3589
  %v3798 = vadd.f32 %v3553, %v3589
  %v3799 = vadd.f32 %v3554, %v3589
  %v3800 = vadd.f32 %v3555, %v3589
  %v3801 = vadd.f32 %v3556, %v3589
  %v3802 = vadd.f32 %v3557, %v3589
  %v3803 = vadd.f32 %v3558, %v3589
  %v3804 = vadd.f32 %v3559, %v3589
  %v3805 = vadd.f32 %v3560, %v3589
  %v3806 = vadd.f32 %v3561, %v3589
  %v3807 = vadd.f32 %v3562, %v3589
  %v3808 = vadd.f32 %v3563, %v3589
  %v3809 = vadd.f32 %v3564, %v3589
  %v3810 = vadd.f32 %v3565, %v3589
  %v3811 = vadd.f32 %v3566, %v3589
  %v3812 = vadd.f32 %v3567, %v3589
  %v3813 = vadd.f32 %v3568, %v3589
  %v3814 = vadd.f32 %v3569, %v3589
  %v3815 = vadd.f32 %v3570, %v3589
  %v3816 = vadd.f32 %v3571, %v3589
  %v3817 = vadd.f32 %v3572, %v3589
  %v3818 = vadd.f32 %v3573, %v3589
  %v3819 = vadd.f32 %v3574, %v3589
  %v3820 = vadd.f32 %v3575, %v3589
  %v3821 = vadd.f32 %v3576, %v3589
  %v3822 = vadd.f32 %v3577, %v3589
  %v3823 = vadd.f32 %v3578, %v3589
  %v3824 = vadd.f32 %v3579, %v3589
  %v3825 = vadd.f32 %v3580, %v3589
  %v3826 = vadd.f32 %v3581, %v3589
  %v3827 = vadd.f32 %v3582, %v3589
  %v3828 = vadd.f32 %v3583, %v3589
  %v3829 = vadd.f32 %v3584, %v3589
  %v3830 = vadd.f32 %v3585, %v3589
  %v3831 = vadd.f32 %v3586, %v3589
  %v3832 = vmul.f32 %v3591, 0.2
  %v3833 = vmul.f32 %v3592, 0.2
  %v3834 = vmul.f32 %v3593, 0.2
  %v3835 = vmul.f32 %v3594, 0.2
  %v3836 = vmul.f32 %v3595, 0.2
  %v3837 = vmul.f32 %v3596, 0.2
  %v3838 = vmul.f32 %v3597, 0.2
  %v3839 = vmul.f32 %v3598, 0.2
  %v3840 = vmul.f32 %v3599, 0.2
  %v3841 = vmul.f32 %v3600, 0.2
  %v3842 = vmul.f32 %v3601, 0.2
  %v3843 = vmul.f32 %v3602, 0.2
  %v3844 = vmul.f32 %v3603, 0.2
  %v3845 = vmul.f32 %v3604, 0.2
  %v3846 = vmul.f32 %v3605, 0.2
  %v3847 = vmul.f32 %v3606, 0.2
  %v3848 = vmul.f32 %v3607, 0.2
  %v3849 = vmul.f32 %v3608, 0.2
  %v3850 = vmul.f32 %v3609, 0.2
  %v3851 = vmul.f32 %v3610, 0.2
  %v3852 = vmul.f32 %v3611, 0.2
  %v3853 = vmul.f32 %v3612, 0.2
  %v3854 = vmul.f32 %v3613, 0.2
  %v3855 = vmul.f32 %v3614, 0.2
  %v3856 = vmul.f32 %v3615, 0.2
  %v3857 = vmul.f32 %v3616, 0.2
  %v3858 = vmul.f32 %v3617, 0.2
  %v3859 = vmul.f32 %v3618, 0.2
  %v3860 = vmul.f32 %v3619, 0.2
  %v3861 = vmul.f32 %v3620, 0.2
  %v3862 = vmul.f32 %v3621, 0.2
  %v3863 = vmul.f32 %v3622, 0.2
  %v3864 = vmul.f32 %v3623, 0.2
  %v3865 = vmul.f32 %v3624, 0.2
  %v3866 = vmul.f32 %v3625, 0.2
  %v3867 = vmul.f32 %v3626, 0.2
  %v3868 = vmul.f32 %v3627, 0.2
  %v3869 = vmul.f32 %v3628, 0.2
  %v3870 = vmul.f32 %v3629, 0.2
  %v3871 = vmul.f32 %v3630, 0.2
  %v3872 = vmul.f32 %v3631, 0.2
  %v3873 = vmul.f32 %v3632, 0.2
  %v3874 = vmul.f32 %v3633, 0.2
  %v3875 = vmul.f32 %v3634, 0.2
  %v3876 = vmul.f32 %v3635, 0.2
  %v3877 = vmul.f32 %v3636, 0.2
  %v3878 = vmul.f32 %v3637, 0.2
  %v3879 = vmul.f32 %v3638, 0.2
  %v3880 = vmul.f32 %v3639, 0.2
  %v3881 = vmul.f32 %v3640, 0.2
  %v3882 = vmul.f32 %v3641, 0.2
  %v3883 = vmul.f32 %v3642, 0.2
  %v3884 = vmul.f32 %v3643, 0.2
  %v3885 = vmul.f32 %v3644, 0.2
  %v3886 = vmul.f32 %v3645, 0.2
  %v3887 = vmul.f32 %v3646, 0.2
  %v3888 = vmul.f32 %v3647, 0.2
  %v3889 = vmul.f32 %v3648, 0.2
  %v3890 = vmul.f32 %v3649, 0.2
  %v3891 = vmul.f32 %v3650, 0.2
  %v3892 = vmul.f32 %v3651, 0.2
  %v3893 = vmul.f32 %v3652, 0.2
  %v3894 = vmul.f32 %v3653, 0.2
  %v3895 = vmul.f32 %v3654, 0.2
  %v3896 = vmul.f32 %v3655, 0.2
  %v3897 = vmul.f32 %v3656, 0.2
  %v3898 = vmul.f32 %v3657, 0.2
  %v3899 = vmul.f32 %v3658, 0.2
  %v3900 = vmul.f32 %v3659, 0.2
  %v3901 = vmul.f32 %v3660, 0.2
  %v3902 = vmul.f32 %v3661, 0.2
  %v3903 = vmul.f32 %v3662, 0.2
  %v3904 = vmul.f32 %v3663, 0.2
  %v3905 = vmul.f32 %v3664, 0.2
  %v3906 = vmul.f32 %v3665, 0.2
  %v3907 = vmul.f32 %v3666, 0.2
  %v3908 = vmul.f32 %v3667, 0.2
  %v3909 = vmul.f32 %v3668, 0.2
  %v3910 = vmul.f32 %v3669, 0.2
  %v3911 = vmul.f32 %v3670, 0.2
  %v3912 = vmul.f32 %v3671, 0.2
  %v3913 = vmul.f32 %v3672, 0.2
  %v3914 = vmul.f32 %v3673, 0.2
  %v3915 = vmul.f32 %v3674, 0.2
  %v3916 = vmul.f32 %v3675, 0.2
  %v3917 = vmul.f32 %v3676, 0.2
  %v3918 = vmul.f32 %v3677, 0.2
  %v3919 = vmul.f32 %v3678, 0.2
  %v3920 = vmul.f32 %v3679, 0.2
  %v3921 = vmul.f32 %v3680, 0.2
  %v3922 = vmul.f32 %v3681, 0.2
  %v3923 = vmul.f32 %v3682, 0.2
  %v3924 = vmul.f32 %v3683, 0.2
  %v3925 = vmul.f32 %v3684, 0.2
  %v3926 = vmul.f32 %v3685, 0.2
  %v3927 = vmul.f32 %v3686, 0.2
  %v3928 = vmul.f32 %v3687, 0.2
  %v3929 = vmul.f32 %v3688, 0.2
  %v3930 = vmul.f32 %v3689, 0.2
  %v3931 = vmul.f32 %v3690, 0.2
  %v3932 = vmul.f32 %v3691, 0.2
  %v3933 = vmul.f32 %v3692, 0.2
  %v3934 = vmul.f32 %v3693, 0.2
  %v3935 = vmul.f32 %v3694, 0.2
  %v3936 = vmul.f32 %v3695, 0.2
  %v3937 = vmul.f32 %v3696, 0.2
  %v3938 = vmul.f32 %v3697, 0.2
  %v3939 = vmul.f32 %v3698, 0.2
  %v3940 = vmul.f32 %v3699, 0.2
  %v3941 = vmul.f32 %v3700, 0.2
  %v3942 = vmul.f32 %v3701, 0.2
  %v3943 = vmul.f32 %v3702, 0.2
  %v3944 = vmul.f32 %v3703, 0.2
  %v3945 = vmul.f32 %v3704, 0.2
  %v3946 = vmul.f32 %v3705, 0.2
  %v3947 = vmul.f32 %v3706, 0.2
  %v3948 = vmul.f32 %v3707, 0.2
  %v3949 = vmul.f32 %v3708, 0.2
  %v3950 = vmul.f32 %v3709, 0.2
  %v3951 = vmul.f32 %v3710, 0.2
  %v3952 = vmul.f32 %v3711, 0.2
  %v3953 = vmul.f32 %v3712, 0.2
  %v3954 = vmul.f32 %v3713, 0.2
  %v3955 = vmul.f32 %v3714, 0.2
  %v3956 = vmul.f32 %v3715, 0.2
  %v3957 = vmul.f32 %v3716, 0.2
  %v3958 = vmul.f32 %v3717, 0.2
  %v3959 = vmul.f32 %v3718, 0.2
  %v3960 = vmul.f32 %v3719, 0.2
  %v3961 = vmul.f32 %v3720, 0.2
  %v3962 = vmul.f32 %v3721, 0.2
  %v3963 = vmul.f32 %v3722, 0.2
  %v3964 = vmul.f32 %v3723, 0.2
  %v3965 = vmul.f32 %v3724, 0.2
  %v3966 = vmul.f32 %v3725, 0.2
  %v3967 = vmul.f32 %v3726, 0.2
  %v3968 = vmul.f32 %v3727, 0.2
  %v3969 = vmul.f32 %v3728, 0.2
  %v3970 = vmul.f32 %v3729, 0.2
  %v3971 = vmul.f32 %v3730, 0.2
  %v3972 = vmul.f32 %v3731, 0.2
  %v3973 = vmul.f32 %v3732, 0.2
  %v3974 = vmul.f32 %v3733, 0.2
  %v3975 = vmul.f32 %v3734, 0.2
  %v3976 = vmul.f32 %v3735, 0.2
  %v3977 = vmul.f32 %v3736, 0.2
  %v3978 = vmul.f32 %v3737, 0.2
  %v3979 = vmul.f32 %v3738, 0.2
  %v3980 = vmul.f32 %v3739, 0.2
  %v3981 = vmul.f32 %v3740, 0.2
  %v3982 = vmul.f32 %v3741, 0.2
  %v3983 = vmul.f32 %v3742, 0.2
  %v3984 = vmul.f32 %v3743, 0.2
  %v3985 = vmul.f32 %v3744, 0.2
  %v3986 = vmul.f32 %v3745, 0.2
  %v3987 = vmul.f32 %v3746, 0.2
  %v3988 = vmul.f32 %v3747, 0.2
  %v3989 = vmul.f32 %v3748, 0.2
  %v3990 = vmul.f32 %v3749, 0.2
  %v3991 = vmul.f32 %v3750, 0.2
  %v3992 = vmul.f32 %v3751, 0.2
  %v3993 = vmul.f32 %v3752, 0.2
  %v3994 = vmul.f32 %v3753, 0.2
  %v3995 = vmul.f32 %v3754, 0.2
  %v3996 = vmul.f32 %v3755, 0.2
  %v3997 = vmul.f32 %v3756, 0.2
  %v3998 = vmul.f32 %v3757, 0.2
  %v3999 = vmul.f32 %v3758, 0.2
  %v4000 = vmul.f32 %v3759, 0.2
  %v4001 = vmul.f32 %v3760, 0.2
  %v4002 = vmul.f32 %v3761, 0.2
  %v4003 = vmul.f32 %v3762, 0.2
  %v4004 = vmul.f32 %v3763, 0.2
  %v4005 = vmul.f32 %v3764, 0.2
  %v4006 = vmul.f32 %v3765, 0.2
  %v4007 = vmul.f32 %v3766, 0.2
  %v4008 = vmul.f32 %v3767, 0.2
  %v4009 = vmul.f32 %v3768, 0.2
  %v4010 = vmul.f32 %v3769, 0.2
  %v4011 = vmul.f32 %v3770, 0.2
  %v4012 = vmul.f32 %v3771, 0.2
  %v4013 = vmul.f32 %v3772, 0.2
  %v4014 = vmul.f32 %v3773, 0.2
  %v4015 = vmul.f32 %v3774, 0.2
  %v4016 = vmul.f32 %v3775, 0.2
  %v4017 = vmul.f32 %v3776, 0.2
  %v4018 = vmul.f32 %v3777, 0.2
  %v4019 = vmul.f32 %v3778, 0.2
  %v4020 = vmul.f32 %v3779, 0.2
  %v4021 = vmul.f32 %v3780, 0.2
  %v4022 = vmul.f32 %v3781, 0.2
  %v4023 = vmul.f32 %v3782, 0.2
  %v4024 = vmul.f32 %v3783, 0.2
  %v4025 = vmul.f32 %v3784, 0.2
  %v4026 = vmul.f32 %v3785, 0.2
  %v4027 = vmul.f32 %v3786, 0.2
  %v4028 = vmul.f32 %v3787, 0.2
  %v4029 = vmul.f32 %v3788, 0.2
  %v4030 = vmul.f32 %v3789, 0.2
  %v4031 = vmul.f32 %v3790, 0.2
  %v4032 = vmul.f32 %v3791, 0.2
  %v4033 = vmul.f32 %v3792, 0.2
  %v4034 = vmul.f32 %v3793, 0.2
  %v4035 = vmul.f32 %v3794, 0.2
  %v4036 = vmul.f32 %v3795, 0.2
  %v4037 = vmul.f32 %v3796, 0.2
  %v4038 = vmul.f32 %v3797, 0.2
  %v4039 = vmul.f32 %v3798, 0.2
  %v4040 = vmul.f32 %v3799, 0.2
  %v4041 = vmul.f32 %v3800, 0.2
  %v4042 = vmul.f32 %v3801, 0.2
  %v4043 = vmul.f32 %v3802, 0.2
  %v4044 = vmul.f32 %v3803, 0.2
  %v4045 = vmul.f32 %v3804, 0.2
  %v4046 = vmul.f32 %v3805, 0.2
  %v4047 = vmul.f32 %v3806, 0.2
  %v4048 = vmul.f32 %v3807, 0.2
  %v4049 = vmul.f32 %v3808, 0.2
  %v4050 = vmul.f32 %v3809, 0.2
  %v4051 = vmul.f32 %v3810, 0.2
  %v4052 = vmul.f32 %v3811, 0.2
  %v4053 = vmul.f32 %v3812, 0.2
  %v4054 = vmul.f32 %v3813, 0.2
  %v4055 = vmul.f32 %v3814, 0.2
  %v4056 = vmul.f32 %v3815, 0.2
  %v4057 = vmul.f32 %v3816, 0.2
  %v4058 = vmul.f32 %v3817, 0.2
  %v4059 = vmul.f32 %v3818, 0.2
  %v4060 = vmul.f32 %v3819, 0.2
  %v4061 = vmul.f32 %v3820, 0.2
  %v4062 = vmul.f32 %v3821, 0.2
  %v4063 = vmul.f32 %v3822, 0.2
  %v4064 = vmul.f32 %v3823, 0.2
  %v4065 = vmul.f32 %v3824, 0.2
  %v4066 = vmul.f32 %v3825, 0.2
  %v4067 = vmul.f32 %v3826, 0.2
  %v4068 = vmul.f32 %v3827, 0.2
  %v4069 = vmul.f32 %v3828, 0.2
  %v4070 = vmul.f32 %v3829, 0.2
  %v4071 = vmul.f32 %v3830, 0.2
  %v4072 = vmul.f32 %v3831, 0.2
  %v4073 = vmax.f32 %v3591, %v3832
  %v4074 = vmax.f32 %v3592, %v3833
  %v4075 = vmax.f32 %v3593, %v3834
  %v4076 = vmax.f32 %v3594, %v3835
  %v4077 = vmax.f32 %v3595, %v3836
  %v4078 = vmax.f32 %v3596, %v3837
  %v4079 = vmax.f32 %v3597, %v3838
  %v4080 = vmax.f32 %v3598, %v3839
  %v4081 = vmax.f32 %v3599, %v3840
  %v4082 = vmax.f32 %v3600, %v3841
  %v4083 = vmax.f32 %v3601, %v3842
  %v4084 = vmax.f32 %v3602, %v3843
  %v4085 = vmax.f32 %v3603, %v3844
  %v4086 = vmax.f32 %v3604, %v3845
  %v4087 = vmax.f32 %v3605, %v3846
  %v4088 = vmax.f32 %v3606, %v3847
  %v4089 = vmax.f32 %v3607, %v3848
  %v4090 = vmax.f32 %v3608, %v3849
  %v4091 = vmax.f32 %v3609, %v3850
  %v4092 = vmax.f32 %v3610, %v3851
  %v4093 = vmax.f32 %v3611, %v3852
  %v4094 = vmax.f32 %v3612, %v3853
  %v4095 = vmax.f32 %v3613, %v3854
  %v4096 = vmax.f32 %v3614, %v3855
  %v4097 = vmax.f32 %v3615, %v3856
  %v4098 = vmax.f32 %v3616, %v3857
  %v4099 = vmax.f32 %v3617, %v3858
  %v4100 = vmax.f32 %v3618, %v3859
  %v4101 = vmax.f32 %v3619, %v3860
  %v4102 = vmax.f32 %v3620, %v3861
  %v4103 = vmax.f32 %v3621, %v3862
  %v4104 = vmax.f32 %v3622, %v3863
  %v4105 = vmax.f32 %v3623, %v3864
  %v4106 = vmax.f32 %v3624, %v3865
  %v4107 = vmax.f32 %v3625, %v3866
  %v4108 = vmax.f32 %v3626, %v3867
  %v4109 = vmax.f32 %v3627, %v3868
  %v4110 = vmax.f32 %v3628, %v3869
  %v4111 = vmax.f32 %v3629, %v3870
  %v4112 = vmax.f32 %v3630, %v3871
  %v4113 = vmax.f32 %v3631, %v3872
  %v4114 = vmax.f32 %v3632, %v3873
  %v4115 = vmax.f32 %v3633, %v3874
  %v4116 = vmax.f32 %v3634, %v3875
  %v4117 = vmax.f32 %v3635, %v3876
  %v4118 = vmax.f32 %v3636, %v3877
  %v4119 = vmax.f32 %v3637, %v3878
  %v4120 = vmax.f32 %v3638, %v3879
  %v4121 = vmax.f32 %v3639, %v3880
  %v4122 = vmax.f32 %v3640, %v3881
  %v4123 = vmax.f32 %v3641, %v3882
  %v4124 = vmax.f32 %v3642, %v3883
  %v4125 = vmax.f32 %v3643, %v3884
  %v4126 = vmax.f32 %v3644, %v3885
  %v4127 = vmax.f32 %v3645, %v3886
  %v4128 = vmax.f32 %v3646, %v3887
  %v4129 = vmax.f32 %v3647, %v3888
  %v4130 = vmax.f32 %v3648, %v3889
  %v4131 = vmax.f32 %v3649, %v3890
  %v4132 = vmax.f32 %v3650, %v3891
  %v4133 = vmax.f32 %v3651, %v3892
  %v4134 = vmax.f32 %v3652, %v3893
  %v4135 = vmax.f32 %v3653, %v3894
  %v4136 = vmax.f32 %v3654, %v3895
  %v4137 = vmax.f32 %v3655, %v3896
  %v4138 = vmax.f32 %v3656, %v3897
  %v4139 = vmax.f32 %v3657, %v3898
  %v4140 = vmax.f32 %v3658, %v3899
  %v4141 = vmax.f32 %v3659, %v3900
  %v4142 = vmax.f32 %v3660, %v3901
  %v4143 = vmax.f32 %v3661, %v3902
  %v4144 = vmax.f32 %v3662, %v3903
  %v4145 = vmax.f32 %v3663, %v3904
  %v4146 = vmax.f32 %v3664, %v3905
  %v4147 = vmax.f32 %v3665, %v3906
  %v4148 = vmax.f32 %v3666, %v3907
  %v4149 = vmax.f32 %v3667, %v3908
  %v4150 = vmax.f32 %v3668, %v3909
  %v4151 = vmax.f32 %v3669, %v3910
  %v4152 = vmax.f32 %v3670, %v3911
  %v4153 = vmax.f32 %v3671, %v3912
  %v4154 = vmax.f32 %v3672, %v3913
  %v4155 = vmax.f32 %v3673, %v3914
  %v4156 = vmax.f32 %v3674, %v3915
  %v4157 = vmax.f32 %v3675, %v3916
  %v4158 = vmax.f32 %v3676, %v3917
  %v4159 = vmax.f32 %v3677, %v3918
  %v4160 = vmax.f32 %v3678, %v3919
  %v4161 = vmax.f32 %v3679, %v3920
  %v4162 = vmax.f32 %v3680, %v3921
  %v4163 = vmax.f32 %v3681, %v3922
  %v4164 = vmax.f32 %v3682, %v3923
  %v4165 = vmax.f32 %v3683, %v3924
  %v4166 = vmax.f32 %v3684, %v3925
  %v4167 = vmax.f32 %v3685, %v3926
  %v4168 = vmax.f32 %v3686, %v3927
  %v4169 = vmax.f32 %v3687, %v3928
  %v4170 = vmax.f32 %v3688, %v3929
  %v4171 = vmax.f32 %v3689, %v3930
  %v4172 = vmax.f32 %v3690, %v3931
  %v4173 = vmax.f32 %v3691, %v3932
  %v4174 = vmax.f32 %v3692, %v3933
  %v4175 = vmax.f32 %v3693, %v3934
  %v4176 = vmax.f32 %v3694, %v3935
  %v4177 = vmax.f32 %v3695, %v3936
  %v4178 = vmax.f32 %v3696, %v3937
  %v4179 = vmax.f32 %v3697, %v3938
  %v4180 = vmax.f32 %v3698, %v3939
  %v4181 = vmax.f32 %v3699, %v3940
  %v4182 = vmax.f32 %v3700, %v3941
  %v4183 = vmax.f32 %v3701, %v3942
  %v4184 = vmax.f32 %v3702, %v3943
  %v4185 = vmax.f32 %v3703, %v3944
  %v4186 = vmax.f32 %v3704, %v3945
  %v4187 = vmax.f32 %v3705, %v3946
  %v4188 = vmax.f32 %v3706, %v3947
  %v4189 = vmax.f32 %v3707, %v3948
  %v4190 = vmax.f32 %v3708, %v3949
  %v4191 = vmax.f32 %v3709, %v3950
  %v4192 = vmax.f32 %v3710, %v3951
  %v4193 = vmax.f32 %v3711, %v3952
  %v4194 = vmax.f32 %v3712, %v3953
  %v4195 = vmax.f32 %v3713, %v3954
  %v4196 = vmax.f32 %v3714, %v3955
  %v4197 = vmax.f32 %v3715, %v3956
  %v4198 = vmax.f32 %v3716, %v3957
  %v4199 = vmax.f32 %v3717, %v3958
  %v4200 = vmax.f32 %v3718, %v3959
  %v4201 = vmax.f32 %v3719, %v3960
  %v4202 = vmax.f32 %v3720, %v3961
  %v4203 = vmax.f32 %v3721, %v3962
  %v4204 = vmax.f32 %v3722, %v3963
  %v4205 = vmax.f32 %v3723, %v3964
  %v4206 = vmax.f32 %v3724, %v3965
  %v4207 = vmax.f32 %v3725, %v3966
  %v4208 = vmax.f32 %v3726, %v3967
  %v4209 = vmax.f32 %v3727, %v3968
  %v4210 = vmax.f32 %v3728, %v3969
  %v4211 = vmax.f32 %v3729, %v3970
  %v4212 = vmax.f32 %v3730, %v3971
  %v4213 = vmax.f32 %v3731, %v3972
  %v4214 = vmax.f32 %v3732, %v3973
  %v4215 = vmax.f32 %v3733, %v3974
  %v4216 = vmax.f32 %v3734, %v3975
  %v4217 = vmax.f32 %v3735, %v3976
  %v4218 = vmax.f32 %v3736, %v3977
  %v4219 = vmax.f32 %v3737, %v3978
  %v4220 = vmax.f32 %v3738, %v3979
  %v4221 = vmax.f32 %v3739, %v3980
  %v4222 = vmax.f32 %v3740, %v3981
  %v4223 = vmax.f32 %v3741, %v3982
  %v4224 = vmax.f32 %v3742, %v3983
  %v4225 = vmax.f32 %v3743, %v3984
  %v4226 = vmax.f32 %v3744, %v3985
  %v4227 = vmax.f32 %v3745, %v3986
  %v4228 = vmax.f32 %v3746, %v3987
  %v4229 = vmax.f32 %v3747, %v3988
  %v4230 = vmax.f32 %v3748, %v3989
  %v4231 = vmax.f32 %v3749, %v3990
  %v4232 = vmax.f32 %v3750, %v3991
  %v4233 = vmax.f32 %v3751, %v3992
  %v4234 = vmax.f32 %v3752, %v3993
  %v4235 = vmax.f32 %v3753, %v3994
  %v4236 = vmax.f32 %v3754, %v3995
  %v4237 = vmax.f32 %v3755, %v3996
  %v4238 = vmax.f32 %v3756, %v3997
  %v4239 = vmax.f32 %v3757, %v3998
  %v4240 = vmax.f32 %v3758, %v3999
  %v4241 = vmax.f32 %v3759, %v4000
  %v4242 = vmax.f32 %v3760, %v4001
  %v4243 = vmax.f32 %v3761, %v4002
  %v4244 = vmax.f32 %v3762, %v4003
  %v4245 = vmax.f32 %v3763, %v4004
  %v4246 = vmax.f32 %v3764, %v4005
  %v4247 = vmax.f32 %v3765, %v4006
  %v4248 = vmax.f32 %v3766, %v4007
  %v4249 = vmax.f32 %v3767, %v4008
  %v4250 = vmax.f32 %v3768, %v4009
  %v4251 = vmax.f32 %v3769, %v4010
  %v4252 = vmax.f32 %v3770, %v4011
  %v4253 = vmax.f32 %v3771, %v4012
  %v4254 = vmax.f32 %v3772, %v4013
  %v4255 = vmax.f32 %v3773, %v4014
  %v4256 = vmax.f32 %v3774, %v4015
  %v4257 = vmax.f32 %v3775, %v4016
  %v4258 = vmax.f32 %v3776, %v4017
  %v4259 = vmax.f32 %v3777, %v4018
  %v4260 = vmax.f32 %v3778, %v4019
  %v4261 = vmax.f32 %v3779, %v4020
  %v4262 = vmax.f32 %v3780, %v4021
  %v4263 = vmax.f32 %v3781, %v4022
  %v4264 = vmax.f32 %v3782, %v4023
  %v4265 = vmax.f32 %v3783, %v4024
  %v4266 = vmax.f32 %v3784, %v4025
  %v4267 = vmax.f32 %v3785, %v4026
  %v4268 = vmax.f32 %v3786, %v4027
  %v4269 = vmax.f32 %v3787, %v4028
  %v4270 = vmax.f32 %v3788, %v4029
  %v4271 = vmax.f32 %v3789, %v4030
  %v4272 = vmax.f32 %v3790, %v4031
  %v4273 = vmax.f32 %v3791, %v4032
  %v4274 = vmax.f32 %v3792, %v4033
  %v4275 = vmax.f32 %v3793, %v4034
  %v4276 = vmax.f32 %v3794, %v4035
  %v4277 = vmax.f32 %v3795, %v4036
  %v4278 = vmax.f32 %v3796, %v4037
  %v4279 = vmax.f32 %v3797, %v4038
  %v4280 = vmax.f32 %v3798, %v4039
  %v4281 = vmax.f32 %v3799, %v4040
  %v4282 = vmax.f32 %v3800, %v4041
  %v4283 = vmax.f32 %v3801, %v4042
  %v4284 = vmax.f32 %v3802, %v4043
  %v4285 = vmax.f32 %v3803, %v4044
  %v4286 = vmax.f32 %v3804, %v4045
  %v4287 = vmax.f32 %v3805, %v4046
  %v4288 = vmax.f32 %v3806, %v4047
  %v4289 = vmax.f32 %v3807, %v4048
  %v4290 = vmax.f32 %v3808, %v4049
  %v4291 = vmax.f32 %v3809, %v4050
  %v4292 = vmax.f32 %v3810, %v4051
  %v4293 = vmax.f32 %v3811, %v4052
  %v4294 = vmax.f32 %v3812, %v4053
  %v4295 = vmax.f32 %v3813, %v4054
  %v4296 = vmax.f32 %v3814, %v4055
  %v4297 = vmax.f32 %v3815, %v4056
  %v4298 = vmax.f32 %v3816, %v4057
  %v4299 = vmax.f32 %v3817, %v4058
  %v4300 = vmax.f32 %v3818, %v4059
  %v4301 = vmax.f32 %v3819, %v4060
  %v4302 = vmax.f32 %v3820, %v4061
  %v4303 = vmax.f32 %v3821, %v4062
  %v4304 = vmax.f32 %v3822, %v4063
  %v4305 = vmax.f32 %v3823, %v4064
  %v4306 = vmax.f32 %v3824, %v4065
  %v4307 = vmax.f32 %v3825, %v4066
  %v4308 = vmax.f32 %v3826, %v4067
  %v4309 = vmax.f32 %v3827, %v4068
  %v4310 = vmax.f32 %v3828, %v4069
  %v4311 = vmax.f32 %v3829, %v4070
  %v4312 = vmax.f32 %v3830, %v4071
  %v4313 = vmax.f32 %v3831, %v4072
  %v4314 = vpack.c.bf16 %v4073, %v4073
  %v4315 = vpack.c.bf16 %v4074, %v4074
  %v4316 = vpack.c.bf16 %v4075, %v4075
  %v4317 = vpack.c.bf16 %v4076, %v4076
  %v4318 = vpack.c.bf16 %v4077, %v4077
  %v4319 = vpack.c.bf16 %v4078, %v4078
  %v4320 = vpack.c.bf16 %v4079, %v4079
  %v4321 = vpack.c.bf16 %v4080, %v4080
  %v4322 = vpack.c.bf16 %v4081, %v4081
  %v4323 = vpack.c.bf16 %v4082, %v4082
  %v4324 = vpack.c.bf16 %v4083, %v4083
  %v4325 = vpack.c.bf16 %v4084, %v4084
  %v4326 = vpack.c.bf16 %v4085, %v4085
  %v4327 = vpack.c.bf16 %v4086, %v4086
  %v4328 = vpack.c.bf16 %v4087, %v4087
  %v4329 = vpack.c.bf16 %v4088, %v4088
  %v4330 = vpack.c.bf16 %v4089, %v4089
  %v4331 = vpack.c.bf16 %v4090, %v4090
  %v4332 = vpack.c.bf16 %v4091, %v4091
  %v4333 = vpack.c.bf16 %v4092, %v4092
  %v4334 = vpack.c.bf16 %v4093, %v4093
  %v4335 = vpack.c.bf16 %v4094, %v4094
  %v4336 = vpack.c.bf16 %v4095, %v4095
  %v4337 = vpack.c.bf16 %v4096, %v4096
  %v4338 = vpack.c.bf16 %v4097, %v4097
  %v4339 = vpack.c.bf16 %v4098, %v4098
  %v4340 = vpack.c.bf16 %v4099, %v4099
  %v4341 = vpack.c.bf16 %v4100, %v4100
  %v4342 = vpack.c.bf16 %v4101, %v4101
  %v4343 = vpack.c.bf16 %v4102, %v4102
  %v4344 = vpack.c.bf16 %v4103, %v4103
  %v4345 = vpack.c.bf16 %v4104, %v4104
  %v4346 = vpack.c.bf16 %v4105, %v4105
  %v4347 = vpack.c.bf16 %v4106, %v4106
  %v4348 = vpack.c.bf16 %v4107, %v4107
  %v4349 = vpack.c.bf16 %v4108, %v4108
  %v4350 = vpack.c.bf16 %v4109, %v4109
  %v4351 = vpack.c.bf16 %v4110, %v4110
  %v4352 = vpack.c.bf16 %v4111, %v4111
  %v4353 = vpack.c.bf16 %v4112, %v4112
  %v4354 = vpack.c.bf16 %v4113, %v4113
  %v4355 = vpack.c.bf16 %v4114, %v4114
  %v4356 = vpack.c.bf16 %v4115, %v4115
  %v4357 = vpack.c.bf16 %v4116, %v4116
  %v4358 = vpack.c.bf16 %v4117, %v4117
  %v4359 = vpack.c.bf16 %v4118, %v4118
  %v4360 = vpack.c.bf16 %v4119, %v4119
  %v4361 = vpack.c.bf16 %v4120, %v4120
  %v4362 = vpack.c.bf16 %v4121, %v4121
  %v4363 = vpack.c.bf16 %v4122, %v4122
  %v4364 = vpack.c.bf16 %v4123, %v4123
  %v4365 = vpack.c.bf16 %v4124, %v4124
  %v4366 = vpack.c.bf16 %v4125, %v4125
  %v4367 = vpack.c.bf16 %v4126, %v4126
  %v4368 = vpack.c.bf16 %v4127, %v4127
  %v4369 = vpack.c.bf16 %v4128, %v4128
  %v4370 = vpack.c.bf16 %v4129, %v4129
  %v4371 = vpack.c.bf16 %v4130, %v4130
  %v4372 = vpack.c.bf16 %v4131, %v4131
  %v4373 = vpack.c.bf16 %v4132, %v4132
  %v4374 = vpack.c.bf16 %v4133, %v4133
  %v4375 = vpack.c.bf16 %v4134, %v4134
  %v4376 = vpack.c.bf16 %v4135, %v4135
  %v4377 = vpack.c.bf16 %v4136, %v4136
  %v4378 = vpack.c.bf16 %v4137, %v4137
  %v4379 = vpack.c.bf16 %v4138, %v4138
  %v4380 = vpack.c.bf16 %v4139, %v4139
  %v4381 = vpack.c.bf16 %v4140, %v4140
  %v4382 = vpack.c.bf16 %v4141, %v4141
  %v4383 = vpack.c.bf16 %v4142, %v4142
  %v4384 = vpack.c.bf16 %v4143, %v4143
  %v4385 = vpack.c.bf16 %v4144, %v4144
  %v4386 = vpack.c.bf16 %v4145, %v4145
  %v4387 = vpack.c.bf16 %v4146, %v4146
  %v4388 = vpack.c.bf16 %v4147, %v4147
  %v4389 = vpack.c.bf16 %v4148, %v4148
  %v4390 = vpack.c.bf16 %v4149, %v4149
  %v4391 = vpack.c.bf16 %v4150, %v4150
  %v4392 = vpack.c.bf16 %v4151, %v4151
  %v4393 = vpack.c.bf16 %v4152, %v4152
  %v4394 = vpack.c.bf16 %v4153, %v4153
  %v4395 = vpack.c.bf16 %v4154, %v4154
  %v4396 = vpack.c.bf16 %v4155, %v4155
  %v4397 = vpack.c.bf16 %v4156, %v4156
  %v4398 = vpack.c.bf16 %v4157, %v4157
  %v4399 = vpack.c.bf16 %v4158, %v4158
  %v4400 = vpack.c.bf16 %v4159, %v4159
  %v4401 = vpack.c.bf16 %v4160, %v4160
  %v4402 = vpack.c.bf16 %v4161, %v4161
  %v4403 = vpack.c.bf16 %v4162, %v4162
  %v4404 = vpack.c.bf16 %v4163, %v4163
  %v4405 = vpack.c.bf16 %v4164, %v4164
  %v4406 = vpack.c.bf16 %v4165, %v4165
  %v4407 = vpack.c.bf16 %v4166, %v4166
  %v4408 = vpack.c.bf16 %v4167, %v4167
  %v4409 = vpack.c.bf16 %v4168, %v4168
  %v4410 = vpack.c.bf16 %v4169, %v4169
  %v4411 = vpack.c.bf16 %v4170, %v4170
  %v4412 = vpack.c.bf16 %v4171, %v4171
  %v4413 = vpack.c.bf16 %v4172, %v4172
  %v4414 = vpack.c.bf16 %v4173, %v4173
  %v4415 = vpack.c.bf16 %v4174, %v4174
  %v4416 = vpack.c.bf16 %v4175, %v4175
  %v4417 = vpack.c.bf16 %v4176, %v4176
  %v4418 = vpack.c.bf16 %v4177, %v4177
  %v4419 = vpack.c.bf16 %v4178, %v4178
  %v4420 = vpack.c.bf16 %v4179, %v4179
  %v4421 = vpack.c.bf16 %v4180, %v4180
  %v4422 = vpack.c.bf16 %v4181, %v4181
  %v4423 = vpack.c.bf16 %v4182, %v4182
  %v4424 = vpack.c.bf16 %v4183, %v4183
  %v4425 = vpack.c.bf16 %v4184, %v4184
  %v4426 = vpack.c.bf16 %v4185, %v4185
  %v4427 = vpack.c.bf16 %v4186, %v4186
  %v4428 = vpack.c.bf16 %v4187, %v4187
  %v4429 = vpack.c.bf16 %v4188, %v4188
  %v4430 = vpack.c.bf16 %v4189, %v4189
  %v4431 = vpack.c.bf16 %v4190, %v4190
  %v4432 = vpack.c.bf16 %v4191, %v4191
  %v4433 = vpack.c.bf16 %v4192, %v4192
  %v4434 = vpack.c.bf16 %v4193, %v4193
  %v4435 = vpack.c.bf16 %v4194, %v4194
  %v4436 = vpack.c.bf16 %v4195, %v4195
  %v4437 = vpack.c.bf16 %v4196, %v4196
  %v4438 = vpack.c.bf16 %v4197, %v4197
  %v4439 = vpack.c.bf16 %v4198, %v4198
  %v4440 = vpack.c.bf16 %v4199, %v4199
  %v4441 = vpack.c.bf16 %v4200, %v4200
  %v4442 = vpack.c.bf16 %v4201, %v4201
  %v4443 = vpack.c.bf16 %v4202, %v4202
  %v4444 = vpack.c.bf16 %v4203, %v4203
  %v4445 = vpack.c.bf16 %v4204, %v4204
  %v4446 = vpack.c.bf16 %v4205, %v4205
  %v4447 = vpack.c.bf16 %v4206, %v4206
  %v4448 = vpack.c.bf16 %v4207, %v4207
  %v4449 = vpack.c.bf16 %v4208, %v4208
  %v4450 = vpack.c.bf16 %v4209, %v4209
  %v4451 = vpack.c.bf16 %v4210, %v4210
  %v4452 = vpack.c.bf16 %v4211, %v4211
  %v4453 = vpack.c.bf16 %v4212, %v4212
  %v4454 = vpack.c.bf16 %v4213, %v4213
  %v4455 = vpack.c.bf16 %v4214, %v4214
  %v4456 = vpack.c.bf16 %v4215, %v4215
  %v4457 = vpack.c.bf16 %v4216, %v4216
  %v4458 = vpack.c.bf16 %v4217, %v4217
  %v4459 = vpack.c.bf16 %v4218, %v4218
  %v4460 = vpack.c.bf16 %v4219, %v4219
  %v4461 = vpack.c.bf16 %v4220, %v4220
  %v4462 = vpack.c.bf16 %v4221, %v4221
  %v4463 = vpack.c.bf16 %v4222, %v4222
  %v4464 = vpack.c.bf16 %v4223, %v4223
  %v4465 = vpack.c.bf16 %v4224, %v4224
  %v4466 = vpack.c.bf16 %v4225, %v4225
  %v4467 = vpack.c.bf16 %v4226, %v4226
  %v4468 = vpack.c.bf16 %v4227, %v4227
  %v4469 = vpack.c.bf16 %v4228, %v4228
  %v4470 = vpack.c.bf16 %v4229, %v4229
  %v4471 = vpack.c.bf16 %v4230, %v4230
  %v4472 = vpack.c.bf16 %v4231, %v4231
  %v4473 = vpack.c.bf16 %v4232, %v4232
  %v4474 = vpack.c.bf16 %v4233, %v4233
  %v4475 = vpack.c.bf16 %v4234, %v4234
  %v4476 = vpack.c.bf16 %v4235, %v4235
  %v4477 = vpack.c.bf16 %v4236, %v4236
  %v4478 = vpack.c.bf16 %v4237, %v4237
  %v4479 = vpack.c.bf16 %v4238, %v4238
  %v4480 = vpack.c.bf16 %v4239, %v4239
  %v4481 = vpack.c.bf16 %v4240, %v4240
  %v4482 = vpack.c.bf16 %v4241, %v4241
  %v4483 = vpack.c.bf16 %v4242, %v4242
  %v4484 = vpack.c.bf16 %v4243, %v4243
  %v4485 = vpack.c.bf16 %v4244, %v4244
  %v4486 = vpack.c.bf16 %v4245, %v4245
  %v4487 = vpack.c.bf16 %v4246, %v4246
  %v4488 = vpack.c.bf16 %v4247, %v4247
  %v4489 = vpack.c.bf16 %v4248, %v4248
  %v4490 = vpack.c.bf16 %v4249, %v4249
  %v4491 = vpack.c.bf16 %v4250, %v4250
  %v4492 = vpack.c.bf16 %v4251, %v4251
  %v4493 = vpack.c.bf16 %v4252, %v4252
  %v4494 = vpack.c.bf16 %v4253, %v4253
  %v4495 = vpack.c.bf16 %v4254, %v4254
  %v4496 = vpack.c.bf16 %v4255, %v4255
  %v4497 = vpack.c.bf16 %v4256, %v4256
  %v4498 = vpack.c.bf16 %v4257, %v4257
  %v4499 = vpack.c.bf16 %v4258, %v4258
  %v4500 = vpack.c.bf16 %v4259, %v4259
  %v4501 = vpack.c.bf16 %v4260, %v4260
  %v4502 = vpack.c.bf16 %v4261, %v4261
  %v4503 = vpack.c.bf16 %v4262, %v4262
  %v4504 = vpack.c.bf16 %v4263, %v4263
  %v4505 = vpack.c.bf16 %v4264, %v4264
  %v4506 = vpack.c.bf16 %v4265, %v4265
  %v4507 = vpack.c.bf16 %v4266, %v4266
  %v4508 = vpack.c.bf16 %v4267, %v4267
  %v4509 = vpack.c.bf16 %v4268, %v4268
  %v4510 = vpack.c.bf16 %v4269, %v4269
  %v4511 = vpack.c.bf16 %v4270, %v4270
  %v4512 = vpack.c.bf16 %v4271, %v4271
  %v4513 = vpack.c.bf16 %v4272, %v4272
  %v4514 = vpack.c.bf16 %v4273, %v4273
  %v4515 = vpack.c.bf16 %v4274, %v4274
  %v4516 = vpack.c.bf16 %v4275, %v4275
  %v4517 = vpack.c.bf16 %v4276, %v4276
  %v4518 = vpack.c.bf16 %v4277, %v4277
  %v4519 = vpack.c.bf16 %v4278, %v4278
  %v4520 = vpack.c.bf16 %v4279, %v4279
  %v4521 = vpack.c.bf16 %v4280, %v4280
  %v4522 = vpack.c.bf16 %v4281, %v4281
  %v4523 = vpack.c.bf16 %v4282, %v4282
  %v4524 = vpack.c.bf16 %v4283, %v4283
  %v4525 = vpack.c.bf16 %v4284, %v4284
  %v4526 = vpack.c.bf16 %v4285, %v4285
  %v4527 = vpack.c.bf16 %v4286, %v4286
  %v4528 = vpack.c.bf16 %v4287, %v4287
  %v4529 = vpack.c.bf16 %v4288, %v4288
  %v4530 = vpack.c.bf16 %v4289, %v4289
  %v4531 = vpack.c.bf16 %v4290, %v4290
  %v4532 = vpack.c.bf16 %v4291, %v4291
  %v4533 = vpack.c.bf16 %v4292, %v4292
  %v4534 = vpack.c.bf16 %v4293, %v4293
  %v4535 = vpack.c.bf16 %v4294, %v4294
  %v4536 = vpack.c.bf16 %v4295, %v4295
  %v4537 = vpack.c.bf16 %v4296, %v4296
  %v4538 = vpack.c.bf16 %v4297, %v4297
  %v4539 = vpack.c.bf16 %v4298, %v4298
  %v4540 = vpack.c.bf16 %v4299, %v4299
  %v4541 = vpack.c.bf16 %v4300, %v4300
  %v4542 = vpack.c.bf16 %v4301, %v4301
  %v4543 = vpack.c.bf16 %v4302, %v4302
  %v4544 = vpack.c.bf16 %v4303, %v4303
  %v4545 = vpack.c.bf16 %v4304, %v4304
  %v4546 = vpack.c.bf16 %v4305, %v4305
  %v4547 = vpack.c.bf16 %v4306, %v4306
  %v4548 = vpack.c.bf16 %v4307, %v4307
  %v4549 = vpack.c.bf16 %v4308, %v4308
  %v4550 = vpack.c.bf16 %v4309, %v4309
  %v4551 = vpack.c.bf16 %v4310, %v4310
  %v4552 = vpack.c.bf16 %v4311, %v4311
  %v4553 = vpack.c.bf16 %v4312, %v4312
  %v4554 = vpack.c.bf16 %v4313, %v4313
  %vm4555 = vcmask 125952
  %4556 = vst.msk [vmem:[%s4] sm:$0xf] %vm4555, %v4314
  %4557 = vst.msk [vmem:[%s4 + $0x4] sm:$0xf] %vm4555, %v4315
  %4558 = vst.msk [vmem:[%s4 + $0x8] sm:$0xf] %vm4555, %v4316
  %4559 = vst.msk [vmem:[%s4 + $0xc] sm:$0xf] %vm4555, %v4317
  %4560 = vst.msk [vmem:[%s4 + $0x10] sm:$0xf] %vm4555, %v4318
  %4561 = vst.msk [vmem:[%s4 + $0x14] sm:$0xf] %vm4555, %v4319
  %4562 = vst.msk [vmem:[%s4 + $0x18] sm:$0xf] %vm4555, %v4320
  %4563 = vst.msk [vmem:[%s4 + $0x1c] sm:$0xf] %vm4555, %v4321
  %4564 = vst.msk [vmem:[%s4 + $0x20] sm:$0xf] %vm4555, %v4322
  %4565 = vst.msk [vmem:[%s4 + $0x24] sm:$0xf] %vm4555, %v4323
  %4566 = vst.msk [vmem:[%s4 + $0x28] sm:$0xf] %vm4555, %v4324
  %4567 = vst.msk [vmem:[%s4 + $0x2c] sm:$0xf] %vm4555, %v4325
  %4568 = vst.msk [vmem:[%s4 + $0x30] sm:$0xf] %vm4555, %v4326
  %4569 = vst.msk [vmem:[%s4 + $0x34] sm:$0xf] %vm4555, %v4327
  %4570 = vst.msk [vmem:[%s4 + $0x38] sm:$0xf] %vm4555, %v4328
  %4571 = vst.msk [vmem:[%s4 + $0x3c] sm:$0xf] %vm4555, %v4329
  %4572 = vst.msk [vmem:[%s4 + $0x40] sm:$0xf] %vm4555, %v4330
  %4573 = vst.msk [vmem:[%s4 + $0x44] sm:$0xf] %vm4555, %v4331
  %4574 = vst.msk [vmem:[%s4 + $0x48] sm:$0xf] %vm4555, %v4332
  %4575 = vst.msk [vmem:[%s4 + $0x4c] sm:$0xf] %vm4555, %v4333
  %4576 = vst.msk [vmem:[%s4 + $0x50] sm:$0xf] %vm4555, %v4334
  %4577 = vst.msk [vmem:[%s4 + $0x54] sm:$0xf] %vm4555, %v4335
  %4578 = vst.msk [vmem:[%s4 + $0x58] sm:$0xf] %vm4555, %v4336
  %4579 = vst.msk [vmem:[%s4 + $0x5c] sm:$0xf] %vm4555, %v4337
  %4580 = vst.msk [vmem:[%s4 + $0x60] sm:$0xf] %vm4555, %v4338
  %4581 = vst.msk [vmem:[%s4 + $0x64] sm:$0xf] %vm4555, %v4339
  %4582 = vst.msk [vmem:[%s4 + $0x68] sm:$0xf] %vm4555, %v4340
  %4583 = vst.msk [vmem:[%s4 + $0x6c] sm:$0xf] %vm4555, %v4341
  %4584 = vst.msk [vmem:[%s4 + $0x70] sm:$0xf] %vm4555, %v4342
  %4585 = vst.msk [vmem:[%s4 + $0x74] sm:$0xf] %vm4555, %v4343
  %4586 = vst.msk [vmem:[%s4 + $0x78] sm:$0xf] %vm4555, %v4344
  %4587 = vst.msk [vmem:[%s4 + $0x7c] sm:$0xf] %vm4555, %v4345
  %4588 = vst.msk [vmem:[%s4 + $0x80] sm:$0xf] %vm4555, %v4346
  %4589 = vst.msk [vmem:[%s4 + $0x84] sm:$0xf] %vm4555, %v4347
  %4590 = vst.msk [vmem:[%s4 + $0x88] sm:$0xf] %vm4555, %v4348
  %4591 = vst.msk [vmem:[%s4 + $0x8c] sm:$0xf] %vm4555, %v4349
  %4592 = vst.msk [vmem:[%s4 + $0x90] sm:$0xf] %vm4555, %v4350
  %4593 = vst.msk [vmem:[%s4 + $0x94] sm:$0xf] %vm4555, %v4351
  %4594 = vst.msk [vmem:[%s4 + $0x98] sm:$0xf] %vm4555, %v4352
  %4595 = vst.msk [vmem:[%s4 + $0x9c] sm:$0xf] %vm4555, %v4353
  %4596 = vst.msk [vmem:[%s4 + $0xa0] sm:$0xf] %vm4555, %v4354
  %4597 = vst.msk [vmem:[%s4 + $0xa4] sm:$0xf] %vm4555, %v4355
  %4598 = vst.msk [vmem:[%s4 + $0xa8] sm:$0xf] %vm4555, %v4356
  %4599 = vst.msk [vmem:[%s4 + $0xac] sm:$0xf] %vm4555, %v4357
  %4600 = vst.msk [vmem:[%s4 + $0xb0] sm:$0xf] %vm4555, %v4358
  %4601 = vst.msk [vmem:[%s4 + $0xb4] sm:$0xf] %vm4555, %v4359
  %4602 = vst.msk [vmem:[%s4 + $0xb8] sm:$0xf] %vm4555, %v4360
  %4603 = vst.msk [vmem:[%s4 + $0xbc] sm:$0xf] %vm4555, %v4361
  %4604 = vst.msk [vmem:[%s4 + $0xc0] sm:$0xf] %vm4555, %v4362
  %4605 = vst.msk [vmem:[%s4 + $0xc4] sm:$0xf] %vm4555, %v4363
  %4606 = vst.msk [vmem:[%s4 + $0xc8] sm:$0xf] %vm4555, %v4364
  %4607 = vst.msk [vmem:[%s4 + $0xcc] sm:$0xf] %vm4555, %v4365
  %4608 = vst.msk [vmem:[%s4 + $0xd0] sm:$0xf] %vm4555, %v4366
  %4609 = vst.msk [vmem:[%s4 + $0xd4] sm:$0xf] %vm4555, %v4367
  %4610 = vst.msk [vmem:[%s4 + $0xd8] sm:$0xf] %vm4555, %v4368
  %4611 = vst.msk [vmem:[%s4 + $0xdc] sm:$0xf] %vm4555, %v4369
  %4612 = vst.msk [vmem:[%s4 + $0xe0] sm:$0xf] %vm4555, %v4370
  %4613 = vst.msk [vmem:[%s4 + $0xe4] sm:$0xf] %vm4555, %v4371
  %4614 = vst.msk [vmem:[%s4 + $0xe8] sm:$0xf] %vm4555, %v4372
  %4615 = vst.msk [vmem:[%s4 + $0xec] sm:$0xf] %vm4555, %v4373
  %4616 = vst.msk [vmem:[%s4 + $0xf0] sm:$0xf] %vm4555, %v4374
  %4617 = vst.msk [vmem:[%s4 + $0xf4] sm:$0xf] %vm4555, %v4375
  %4618 = vst.msk [vmem:[%s4 + $0xf8] sm:$0xf] %vm4555, %v4376
  %4619 = vst.msk [vmem:[%s4 + $0xfc] sm:$0xf] %vm4555, %v4377
  %4620 = vst.msk [vmem:[%s4 + $0x100] sm:$0xf] %vm4555, %v4378
  %4621 = vst.msk [vmem:[%s4 + $0x104] sm:$0xf] %vm4555, %v4379
  %4622 = vst.msk [vmem:[%s4 + $0x108] sm:$0xf] %vm4555, %v4380
  %4623 = vst.msk [vmem:[%s4 + $0x10c] sm:$0xf] %vm4555, %v4381
  %4624 = vst.msk [vmem:[%s4 + $0x110] sm:$0xf] %vm4555, %v4382
  %4625 = vst.msk [vmem:[%s4 + $0x114] sm:$0xf] %vm4555, %v4383
  %4626 = vst.msk [vmem:[%s4 + $0x118] sm:$0xf] %vm4555, %v4384
  %4627 = vst.msk [vmem:[%s4 + $0x11c] sm:$0xf] %vm4555, %v4385
  %4628 = vst.msk [vmem:[%s4 + $0x120] sm:$0xf] %vm4555, %v4386
  %4629 = vst.msk [vmem:[%s4 + $0x124] sm:$0xf] %vm4555, %v4387
  %4630 = vst.msk [vmem:[%s4 + $0x128] sm:$0xf] %vm4555, %v4388
  %4631 = vst.msk [vmem:[%s4 + $0x12c] sm:$0xf] %vm4555, %v4389
  %4632 = vst.msk [vmem:[%s4 + $0x130] sm:$0xf] %vm4555, %v4390
  %4633 = vst.msk [vmem:[%s4 + $0x134] sm:$0xf] %vm4555, %v4391
  %4634 = vst.msk [vmem:[%s4 + $0x138] sm:$0xf] %vm4555, %v4392
  %4635 = vst.msk [vmem:[%s4 + $0x13c] sm:$0xf] %vm4555, %v4393
  %4636 = vst.msk [vmem:[%s4 + $0x140] sm:$0xf] %vm4555, %v4394
  %4637 = vst.msk [vmem:[%s4 + $0x144] sm:$0xf] %vm4555, %v4395
  %4638 = vst.msk [vmem:[%s4 + $0x148] sm:$0xf] %vm4555, %v4396
  %4639 = vst.msk [vmem:[%s4 + $0x14c] sm:$0xf] %vm4555, %v4397
  %4640 = vst.msk [vmem:[%s4 + $0x150] sm:$0xf] %vm4555, %v4398
  %4641 = vst.msk [vmem:[%s4 + $0x154] sm:$0xf] %vm4555, %v4399
  %4642 = vst.msk [vmem:[%s4 + $0x158] sm:$0xf] %vm4555, %v4400
  %4643 = vst.msk [vmem:[%s4 + $0x15c] sm:$0xf] %vm4555, %v4401
  %4644 = vst.msk [vmem:[%s4 + $0x160] sm:$0xf] %vm4555, %v4402
  %4645 = vst.msk [vmem:[%s4 + $0x164] sm:$0xf] %vm4555, %v4403
  %4646 = vst.msk [vmem:[%s4 + $0x168] sm:$0xf] %vm4555, %v4404
  %4647 = vst.msk [vmem:[%s4 + $0x16c] sm:$0xf] %vm4555, %v4405
  %4648 = vst.msk [vmem:[%s4 + $0x170] sm:$0xf] %vm4555, %v4406
  %4649 = vst.msk [vmem:[%s4 + $0x174] sm:$0xf] %vm4555, %v4407
  %4650 = vst.msk [vmem:[%s4 + $0x178] sm:$0xf] %vm4555, %v4408
  %4651 = vst.msk [vmem:[%s4 + $0x17c] sm:$0xf] %vm4555, %v4409
  %4652 = vst.msk [vmem:[%s4 + $0x180] sm:$0xf] %vm4555, %v4410
  %4653 = vst.msk [vmem:[%s4 + $0x184] sm:$0xf] %vm4555, %v4411
  %4654 = vst.msk [vmem:[%s4 + $0x188] sm:$0xf] %vm4555, %v4412
  %4655 = vst.msk [vmem:[%s4 + $0x18c] sm:$0xf] %vm4555, %v4413
  %4656 = vst.msk [vmem:[%s4 + $0x190] sm:$0xf] %vm4555, %v4414
  %4657 = vst.msk [vmem:[%s4 + $0x194] sm:$0xf] %vm4555, %v4415
  %4658 = vst.msk [vmem:[%s4 + $0x198] sm:$0xf] %vm4555, %v4416
  %4659 = vst.msk [vmem:[%s4 + $0x19c] sm:$0xf] %vm4555, %v4417
  %4660 = vst.msk [vmem:[%s4 + $0x1a0] sm:$0xf] %vm4555, %v4418
  %4661 = vst.msk [vmem:[%s4 + $0x1a4] sm:$0xf] %vm4555, %v4419
  %4662 = vst.msk [vmem:[%s4 + $0x1a8] sm:$0xf] %vm4555, %v4420
  %4663 = vst.msk [vmem:[%s4 + $0x1ac] sm:$0xf] %vm4555, %v4421
  %4664 = vst.msk [vmem:[%s4 + $0x1b0] sm:$0xf] %vm4555, %v4422
  %4665 = vst.msk [vmem:[%s4 + $0x1b4] sm:$0xf] %vm4555, %v4423
  %4666 = vst.msk [vmem:[%s4 + $0x1b8] sm:$0xf] %vm4555, %v4424
  %4667 = vst.msk [vmem:[%s4 + $0x1bc] sm:$0xf] %vm4555, %v4425
  %4668 = vst.msk [vmem:[%s4 + $0x1c0] sm:$0xf] %vm4555, %v4426
  %4669 = vst.msk [vmem:[%s4 + $0x1c4] sm:$0xf] %vm4555, %v4427
  %4670 = vst.msk [vmem:[%s4 + $0x1c8] sm:$0xf] %vm4555, %v4428
  %4671 = vst.msk [vmem:[%s4 + $0x1cc] sm:$0xf] %vm4555, %v4429
  %4672 = vst.msk [vmem:[%s4 + $0x1d0] sm:$0xf] %vm4555, %v4430
  %4673 = vst.msk [vmem:[%s4 + $0x1d4] sm:$0xf] %vm4555, %v4431
  %4674 = vst.msk [vmem:[%s4 + $0x1d8] sm:$0xf] %vm4555, %v4432
  %4675 = vst.msk [vmem:[%s4 + $0x1dc] sm:$0xf] %vm4555, %v4433
  %4676 = vst.msk [vmem:[%s4 + $0x1e0] sm:$0xf] %vm4555, %v4434
  %4677 = vst.msk [vmem:[%s4 + $0x1e4] sm:$0xf] %vm4555, %v4435
  %4678 = vst.msk [vmem:[%s4 + $0x1e8] sm:$0xf] %vm4555, %v4436
  %4679 = vst.msk [vmem:[%s4 + $0x1ec] sm:$0xf] %vm4555, %v4437
  %4680 = vst.msk [vmem:[%s4 + $0x1f0] sm:$0xf] %vm4555, %v4438
  %4681 = vst.msk [vmem:[%s4 + $0x1f4] sm:$0xf] %vm4555, %v4439
  %4682 = vst.msk [vmem:[%s4 + $0x1f8] sm:$0xf] %vm4555, %v4440
  %4683 = vst.msk [vmem:[%s4 + $0x1fc] sm:$0xf] %vm4555, %v4441
  %4684 = vst.msk [vmem:[%s4 + $0x200] sm:$0xf] %vm4555, %v4442
  %4685 = vst.msk [vmem:[%s4 + $0x204] sm:$0xf] %vm4555, %v4443
  %4686 = vst.msk [vmem:[%s4 + $0x208] sm:$0xf] %vm4555, %v4444
  %4687 = vst.msk [vmem:[%s4 + $0x20c] sm:$0xf] %vm4555, %v4445
  %4688 = vst.msk [vmem:[%s4 + $0x210] sm:$0xf] %vm4555, %v4446
  %4689 = vst.msk [vmem:[%s4 + $0x214] sm:$0xf] %vm4555, %v4447
  %4690 = vst.msk [vmem:[%s4 + $0x218] sm:$0xf] %vm4555, %v4448
  %4691 = vst.msk [vmem:[%s4 + $0x21c] sm:$0xf] %vm4555, %v4449
  %4692 = vst.msk [vmem:[%s4 + $0x220] sm:$0xf] %vm4555, %v4450
  %4693 = vst.msk [vmem:[%s4 + $0x224] sm:$0xf] %vm4555, %v4451
  %4694 = vst.msk [vmem:[%s4 + $0x228] sm:$0xf] %vm4555, %v4452
  %4695 = vst.msk [vmem:[%s4 + $0x22c] sm:$0xf] %vm4555, %v4453
  %4696 = vst.msk [vmem:[%s4 + $0x230] sm:$0xf] %vm4555, %v4454
  %4697 = vst.msk [vmem:[%s4 + $0x234] sm:$0xf] %vm4555, %v4455
  %4698 = vst.msk [vmem:[%s4 + $0x238] sm:$0xf] %vm4555, %v4456
  %4699 = vst.msk [vmem:[%s4 + $0x23c] sm:$0xf] %vm4555, %v4457
  %4700 = vst.msk [vmem:[%s4 + $0x240] sm:$0xf] %vm4555, %v4458
  %4701 = vst.msk [vmem:[%s4 + $0x244] sm:$0xf] %vm4555, %v4459
  %4702 = vst.msk [vmem:[%s4 + $0x248] sm:$0xf] %vm4555, %v4460
  %4703 = vst.msk [vmem:[%s4 + $0x24c] sm:$0xf] %vm4555, %v4461
  %4704 = vst.msk [vmem:[%s4 + $0x250] sm:$0xf] %vm4555, %v4462
  %4705 = vst.msk [vmem:[%s4 + $0x254] sm:$0xf] %vm4555, %v4463
  %4706 = vst.msk [vmem:[%s4 + $0x258] sm:$0xf] %vm4555, %v4464
  %4707 = vst.msk [vmem:[%s4 + $0x25c] sm:$0xf] %vm4555, %v4465
  %4708 = vst.msk [vmem:[%s4 + $0x260] sm:$0xf] %vm4555, %v4466
  %4709 = vst.msk [vmem:[%s4 + $0x264] sm:$0xf] %vm4555, %v4467
  %4710 = vst.msk [vmem:[%s4 + $0x268] sm:$0xf] %vm4555, %v4468
  %4711 = vst.msk [vmem:[%s4 + $0x26c] sm:$0xf] %vm4555, %v4469
  %4712 = vst.msk [vmem:[%s4 + $0x270] sm:$0xf] %vm4555, %v4470
  %4713 = vst.msk [vmem:[%s4 + $0x274] sm:$0xf] %vm4555, %v4471
  %4714 = vst.msk [vmem:[%s4 + $0x278] sm:$0xf] %vm4555, %v4472
  %4715 = vst.msk [vmem:[%s4 + $0x27c] sm:$0xf] %vm4555, %v4473
  %4716 = vst.msk [vmem:[%s4 + $0x280] sm:$0xf] %vm4555, %v4474
  %4717 = vst.msk [vmem:[%s4 + $0x284] sm:$0xf] %vm4555, %v4475
  %4718 = vst.msk [vmem:[%s4 + $0x288] sm:$0xf] %vm4555, %v4476
  %4719 = vst.msk [vmem:[%s4 + $0x28c] sm:$0xf] %vm4555, %v4477
  %4720 = vst.msk [vmem:[%s4 + $0x290] sm:$0xf] %vm4555, %v4478
  %4721 = vst.msk [vmem:[%s4 + $0x294] sm:$0xf] %vm4555, %v4479
  %4722 = vst.msk [vmem:[%s4 + $0x298] sm:$0xf] %vm4555, %v4480
  %4723 = vst.msk [vmem:[%s4 + $0x29c] sm:$0xf] %vm4555, %v4481
  %4724 = vst.msk [vmem:[%s4 + $0x2a0] sm:$0xf] %vm4555, %v4482
  %4725 = vst.msk [vmem:[%s4 + $0x2a4] sm:$0xf] %vm4555, %v4483
  %4726 = vst.msk [vmem:[%s4 + $0x2a8] sm:$0xf] %vm4555, %v4484
  %4727 = vst.msk [vmem:[%s4 + $0x2ac] sm:$0xf] %vm4555, %v4485
  %4728 = vst.msk [vmem:[%s4 + $0x2b0] sm:$0xf] %vm4555, %v4486
  %4729 = vst.msk [vmem:[%s4 + $0x2b4] sm:$0xf] %vm4555, %v4487
  %4730 = vst.msk [vmem:[%s4 + $0x2b8] sm:$0xf] %vm4555, %v4488
  %4731 = vst.msk [vmem:[%s4 + $0x2bc] sm:$0xf] %vm4555, %v4489
  %4732 = vst.msk [vmem:[%s4 + $0x2c0] sm:$0xf] %vm4555, %v4490
  %4733 = vst.msk [vmem:[%s4 + $0x2c4] sm:$0xf] %vm4555, %v4491
  %4734 = vst.msk [vmem:[%s4 + $0x2c8] sm:$0xf] %vm4555, %v4492
  %4735 = vst.msk [vmem:[%s4 + $0x2cc] sm:$0xf] %vm4555, %v4493
  %4736 = vst.msk [vmem:[%s4 + $0x2d0] sm:$0xf] %vm4555, %v4494
  %4737 = vst.msk [vmem:[%s4 + $0x2d4] sm:$0xf] %vm4555, %v4495
  %4738 = vst.msk [vmem:[%s4 + $0x2d8] sm:$0xf] %vm4555, %v4496
  %4739 = vst.msk [vmem:[%s4 + $0x2dc] sm:$0xf] %vm4555, %v4497
  %4740 = vst.msk [vmem:[%s4 + $0x2e0] sm:$0xf] %vm4555, %v4498
  %4741 = vst.msk [vmem:[%s4 + $0x2e4] sm:$0xf] %vm4555, %v4499
  %4742 = vst.msk [vmem:[%s4 + $0x2e8] sm:$0xf] %vm4555, %v4500
  %4743 = vst.msk [vmem:[%s4 + $0x2ec] sm:$0xf] %vm4555, %v4501
  %4744 = vst.msk [vmem:[%s4 + $0x2f0] sm:$0xf] %vm4555, %v4502
  %4745 = vst.msk [vmem:[%s4 + $0x2f4] sm:$0xf] %vm4555, %v4503
  %4746 = vst.msk [vmem:[%s4 + $0x2f8] sm:$0xf] %vm4555, %v4504
  %4747 = vst.msk [vmem:[%s4 + $0x2fc] sm:$0xf] %vm4555, %v4505
  %4748 = vst.msk [vmem:[%s4 + $0x300] sm:$0xf] %vm4555, %v4506
  %4749 = vst.msk [vmem:[%s4 + $0x304] sm:$0xf] %vm4555, %v4507
  %4750 = vst.msk [vmem:[%s4 + $0x308] sm:$0xf] %vm4555, %v4508
  %4751 = vst.msk [vmem:[%s4 + $0x30c] sm:$0xf] %vm4555, %v4509
  %4752 = vst.msk [vmem:[%s4 + $0x310] sm:$0xf] %vm4555, %v4510
  %4753 = vst.msk [vmem:[%s4 + $0x314] sm:$0xf] %vm4555, %v4511
  %4754 = vst.msk [vmem:[%s4 + $0x318] sm:$0xf] %vm4555, %v4512
  %4755 = vst.msk [vmem:[%s4 + $0x31c] sm:$0xf] %vm4555, %v4513
  %4756 = vst.msk [vmem:[%s4 + $0x320] sm:$0xf] %vm4555, %v4514
  %4757 = vst.msk [vmem:[%s4 + $0x324] sm:$0xf] %vm4555, %v4515
  %4758 = vst.msk [vmem:[%s4 + $0x328] sm:$0xf] %vm4555, %v4516
  %4759 = vst.msk [vmem:[%s4 + $0x32c] sm:$0xf] %vm4555, %v4517
  %4760 = vst.msk [vmem:[%s4 + $0x330] sm:$0xf] %vm4555, %v4518
  %4761 = vst.msk [vmem:[%s4 + $0x334] sm:$0xf] %vm4555, %v4519
  %4762 = vst.msk [vmem:[%s4 + $0x338] sm:$0xf] %vm4555, %v4520
  %4763 = vst.msk [vmem:[%s4 + $0x33c] sm:$0xf] %vm4555, %v4521
  %4764 = vst.msk [vmem:[%s4 + $0x340] sm:$0xf] %vm4555, %v4522
  %4765 = vst.msk [vmem:[%s4 + $0x344] sm:$0xf] %vm4555, %v4523
  %4766 = vst.msk [vmem:[%s4 + $0x348] sm:$0xf] %vm4555, %v4524
  %4767 = vst.msk [vmem:[%s4 + $0x34c] sm:$0xf] %vm4555, %v4525
  %4768 = vst.msk [vmem:[%s4 + $0x350] sm:$0xf] %vm4555, %v4526
  %4769 = vst.msk [vmem:[%s4 + $0x354] sm:$0xf] %vm4555, %v4527
  %4770 = vst.msk [vmem:[%s4 + $0x358] sm:$0xf] %vm4555, %v4528
  %4771 = vst.msk [vmem:[%s4 + $0x35c] sm:$0xf] %vm4555, %v4529
  %4772 = vst.msk [vmem:[%s4 + $0x360] sm:$0xf] %vm4555, %v4530
  %4773 = vst.msk [vmem:[%s4 + $0x364] sm:$0xf] %vm4555, %v4531
  %4774 = vst.msk [vmem:[%s4 + $0x368] sm:$0xf] %vm4555, %v4532
  %4775 = vst.msk [vmem:[%s4 + $0x36c] sm:$0xf] %vm4555, %v4533
  %4776 = vst.msk [vmem:[%s4 + $0x370] sm:$0xf] %vm4555, %v4534
  %4777 = vst.msk [vmem:[%s4 + $0x374] sm:$0xf] %vm4555, %v4535
  %4778 = vst.msk [vmem:[%s4 + $0x378] sm:$0xf] %vm4555, %v4536
  %4779 = vst.msk [vmem:[%s4 + $0x37c] sm:$0xf] %vm4555, %v4537
  %4780 = vst.msk [vmem:[%s4 + $0x380] sm:$0xf] %vm4555, %v4538
  %4781 = vst.msk [vmem:[%s4 + $0x384] sm:$0xf] %vm4555, %v4539
  %4782 = vst.msk [vmem:[%s4 + $0x388] sm:$0xf] %vm4555, %v4540
  %4783 = vst.msk [vmem:[%s4 + $0x38c] sm:$0xf] %vm4555, %v4541
  %4784 = vst.msk [vmem:[%s4 + $0x390] sm:$0xf] %vm4555, %v4542
  %4785 = vst.msk [vmem:[%s4 + $0x394] sm:$0xf] %vm4555, %v4543
  %4786 = vst.msk [vmem:[%s4 + $0x398] sm:$0xf] %vm4555, %v4544
  %4787 = vst.msk [vmem:[%s4 + $0x39c] sm:$0xf] %vm4555, %v4545
  %4788 = vst.msk [vmem:[%s4 + $0x3a0] sm:$0xf] %vm4555, %v4546
  %4789 = vst.msk [vmem:[%s4 + $0x3a4] sm:$0xf] %vm4555, %v4547
  %4790 = vst.msk [vmem:[%s4 + $0x3a8] sm:$0xf] %vm4555, %v4548
  %4791 = vst.msk [vmem:[%s4 + $0x3ac] sm:$0xf] %vm4555, %v4549
  %4792 = vst.msk [vmem:[%s4 + $0x3b0] sm:$0xf] %vm4555, %v4550
  %4793 = vst.msk [vmem:[%s4 + $0x3b4] sm:$0xf] %vm4555, %v4551
  %4794 = vst.msk [vmem:[%s4 + $0x3b8] sm:$0xf] %vm4555, %v4552
  %4795 = vst.msk [vmem:[%s4 + $0x3bc] sm:$0xf] %vm4555, %v4553
  %vm4796 = vcmask 122880
  %4797 = vst.msk [vmem:[%s4 + $0x3c0] sm:$0x1] %vm4796, %v4554
  // Predicated region
  $region18: #{classifier_forward.3} parent=0 // pred_check
    _
  $region19: #{classifier_forward.3} parent=0 // pred_check_branch
    %4799 = sbr.rel (0) target = $region21
  $region20: #{classifier_forward.3} parent=0 // pred_region
    _
  $region21: #{classifier_forward.3} parent=0 // pred_fallthru
    _
  // Predicated region
  $region22: #{classifier_forward.3} parent=0 // pred_check
    _
  $region23: #{classifier_forward.3} parent=0 // pred_check_branch
    %4801 = sbr.rel (0) target = $region25
  $region24: #{classifier_forward.3} parent=0 // pred_region
    _
  $region25: #{classifier_forward.3} parent=0 // pred_fallthru
    _

// kernel: classifier_forward.4
$region0: #{classifier_forward.4}
  #allocation0 [shape = 'u32[]', space=smem, size = 0x4, offset = 0x4, fixed_abs, tag = 'smem constant byte address 0x4 - core index']
  #allocation1 [shape = 'u32[72,128]{1,0:T(1,128)}', space=vmem, size = 0x9000, scoped, tag = 'internal scratch']
  %s0 = inlined_call_operand.vmem [shape: bf16[392,256], index: 0, kind: input, shape index: {}]
  %s1 = inlined_call_operand.vmem [shape: bf16[256,32], index: 1, kind: input, shape index: {}]
  %s2 = inlined_call_operand.vmem [shape: f32[1,32], index: 2, kind: input, shape index: {}]
  %s3 = inlined_call_operand.vmem [shape: f32[1,32], index: 3, kind: input, shape index: {}]
  %s4 = inlined_call_operand.vmem [shape: bf16[392,32], index: 4, kind: output, shape index: {}]
  %s5 = sld [smem:[#allocation0]]
  $region26: #{classifier_forward.4} parent=0
    _
  %s7 = ssub.s32 1, %s5
  %s8 = scalar_select 0, %s7, %s5
  // Predicated region
  $region2: #{classifier_forward.4} parent=0 // pred_check
    _
  $region3: #{classifier_forward.4} parent=0 // pred_check_branch
    %10 = sbr.rel (0) target = $region5
  $region4: #{classifier_forward.4} parent=0 // pred_region
    _
  $region5: #{classifier_forward.4} parent=0 // pred_fallthru
    _
  // Predicated region
  $region6: #{classifier_forward.4} parent=0 // pred_check
    _
  $region7: #{classifier_forward.4} parent=0 // pred_check_branch
    %12 = sbr.rel (0) target = $region9
  $region8: #{classifier_forward.4} parent=0 // pred_region
    _
  $region9: #{classifier_forward.4} parent=0 // pred_fallthru
    _
  // Predicated region
  $region10: #{classifier_forward.4} parent=0 // pred_check
    _
  $region11: #{classifier_forward.4} parent=0 // pred_check_branch
    %14 = sbr.rel (0) target = $region13
  $region12: #{classifier_forward.4} parent=0 // pred_region
    _
  $region13: #{classifier_forward.4} parent=0 // pred_fallthru
    _
  // Predicated region
  $region14: #{classifier_forward.4} parent=0 // pred_check
    _
  $region15: #{classifier_forward.4} parent=0 // pred_check_branch
    %16 = sbr.rel (0) target = $region17
  $region16: #{classifier_forward.4} parent=0 // pred_region
    _
  $region17: #{classifier_forward.4} parent=0 // pred_fallthru
    _
  %v17 = vld [vmem:[%s0] sm:$0xff]
  %v18 = vld [vmem:[%s0 + $0x8] sm:$0xff]
  %v19 = vld [vmem:[%s0 + $0x10] sm:$0xff]
  %v20 = vld [vmem:[%s0 + $0x18] sm:$0xff]
  %v21 = vld [vmem:[%s0 + $0x20] sm:$0xff]
  %v22 = vld [vmem:[%s0 + $0x28] sm:$0xff]
  %v23 = vld [vmem:[%s0 + $0x30] sm:$0xff]
  %v24 = vld [vmem:[%s0 + $0x38] sm:$0xff]
  %v25 = vld [vmem:[%s0 + $0x40] sm:$0xff]
  %v26 = vld [vmem:[%s0 + $0x48] sm:$0xff]
  %v27 = vld [vmem:[%s0 + $0x50] sm:$0xff]
  %v28 = vld [vmem:[%s0 + $0x58] sm:$0xff]
  %v29 = vld [vmem:[%s0 + $0x60] sm:$0xff]
  %v30 = vld [vmem:[%s0 + $0x68] sm:$0xff]
  %v31 = vld [vmem:[%s0 + $0x70] sm:$0xff]
  %v32 = vld [vmem:[%s0 + $0x78] sm:$0xff]
  %v33 = vld [vmem:[%s0 + $0x80] sm:$0xff]
  %v34 = vld [vmem:[%s0 + $0x88] sm:$0xff]
  %v35 = vld [vmem:[%s0 + $0x90] sm:$0xff]
  %v36 = vld [vmem:[%s0 + $0x98] sm:$0xff]
  %v37 = vld [vmem:[%s0 + $0xa0] sm:$0xff]
  %v38 = vld [vmem:[%s0 + $0xa8] sm:$0xff]
  %v39 = vld [vmem:[%s0 + $0xb0] sm:$0xff]
  %v40 = vld [vmem:[%s0 + $0xb8] sm:$0xff]
  %v41 = vld [vmem:[%s0 + $0xc0] sm:$0xff]
  %v42 = vld [vmem:[%s0 + $0xc8] sm:$0xff]
  %v43 = vld [vmem:[%s0 + $0xd0] sm:$0xff]
  %v44 = vld [vmem:[%s0 + $0xd8] sm:$0xff]
  %v45 = vld [vmem:[%s0 + $0xe0] sm:$0xff]
  %v46 = vld [vmem:[%s0 + $0xe8] sm:$0xff]
  %v47 = vld [vmem:[%s0 + $0xf0] sm:$0xff]
  %v48 = vld [vmem:[%s0 + $0xf8] sm:$0xff]
  %v49 = vld [vmem:[%s0 + $0x100] sm:$0xff]
  %v50 = vld [vmem:[%s0 + $0x108] sm:$0xff]
  %v51 = vld [vmem:[%s0 + $0x110] sm:$0xff]
  %v52 = vld [vmem:[%s0 + $0x118] sm:$0xff]
  %v53 = vld [vmem:[%s0 + $0x120] sm:$0xff]
  %v54 = vld [vmem:[%s0 + $0x128] sm:$0xff]
  %v55 = vld [vmem:[%s0 + $0x130] sm:$0xff]
  %v56 = vld [vmem:[%s0 + $0x138] sm:$0xff]
  %v57 = vld [vmem:[%s0 + $0x140] sm:$0xff]
  %v58 = vld [vmem:[%s0 + $0x148] sm:$0xff]
  %v59 = vld [vmem:[%s0 + $0x150] sm:$0xff]
  %v60 = vld [vmem:[%s0 + $0x158] sm:$0xff]
  %v61 = vld [vmem:[%s0 + $0x160] sm:$0xff]
  %v62 = vld [vmem:[%s0 + $0x168] sm:$0xff]
  %v63 = vld [vmem:[%s0 + $0x170] sm:$0xff]
  %v64 = vld [vmem:[%s0 + $0x178] sm:$0xff]
  %v65 = vld [vmem:[%s0 + $0x180] sm:$0xff]
  %v66 = vld [vmem:[%s1] sm:$0xf]
  %v67 = vld [vmem:[%s1 + $0x4] sm:$0xf]
  %v68 = vld [vmem:[%s1 + $0x8] sm:$0xf]
  %v69 = vld [vmem:[%s1 + $0xc] sm:$0xf]
  %v70 = vld [vmem:[%s1 + $0x10] sm:$0xf]
  %v71 = vld [vmem:[%s1 + $0x14] sm:$0xf]
  %v72 = vld [vmem:[%s1 + $0x18] sm:$0xf]
  %v73 = vld [vmem:[%s1 + $0x1c] sm:$0xf]
  %v74 = vld [vmem:[%s1 + $0x20] sm:$0xf]
  %v75 = vld [vmem:[%s1 + $0x24] sm:$0xf]
  %v76 = vld [vmem:[%s1 + $0x28] sm:$0xf]
  %v77 = vld [vmem:[%s1 + $0x2c] sm:$0xf]
  %v78 = vld [vmem:[%s1 + $0x30] sm:$0xf]
  %v79 = vld [vmem:[%s1 + $0x34] sm:$0xf]
  %v80 = vld [vmem:[%s1 + $0x38] sm:$0xf]
  %v81 = vld [vmem:[%s1 + $0x3c] sm:$0xf]
  %v82 = vld [vmem:[%s1 + $0x40] sm:$0xf]
  %v83 = vld [vmem:[%s1 + $0x44] sm:$0xf]
  %v84 = vld [vmem:[%s1 + $0x48] sm:$0xf]
  %v85 = vld [vmem:[%s1 + $0x4c] sm:$0xf]
  %v86 = vld [vmem:[%s1 + $0x50] sm:$0xf]
  %v87 = vld [vmem:[%s1 + $0x54] sm:$0xf]
  %v88 = vld [vmem:[%s1 + $0x58] sm:$0xf]
  %v89 = vld [vmem:[%s1 + $0x5c] sm:$0xf]
  %v90 = vld [vmem:[%s1 + $0x60] sm:$0xf]
  %v91 = vld [vmem:[%s1 + $0x64] sm:$0xf]
  %v92 = vld [vmem:[%s1 + $0x68] sm:$0xf]
  %v93 = vld [vmem:[%s1 + $0x6c] sm:$0xf]
  %v94 = vld [vmem:[%s1 + $0x70] sm:$0xf]
  %v95 = vld [vmem:[%s1 + $0x74] sm:$0xf]
  %v96 = vld [vmem:[%s1 + $0x78] sm:$0xf]
  %v97 = vld [vmem:[%s1 + $0x7c] sm:$0xf]
  %v147 = vunpack.c.l.b16 %v17
  %v148 = vunpack.c.h.b16 %v17
  %v149 = vunpack.c.l.b16 %v18
  %v150 = vunpack.c.h.b16 %v18
  %v151 = vunpack.c.l.b16 %v19
  %v152 = vunpack.c.h.b16 %v19
  %v153 = vunpack.c.l.b16 %v20
  %v154 = vunpack.c.h.b16 %v20
  %v155 = vunpack.c.l.b16 %v21
  %v156 = vunpack.c.h.b16 %v21
  %v157 = vunpack.c.l.b16 %v22
  %v158 = vunpack.c.h.b16 %v22
  %v159 = vunpack.c.l.b16 %v23
  %v160 = vunpack.c.h.b16 %v23
  %v161 = vunpack.c.l.b16 %v24
  %v162 = vunpack.c.h.b16 %v24
  %v163 = vunpack.c.l.b16 %v25
  %v164 = vunpack.c.h.b16 %v25
  %v165 = vunpack.c.l.b16 %v26
  %v166 = vunpack.c.h.b16 %v26
  %v167 = vunpack.c.l.b16 %v27
  %v168 = vunpack.c.h.b16 %v27
  %v169 = vunpack.c.l.b16 %v28
  %v170 = vunpack.c.h.b16 %v28
  %v171 = vunpack.c.l.b16 %v29
  %v172 = vunpack.c.h.b16 %v29
  %v173 = vunpack.c.l.b16 %v30
  %v174 = vunpack.c.h.b16 %v30
  %v175 = vunpack.c.l.b16 %v31
  %v176 = vunpack.c.h.b16 %v31
  %v177 = vunpack.c.l.b16 %v32
  %v178 = vunpack.c.h.b16 %v32
  %v179 = vunpack.c.l.b16 %v33
  %v180 = vunpack.c.h.b16 %v33
  %v181 = vunpack.c.l.b16 %v34
  %v182 = vunpack.c.h.b16 %v34
  %v183 = vunpack.c.l.b16 %v35
  %v184 = vunpack.c.h.b16 %v35
  %v185 = vunpack.c.l.b16 %v36
  %v186 = vunpack.c.h.b16 %v36
  %v187 = vunpack.c.l.b16 %v37
  %v188 = vunpack.c.h.b16 %v37
  %v189 = vunpack.c.l.b16 %v38
  %v190 = vunpack.c.h.b16 %v38
  %v191 = vunpack.c.l.b16 %v39
  %v192 = vunpack.c.h.b16 %v39
  %v193 = vunpack.c.l.b16 %v40
  %v194 = vunpack.c.h.b16 %v40
  %v195 = vunpack.c.l.b16 %v41
  %v196 = vunpack.c.h.b16 %v41
  %v197 = vunpack.c.l.b16 %v42
  %v198 = vunpack.c.h.b16 %v42
  %v199 = vunpack.c.l.b16 %v43
  %v200 = vunpack.c.h.b16 %v43
  %v201 = vunpack.c.l.b16 %v44
  %v202 = vunpack.c.h.b16 %v44
  %v203 = vunpack.c.l.b16 %v45
  %v204 = vunpack.c.h.b16 %v45
  %v205 = vunpack.c.l.b16 %v46
  %v206 = vunpack.c.h.b16 %v46
  %v207 = vunpack.c.l.b16 %v47
  %v208 = vunpack.c.h.b16 %v47
  %v209 = vunpack.c.l.b16 %v48
  %v210 = vunpack.c.h.b16 %v48
  %v211 = vunpack.c.l.b16 %v49
  %v212 = vunpack.c.h.b16 %v49
  %v213 = vunpack.c.l.b16 %v50
  %v214 = vunpack.c.h.b16 %v50
  %v215 = vunpack.c.l.b16 %v51
  %v216 = vunpack.c.h.b16 %v51
  %v217 = vunpack.c.l.b16 %v52
  %v218 = vunpack.c.h.b16 %v52
  %v219 = vunpack.c.l.b16 %v53
  %v220 = vunpack.c.h.b16 %v53
  %v221 = vunpack.c.l.b16 %v54
  %v222 = vunpack.c.h.b16 %v54
  %v223 = vunpack.c.l.b16 %v55
  %v224 = vunpack.c.h.b16 %v55
  %v225 = vunpack.c.l.b16 %v56
  %v226 = vunpack.c.h.b16 %v56
  %v227 = vunpack.c.l.b16 %v57
  %v228 = vunpack.c.h.b16 %v57
  %v229 = vunpack.c.l.b16 %v58
  %v230 = vunpack.c.h.b16 %v58
  %v231 = vunpack.c.l.b16 %v59
  %v232 = vunpack.c.h.b16 %v59
  %v233 = vunpack.c.l.b16 %v60
  %v234 = vunpack.c.h.b16 %v60
  %v235 = vunpack.c.l.b16 %v61
  %v236 = vunpack.c.h.b16 %v61
  %v237 = vunpack.c.l.b16 %v62
  %v238 = vunpack.c.h.b16 %v62
  %v239 = vunpack.c.l.b16 %v63
  %v240 = vunpack.c.h.b16 %v63
  %v241 = vunpack.c.l.b16 %v64
  %v242 = vunpack.c.h.b16 %v64
  %v243 = vunpack.c.l.b16 %v65
  %v244 = vunpack.c.h.b16 %v65
  %v245 = vpack.c.b16 %v149, %v147
  %v246 = vpack.c.b16 %v150, %v148
  %v247 = vpack.c.b16 %v153, %v151
  %v248 = vpack.c.b16 %v154, %v152
  %v249 = vpack.c.b16 %v157, %v155
  %v250 = vpack.c.b16 %v158, %v156
  %v251 = vpack.c.b16 %v161, %v159
  %v252 = vpack.c.b16 %v162, %v160
  %v253 = vpack.c.b16 %v165, %v163
  %v254 = vpack.c.b16 %v166, %v164
  %v255 = vpack.c.b16 %v169, %v167
  %v256 = vpack.c.b16 %v170, %v168
  %v257 = vpack.c.b16 %v173, %v171
  %v258 = vpack.c.b16 %v174, %v172
  %v259 = vpack.c.b16 %v177, %v175
  %v260 = vpack.c.b16 %v178, %v176
  %v261 = vpack.c.b16 %v181, %v179
  %v262 = vpack.c.b16 %v182, %v180
  %v263 = vpack.c.b16 %v185, %v183
  %v264 = vpack.c.b16 %v186, %v184
  %v265 = vpack.c.b16 %v189, %v187
  %v266 = vpack.c.b16 %v190, %v188
  %v267 = vpack.c.b16 %v193, %v191
  %v268 = vpack.c.b16 %v194, %v192
  %v269 = vpack.c.b16 %v197, %v195
  %v270 = vpack.c.b16 %v198, %v196
  %v271 = vpack.c.b16 %v201, %v199
  %v272 = vpack.c.b16 %v202, %v200
  %v273 = vpack.c.b16 %v205, %v203
  %v274 = vpack.c.b16 %v206, %v204
  %v275 = vpack.c.b16 %v209, %v207
  %v276 = vpack.c.b16 %v210, %v208
  %v277 = vpack.c.b16 %v213, %v211
  %v278 = vpack.c.b16 %v214, %v212
  %v279 = vpack.c.b16 %v217, %v215
  %v280 = vpack.c.b16 %v218, %v216
  %v281 = vpack.c.b16 %v221, %v219
  %v282 = vpack.c.b16 %v222, %v220
  %v283 = vpack.c.b16 %v225, %v223
  %v284 = vpack.c.b16 %v226, %v224
  %v285 = vpack.c.b16 %v229, %v227
  %v286 = vpack.c.b16 %v230, %v228
  %v287 = vpack.c.b16 %v233, %v231
  %v288 = vpack.c.b16 %v234, %v232
  %v289 = vpack.c.b16 %v237, %v235
  %v290 = vpack.c.b16 %v238, %v236
  %v291 = vpack.c.b16 %v241, %v239
  %v292 = vpack.c.b16 %v242, %v240
  %v293 = vpack.c.b16 %v243, %v243
  %v294 = vpack.c.b16 %v244, %v244
  %v377 = vunpack.c.l.b16 %v66
  %v378 = vunpack.c.l.b16 %v67
  %v379 = vunpack.c.l.b16 %v68
  %v380 = vunpack.c.l.b16 %v69
  %v381 = vunpack.c.l.b16 %v70
  %v382 = vunpack.c.l.b16 %v71
  %v383 = vunpack.c.l.b16 %v72
  %v384 = vunpack.c.l.b16 %v73
  %v385 = vunpack.c.l.b16 %v74
  %v386 = vunpack.c.l.b16 %v75
  %v387 = vunpack.c.l.b16 %v76
  %v388 = vunpack.c.l.b16 %v77
  %v389 = vunpack.c.l.b16 %v78
  %v390 = vunpack.c.l.b16 %v79
  %v391 = vunpack.c.l.b16 %v80
  %v392 = vunpack.c.l.b16 %v81
  %v393 = vunpack.c.l.b16 %v82
  %v394 = vunpack.c.l.b16 %v83
  %v395 = vunpack.c.l.b16 %v84
  %v396 = vunpack.c.l.b16 %v85
  %v397 = vunpack.c.l.b16 %v86
  %v398 = vunpack.c.l.b16 %v87
  %v399 = vunpack.c.l.b16 %v88
  %v400 = vunpack.c.l.b16 %v89
  %v401 = vunpack.c.l.b16 %v90
  %v402 = vunpack.c.l.b16 %v91
  %v403 = vunpack.c.l.b16 %v92
  %v404 = vunpack.c.l.b16 %v93
  %v405 = vunpack.c.l.b16 %v94
  %v406 = vunpack.c.l.b16 %v95
  %v407 = vunpack.c.l.b16 %v96
  %v408 = vunpack.c.l.b16 %v97
  %v409 = vpack.c.b16 %v378, %v377
  %v410 = vpack.c.b16 %v380, %v379
  %v411 = vpack.c.b16 %v382, %v381
  %v412 = vpack.c.b16 %v384, %v383
  %v413 = vpack.c.b16 %v386, %v385
  %v414 = vpack.c.b16 %v388, %v387
  %v415 = vpack.c.b16 %v390, %v389
  %v416 = vpack.c.b16 %v392, %v391
  %v417 = vpack.c.b16 %v394, %v393
  %v418 = vpack.c.b16 %v396, %v395
  %v419 = vpack.c.b16 %v398, %v397
  %v420 = vpack.c.b16 %v400, %v399
  %v421 = vpack.c.b16 %v402, %v401
  %v422 = vpack.c.b16 %v404, %v403
  %v423 = vpack.c.b16 %v406, %v405
  %v424 = vpack.c.b16 %v408, %v407
  %441 = vmatpush.bf16.msra.mxu0 %v416
  %442 = vmatpush.bf16.msra.mxu0 %v415
  %443 = vmatpush.bf16.msra.mxu0 %v414
  %444 = vmatpush.bf16.msra.mxu0 %v413
  %445 = vmatpush.bf16.msra.mxu0 %v412
  %446 = vmatpush.bf16.msra.mxu0 %v411
  %447 = vmatpush.bf16.msra.mxu0 %v410
  %448 = vmatpush.bf16.msra.mxu0 %v409
  %449 = vmatmul.bf16.gmra.mxu0 %v245
  %v450 = vpop.f32.mrf.mxu0
  %v451 = vadd.f32 0.0, %v450
  %v452 = vpop.f32.mrf.mxu0
  %v453 = vadd.f32 0.0, %v452
  %454 = vmatmul.bf16.gmra.mxu0 %v247
  %v455 = vpop.f32.mrf.mxu0
  %v456 = vadd.f32 0.0, %v455
  %v457 = vpop.f32.mrf.mxu0
  %v458 = vadd.f32 0.0, %v457
  %459 = vmatmul.bf16.gmra.mxu0 %v249
  %v460 = vpop.f32.mrf.mxu0
  %v461 = vadd.f32 0.0, %v460
  %v462 = vpop.f32.mrf.mxu0
  %v463 = vadd.f32 0.0, %v462
  %464 = vmatmul.bf16.gmra.mxu0 %v251
  %v465 = vpop.f32.mrf.mxu0
  %v466 = vadd.f32 0.0, %v465
  %v467 = vpop.f32.mrf.mxu0
  %v468 = vadd.f32 0.0, %v467
  %469 = vmatmul.bf16.gmra.mxu0 %v253
  %v470 = vpop.f32.mrf.mxu0
  %v471 = vadd.f32 0.0, %v470
  %v472 = vpop.f32.mrf.mxu0
  %v473 = vadd.f32 0.0, %v472
  %474 = vmatmul.bf16.gmra.mxu0 %v255
  %v475 = vpop.f32.mrf.mxu0
  %v476 = vadd.f32 0.0, %v475
  %v477 = vpop.f32.mrf.mxu0
  %v478 = vadd.f32 0.0, %v477
  %479 = vmatmul.bf16.gmra.mxu0 %v257
  %v480 = vpop.f32.mrf.mxu0
  %v481 = vadd.f32 0.0, %v480
  %v482 = vpop.f32.mrf.mxu0
  %v483 = vadd.f32 0.0, %v482
  %484 = vmatmul.bf16.gmra.mxu0 %v259
  %v485 = vpop.f32.mrf.mxu0
  %v486 = vadd.f32 0.0, %v485
  %v487 = vpop.f32.mrf.mxu0
  %v488 = vadd.f32 0.0, %v487
  %489 = vmatmul.bf16.gmra.mxu0 %v261
  %v490 = vpop.f32.mrf.mxu0
  %v491 = vadd.f32 0.0, %v490
  %v492 = vpop.f32.mrf.mxu0
  %v493 = vadd.f32 0.0, %v492
  %494 = vmatmul.bf16.gmra.mxu0 %v263
  %v495 = vpop.f32.mrf.mxu0
  %v496 = vadd.f32 0.0, %v495
  %v497 = vpop.f32.mrf.mxu0
  %v498 = vadd.f32 0.0, %v497
  %499 = vmatmul.bf16.gmra.mxu0 %v265
  %v500 = vpop.f32.mrf.mxu0
  %v501 = vadd.f32 0.0, %v500
  %v502 = vpop.f32.mrf.mxu0
  %v503 = vadd.f32 0.0, %v502
  %504 = vmatmul.bf16.gmra.mxu0 %v267
  %v505 = vpop.f32.mrf.mxu0
  %v506 = vadd.f32 0.0, %v505
  %v507 = vpop.f32.mrf.mxu0
  %v508 = vadd.f32 0.0, %v507
  %509 = vmatmul.bf16.gmra.mxu0 %v269
  %v510 = vpop.f32.mrf.mxu0
  %v511 = vadd.f32 0.0, %v510
  %v512 = vpop.f32.mrf.mxu0
  %v513 = vadd.f32 0.0, %v512
  %514 = vmatmul.bf16.gmra.mxu0 %v271
  %v515 = vpop.f32.mrf.mxu0
  %v516 = vadd.f32 0.0, %v515
  %v517 = vpop.f32.mrf.mxu0
  %v518 = vadd.f32 0.0, %v517
  %519 = vmatmul.bf16.gmra.mxu0 %v273
  %v520 = vpop.f32.mrf.mxu0
  %v521 = vadd.f32 0.0, %v520
  %v522 = vpop.f32.mrf.mxu0
  %v523 = vadd.f32 0.0, %v522
  %524 = vmatmul.bf16.gmra.mxu0 %v275
  %v525 = vpop.f32.mrf.mxu0
  %v526 = vadd.f32 0.0, %v525
  %v527 = vpop.f32.mrf.mxu0
  %v528 = vadd.f32 0.0, %v527
  %529 = vmatmul.bf16.gmra.mxu0 %v277
  %v530 = vpop.f32.mrf.mxu0
  %v531 = vadd.f32 0.0, %v530
  %v532 = vpop.f32.mrf.mxu0
  %v533 = vadd.f32 0.0, %v532
  %534 = vmatmul.bf16.gmra.mxu0 %v279
  %v535 = vpop.f32.mrf.mxu0
  %v536 = vadd.f32 0.0, %v535
  %v537 = vpop.f32.mrf.mxu0
  %v538 = vadd.f32 0.0, %v537
  %539 = vmatmul.bf16.gmra.mxu0 %v281
  %v540 = vpop.f32.mrf.mxu0
  %v541 = vadd.f32 0.0, %v540
  %v542 = vpop.f32.mrf.mxu0
  %v543 = vadd.f32 0.0, %v542
  %544 = vmatmul.bf16.gmra.mxu0 %v283
  %v545 = vpop.f32.mrf.mxu0
  %v546 = vadd.f32 0.0, %v545
  %v547 = vpop.f32.mrf.mxu0
  %v548 = vadd.f32 0.0, %v547
  %549 = vmatmul.bf16.gmra.mxu0 %v285
  %v550 = vpop.f32.mrf.mxu0
  %v551 = vadd.f32 0.0, %v550
  %v552 = vpop.f32.mrf.mxu0
  %v553 = vadd.f32 0.0, %v552
  %554 = vmatmul.bf16.gmra.mxu0 %v287
  %v555 = vpop.f32.mrf.mxu0
  %v556 = vadd.f32 0.0, %v555
  %v557 = vpop.f32.mrf.mxu0
  %v558 = vadd.f32 0.0, %v557
  %559 = vmatmul.bf16.gmra.mxu0 %v289
  %v560 = vpop.f32.mrf.mxu0
  %v561 = vadd.f32 0.0, %v560
  %v562 = vpop.f32.mrf.mxu0
  %v563 = vadd.f32 0.0, %v562
  %564 = vmatmul.bf16.gmra.mxu0 %v291
  %v565 = vpop.f32.mrf.mxu0
  %v566 = vadd.f32 0.0, %v565
  %v567 = vpop.f32.mrf.mxu0
  %v568 = vadd.f32 0.0, %v567
  %569 = vmatmul.bf16.gmra.mxu0 %v293
  %v570 = vpop.f32.mrf.mxu0
  %v571 = vadd.f32 0.0, %v570
  %v572 = vpop.f32.mrf.mxu0
  %573 = vdwg.mxu0
  %574 = vmatpush.bf16.msra.mxu0 %v424
  %575 = vmatpush.bf16.msra.mxu0 %v423
  %576 = vmatpush.bf16.msra.mxu0 %v422
  %577 = vmatpush.bf16.msra.mxu0 %v421
  %578 = vmatpush.bf16.msra.mxu0 %v420
  %579 = vmatpush.bf16.msra.mxu0 %v419
  %580 = vmatpush.bf16.msra.mxu0 %v418
  %581 = vmatpush.bf16.msra.mxu0 %v417
  %582 = vmatmul.bf16.gmra.mxu0 %v246
  %v583 = vpop.f32.mrf.mxu0
  %v584 = vadd.f32 %v451, %v583
  %v585 = vpop.f32.mrf.mxu0
  %v586 = vadd.f32 %v453, %v585
  %587 = vmatmul.bf16.gmra.mxu0 %v248
  %v588 = vpop.f32.mrf.mxu0
  %v589 = vadd.f32 %v456, %v588
  %v590 = vpop.f32.mrf.mxu0
  %v591 = vadd.f32 %v458, %v590
  %592 = vmatmul.bf16.gmra.mxu0 %v250
  %v593 = vpop.f32.mrf.mxu0
  %v594 = vadd.f32 %v461, %v593
  %v595 = vpop.f32.mrf.mxu0
  %v596 = vadd.f32 %v463, %v595
  %597 = vmatmul.bf16.gmra.mxu0 %v252
  %v598 = vpop.f32.mrf.mxu0
  %v599 = vadd.f32 %v466, %v598
  %v600 = vpop.f32.mrf.mxu0
  %v601 = vadd.f32 %v468, %v600
  %602 = vmatmul.bf16.gmra.mxu0 %v254
  %v603 = vpop.f32.mrf.mxu0
  %v604 = vadd.f32 %v471, %v603
  %v605 = vpop.f32.mrf.mxu0
  %v606 = vadd.f32 %v473, %v605
  %607 = vmatmul.bf16.gmra.mxu0 %v256
  %v608 = vpop.f32.mrf.mxu0
  %v609 = vadd.f32 %v476, %v608
  %v610 = vpop.f32.mrf.mxu0
  %v611 = vadd.f32 %v478, %v610
  %612 = vmatmul.bf16.gmra.mxu0 %v258
  %v613 = vpop.f32.mrf.mxu0
  %v614 = vadd.f32 %v481, %v613
  %v615 = vpop.f32.mrf.mxu0
  %v616 = vadd.f32 %v483, %v615
  %617 = vmatmul.bf16.gmra.mxu0 %v260
  %v618 = vpop.f32.mrf.mxu0
  %v619 = vadd.f32 %v486, %v618
  %v620 = vpop.f32.mrf.mxu0
  %v621 = vadd.f32 %v488, %v620
  %622 = vmatmul.bf16.gmra.mxu0 %v262
  %v623 = vpop.f32.mrf.mxu0
  %v624 = vadd.f32 %v491, %v623
  %v625 = vpop.f32.mrf.mxu0
  %v626 = vadd.f32 %v493, %v625
  %627 = vmatmul.bf16.gmra.mxu0 %v264
  %v628 = vpop.f32.mrf.mxu0
  %v629 = vadd.f32 %v496, %v628
  %v630 = vpop.f32.mrf.mxu0
  %v631 = vadd.f32 %v498, %v630
  %632 = vmatmul.bf16.gmra.mxu0 %v266
  %v633 = vpop.f32.mrf.mxu0
  %v634 = vadd.f32 %v501, %v633
  %v635 = vpop.f32.mrf.mxu0
  %v636 = vadd.f32 %v503, %v635
  %637 = vmatmul.bf16.gmra.mxu0 %v268
  %v638 = vpop.f32.mrf.mxu0
  %v639 = vadd.f32 %v506, %v638
  %v640 = vpop.f32.mrf.mxu0
  %v641 = vadd.f32 %v508, %v640
  %642 = vmatmul.bf16.gmra.mxu0 %v270
  %v643 = vpop.f32.mrf.mxu0
  %v644 = vadd.f32 %v511, %v643
  %v645 = vpop.f32.mrf.mxu0
  %v646 = vadd.f32 %v513, %v645
  %647 = vmatmul.bf16.gmra.mxu0 %v272
  %v648 = vpop.f32.mrf.mxu0
  %v649 = vadd.f32 %v516, %v648
  %v650 = vpop.f32.mrf.mxu0
  %v651 = vadd.f32 %v518, %v650
  %652 = vmatmul.bf16.gmra.mxu0 %v274
  %v653 = vpop.f32.mrf.mxu0
  %v654 = vadd.f32 %v521, %v653
  %v655 = vpop.f32.mrf.mxu0
  %v656 = vadd.f32 %v523, %v655
  %657 = vmatmul.bf16.gmra.mxu0 %v276
  %v658 = vpop.f32.mrf.mxu0
  %v659 = vadd.f32 %v526, %v658
  %v660 = vpop.f32.mrf.mxu0
  %v661 = vadd.f32 %v528, %v660
  %662 = vmatmul.bf16.gmra.mxu0 %v278
  %v663 = vpop.f32.mrf.mxu0
  %v664 = vadd.f32 %v531, %v663
  %v665 = vpop.f32.mrf.mxu0
  %v666 = vadd.f32 %v533, %v665
  %667 = vmatmul.bf16.gmra.mxu0 %v280
  %v668 = vpop.f32.mrf.mxu0
  %v669 = vadd.f32 %v536, %v668
  %v670 = vpop.f32.mrf.mxu0
  %v671 = vadd.f32 %v538, %v670
  %672 = vmatmul.bf16.gmra.mxu0 %v282
  %v673 = vpop.f32.mrf.mxu0
  %v674 = vadd.f32 %v541, %v673
  %v675 = vpop.f32.mrf.mxu0
  %v676 = vadd.f32 %v543, %v675
  %677 = vmatmul.bf16.gmra.mxu0 %v284
  %v678 = vpop.f32.mrf.mxu0
  %v679 = vadd.f32 %v546, %v678
  %v680 = vpop.f32.mrf.mxu0
  %v681 = vadd.f32 %v548, %v680
  %682 = vmatmul.bf16.gmra.mxu0 %v286
  %v683 = vpop.f32.mrf.mxu0
  %v684 = vadd.f32 %v551, %v683
  %v685 = vpop.f32.mrf.mxu0
  %v686 = vadd.f32 %v553, %v685
  %687 = vmatmul.bf16.gmra.mxu0 %v288
  %v688 = vpop.f32.mrf.mxu0
  %v689 = vadd.f32 %v556, %v688
  %v690 = vpop.f32.mrf.mxu0
  %v691 = vadd.f32 %v558, %v690
  %692 = vmatmul.bf16.gmra.mxu0 %v290
  %v693 = vpop.f32.mrf.mxu0
  %v694 = vadd.f32 %v561, %v693
  %v695 = vpop.f32.mrf.mxu0
  %v696 = vadd.f32 %v563, %v695
  %697 = vmatmul.bf16.gmra.mxu0 %v292
  %v698 = vpop.f32.mrf.mxu0
  %v699 = vadd.f32 %v566, %v698
  %v700 = vpop.f32.mrf.mxu0
  %v701 = vadd.f32 %v568, %v700
  %702 = vmatmul.bf16.gmra.mxu0 %v294
  %v703 = vpop.f32.mrf.mxu0
  %v704 = vadd.f32 %v571, %v703
  %v705 = vpop.f32.mrf.mxu0
  %706 = vdwg.mxu0
  %vm707 = vcmask 261120
  %v708 = vsel %vm707, %v584, 0.0
  %v709 = vsel %vm707, %v586, 0.0
  %v710 = vadd.f32 %v708, %v709
  %v711 = vsel %vm707, %v589, 0.0
  %v712 = vadd.f32 %v710, %v711
  %v713 = vsel %vm707, %v591, 0.0
  %v714 = vadd.f32 %v712, %v713
  %v715 = vsel %vm707, %v594, 0.0
  %v716 = vadd.f32 %v714, %v715
  %v717 = vsel %vm707, %v596, 0.0
  %v718 = vadd.f32 %v716, %v717
  %v719 = vsel %vm707, %v599, 0.0
  %v720 = vadd.f32 %v718, %v719
  %v721 = vsel %vm707, %v601, 0.0
  %v722 = vadd.f32 %v720, %v721
  %v723 = vsel %vm707, %v604, 0.0
  %v724 = vadd.f32 %v722, %v723
  %v725 = vsel %vm707, %v606, 0.0
  %v726 = vadd.f32 %v724, %v725
  %v727 = vsel %vm707, %v609, 0.0
  %v728 = vadd.f32 %v726, %v727
  %v729 = vsel %vm707, %v611, 0.0
  %v730 = vadd.f32 %v728, %v729
  %v731 = vsel %vm707, %v614, 0.0
  %v732 = vadd.f32 %v730, %v731
  %v733 = vsel %vm707, %v616, 0.0
  %v734 = vadd.f32 %v732, %v733
  %v735 = vsel %vm707, %v619, 0.0
  %v736 = vadd.f32 %v734, %v735
  %v737 = vsel %vm707, %v621, 0.0
  %v738 = vadd.f32 %v736, %v737
  %v739 = vsel %vm707, %v624, 0.0
  %v740 = vadd.f32 %v738, %v739
  %v741 = vsel %vm707, %v626, 0.0
  %v742 = vadd.f32 %v740, %v741
  %v743 = vsel %vm707, %v629, 0.0
  %v744 = vadd.f32 %v742, %v743
  %v745 = vsel %vm707, %v631, 0.0
  %v746 = vadd.f32 %v744, %v745
  %v747 = vsel %vm707, %v634, 0.0
  %v748 = vadd.f32 %v746, %v747
  %v749 = vsel %vm707, %v636, 0.0
  %v750 = vadd.f32 %v748, %v749
  %v751 = vsel %vm707, %v639, 0.0
  %v752 = vadd.f32 %v750, %v751
  %v753 = vsel %vm707, %v641, 0.0
  %v754 = vadd.f32 %v752, %v753
  %v755 = vsel %vm707, %v644, 0.0
  %v756 = vadd.f32 %v754, %v755
  %v757 = vsel %vm707, %v646, 0.0
  %v758 = vadd.f32 %v756, %v757
  %v759 = vsel %vm707, %v649, 0.0
  %v760 = vadd.f32 %v758, %v759
  %v761 = vsel %vm707, %v651, 0.0
  %v762 = vadd.f32 %v760, %v761
  %v763 = vsel %vm707, %v654, 0.0
  %v764 = vadd.f32 %v762, %v763
  %v765 = vsel %vm707, %v656, 0.0
  %v766 = vadd.f32 %v764, %v765
  %v767 = vsel %vm707, %v659, 0.0
  %v768 = vadd.f32 %v766, %v767
  %v769 = vsel %vm707, %v661, 0.0
  %v770 = vadd.f32 %v768, %v769
  %v771 = vsel %vm707, %v664, 0.0
  %v772 = vadd.f32 %v770, %v771
  %v773 = vsel %vm707, %v666, 0.0
  %v774 = vadd.f32 %v772, %v773
  %v775 = vsel %vm707, %v669, 0.0
  %v776 = vadd.f32 %v774, %v775
  %v777 = vsel %vm707, %v671, 0.0
  %v778 = vadd.f32 %v776, %v777
  %v779 = vsel %vm707, %v674, 0.0
  %v780 = vadd.f32 %v778, %v779
  %v781 = vsel %vm707, %v676, 0.0
  %v782 = vadd.f32 %v780, %v781
  %v783 = vsel %vm707, %v679, 0.0
  %v784 = vadd.f32 %v782, %v783
  %v785 = vsel %vm707, %v681, 0.0
  %v786 = vadd.f32 %v784, %v785
  %v787 = vsel %vm707, %v684, 0.0
  %v788 = vadd.f32 %v786, %v787
  %v789 = vsel %vm707, %v686, 0.0
  %v790 = vadd.f32 %v788, %v789
  %v791 = vsel %vm707, %v689, 0.0
  %v792 = vadd.f32 %v790, %v791
  %v793 = vsel %vm707, %v691, 0.0
  %v794 = vadd.f32 %v792, %v793
  %v795 = vsel %vm707, %v694, 0.0
  %v796 = vadd.f32 %v794, %v795
  %v797 = vsel %vm707, %v696, 0.0
  %v798 = vadd.f32 %v796, %v797
  %v799 = vsel %vm707, %v699, 0.0
  %v800 = vadd.f32 %v798, %v799
  %v801 = vsel %vm707, %v701, 0.0
  %v802 = vadd.f32 %v800, %v801
  %v803 = vsel %vm707, %v704, 0.0
  %v804 = vadd.f32 %v802, %v803
  %v805 = vrot.slane %v804, 4
  %v806 = vadd.f32 %v804, %v805
  %v807 = vrot.slane %v806, 2
  %v808 = vadd.f32 %v806, %v807
  %v809 = vrot.slane %v808, 1
  %v810 = vadd.f32 %v808, %v809
  %v811 = vrcp.pop 392.0
  %v812 = vmul.f32 392.0, %v811
  %v813 = vsub.f32 1.0, %v812
  %v814 = vmul.f32 %v811, %v813
  %v815 = vadd.f32 %v811, %v814
  %vm816 = vweird.f32 %v811
  %v817 = vsel %vm816, %v811, %v815
  %v818 = vmul.f32 %v810, %v817
  %v819 = vsub.f32 %v584, %v818
  %v820 = vsub.f32 %v586, %v818
  %v821 = vsub.f32 %v589, %v818
  %v822 = vsub.f32 %v591, %v818
  %v823 = vsub.f32 %v594, %v818
  %v824 = vsub.f32 %v596, %v818
  %v825 = vsub.f32 %v599, %v818
  %v826 = vsub.f32 %v601, %v818
  %v827 = vsub.f32 %v604, %v818
  %v828 = vsub.f32 %v606, %v818
  %v829 = vsub.f32 %v609, %v818
  %v830 = vsub.f32 %v611, %v818
  %v831 = vsub.f32 %v614, %v818
  %v832 = vsub.f32 %v616, %v818
  %v833 = vsub.f32 %v619, %v818
  %v834 = vsub.f32 %v621, %v818
  %v835 = vsub.f32 %v624, %v818
  %v836 = vsub.f32 %v626, %v818
  %v837 = vsub.f32 %v629, %v818
  %v838 = vsub.f32 %v631, %v818
  %v839 = vsub.f32 %v634, %v818
  %v840 = vsub.f32 %v636, %v818
  %v841 = vsub.f32 %v639, %v818
  %v842 = vsub.f32 %v641, %v818
  %v843 = vsub.f32 %v644, %v818
  %v844 = vsub.f32 %v646, %v818
  %v845 = vsub.f32 %v649, %v818
  %v846 = vsub.f32 %v651, %v818
  %v847 = vsub.f32 %v654, %v818
  %v848 = vsub.f32 %v656, %v818
  %v849 = vsub.f32 %v659, %v818
  %v850 = vsub.f32 %v661, %v818
  %v851 = vsub.f32 %v664, %v818
  %v852 = vsub.f32 %v666, %v818
  %v853 = vsub.f32 %v669, %v818
  %v854 = vsub.f32 %v671, %v818
  %v855 = vsub.f32 %v674, %v818
  %v856 = vsub.f32 %v676, %v818
  %v857 = vsub.f32 %v679, %v818
  %v858 = vsub.f32 %v681, %v818
  %v859 = vsub.f32 %v684, %v818
  %v860 = vsub.f32 %v686, %v818
  %v861 = vsub.f32 %v689, %v818
  %v862 = vsub.f32 %v691, %v818
  %v863 = vsub.f32 %v694, %v818
  %v864 = vsub.f32 %v696, %v818
  %v865 = vsub.f32 %v699, %v818
  %v866 = vsub.f32 %v701, %v818
  %v867 = vsub.f32 %v704, %v818
  %v868 = vmul.f32 %v819, %v819
  %v869 = vmul.f32 %v820, %v820
  %v870 = vmul.f32 %v821, %v821
  %v871 = vmul.f32 %v822, %v822
  %v872 = vmul.f32 %v823, %v823
  %v873 = vmul.f32 %v824, %v824
  %v874 = vmul.f32 %v825, %v825
  %v875 = vmul.f32 %v826, %v826
  %v876 = vmul.f32 %v827, %v827
  %v877 = vmul.f32 %v828, %v828
  %v878 = vmul.f32 %v829, %v829
  %v879 = vmul.f32 %v830, %v830
  %v880 = vmul.f32 %v831, %v831
  %v881 = vmul.f32 %v832, %v832
  %v882 = vmul.f32 %v833, %v833
  %v883 = vmul.f32 %v834, %v834
  %v884 = vmul.f32 %v835, %v835
  %v885 = vmul.f32 %v836, %v836
  %v886 = vmul.f32 %v837, %v837
  %v887 = vmul.f32 %v838, %v838
  %v888 = vmul.f32 %v839, %v839
  %v889 = vmul.f32 %v840, %v840
  %v890 = vmul.f32 %v841, %v841
  %v891 = vmul.f32 %v842, %v842
  %v892 = vmul.f32 %v843, %v843
  %v893 = vmul.f32 %v844, %v844
  %v894 = vmul.f32 %v845, %v845
  %v895 = vmul.f32 %v846, %v846
  %v896 = vmul.f32 %v847, %v847
  %v897 = vmul.f32 %v848, %v848
  %v898 = vmul.f32 %v849, %v849
  %v899 = vmul.f32 %v850, %v850
  %v900 = vmul.f32 %v851, %v851
  %v901 = vmul.f32 %v852, %v852
  %v902 = vmul.f32 %v853, %v853
  %v903 = vmul.f32 %v854, %v854
  %v904 = vmul.f32 %v855, %v855
  %v905 = vmul.f32 %v856, %v856
  %v906 = vmul.f32 %v857, %v857
  %v907 = vmul.f32 %v858, %v858
  %v908 = vmul.f32 %v859, %v859
  %v909 = vmul.f32 %v860, %v860
  %v910 = vmul.f32 %v861, %v861
  %v911 = vmul.f32 %v862, %v862
  %v912 = vmul.f32 %v863, %v863
  %v913 = vmul.f32 %v864, %v864
  %v914 = vmul.f32 %v865, %v865
  %v915 = vmul.f32 %v866, %v866
  %v916 = vmul.f32 %v867, %v867
  %v917 = vsel %vm707, %v868, 0.0
  %v918 = vsel %vm707, %v869, 0.0
  %v919 = vadd.f32 %v917, %v918
  %v920 = vsel %vm707, %v870, 0.0
  %v921 = vadd.f32 %v919, %v920
  %v922 = vsel %vm707, %v871, 0.0
  %v923 = vadd.f32 %v921, %v922
  %v924 = vsel %vm707, %v872, 0.0
  %v925 = vadd.f32 %v923, %v924
  %v926 = vsel %vm707, %v873, 0.0
  %v927 = vadd.f32 %v925, %v926
  %v928 = vsel %vm707, %v874, 0.0
  %v929 = vadd.f32 %v927, %v928
  %v930 = vsel %vm707, %v875, 0.0
  %v931 = vadd.f32 %v929, %v930
  %v932 = vsel %vm707, %v876, 0.0
  %v933 = vadd.f32 %v931, %v932
  %v934 = vsel %vm707, %v877, 0.0
  %v935 = vadd.f32 %v933, %v934
  %v936 = vsel %vm707, %v878, 0.0
  %v937 = vadd.f32 %v935, %v936
  %v938 = vsel %vm707, %v879, 0.0
  %v939 = vadd.f32 %v937, %v938
  %v940 = vsel %vm707, %v880, 0.0
  %v941 = vadd.f32 %v939, %v940
  %v942 = vsel %vm707, %v881, 0.0
  %v943 = vadd.f32 %v941, %v942
  %v944 = vsel %vm707, %v882, 0.0
  %v945 = vadd.f32 %v943, %v944
  %v946 = vsel %vm707, %v883, 0.0
  %v947 = vadd.f32 %v945, %v946
  %v948 = vsel %vm707, %v884, 0.0
  %v949 = vadd.f32 %v947, %v948
  %v950 = vsel %vm707, %v885, 0.0
  %v951 = vadd.f32 %v949, %v950
  %v952 = vsel %vm707, %v886, 0.0
  %v953 = vadd.f32 %v951, %v952
  %v954 = vsel %vm707, %v887, 0.0
  %v955 = vadd.f32 %v953, %v954
  %v956 = vsel %vm707, %v888, 0.0
  %v957 = vadd.f32 %v955, %v956
  %v958 = vsel %vm707, %v889, 0.0
  %v959 = vadd.f32 %v957, %v958
  %v960 = vsel %vm707, %v890, 0.0
  %v961 = vadd.f32 %v959, %v960
  %v962 = vsel %vm707, %v891, 0.0
  %v963 = vadd.f32 %v961, %v962
  %v964 = vsel %vm707, %v892, 0.0
  %v965 = vadd.f32 %v963, %v964
  %v966 = vsel %vm707, %v893, 0.0
  %v967 = vadd.f32 %v965, %v966
  %v968 = vsel %vm707, %v894, 0.0
  %v969 = vadd.f32 %v967, %v968
  %v970 = vsel %vm707, %v895, 0.0
  %v971 = vadd.f32 %v969, %v970
  %v972 = vsel %vm707, %v896, 0.0
  %v973 = vadd.f32 %v971, %v972
  %v974 = vsel %vm707, %v897, 0.0
  %v975 = vadd.f32 %v973, %v974
  %v976 = vsel %vm707, %v898, 0.0
  %v977 = vadd.f32 %v975, %v976
  %v978 = vsel %vm707, %v899, 0.0
  %v979 = vadd.f32 %v977, %v978
  %v980 = vsel %vm707, %v900, 0.0
  %v981 = vadd.f32 %v979, %v980
  %v982 = vsel %vm707, %v901, 0.0
  %v983 = vadd.f32 %v981, %v982
  %v984 = vsel %vm707, %v902, 0.0
  %v985 = vadd.f32 %v983, %v984
  %v986 = vsel %vm707, %v903, 0.0
  %v987 = vadd.f32 %v985, %v986
  %v988 = vsel %vm707, %v904, 0.0
  %v989 = vadd.f32 %v987, %v988
  %v990 = vsel %vm707, %v905, 0.0
  %v991 = vadd.f32 %v989, %v990
  %v992 = vsel %vm707, %v906, 0.0
  %v993 = vadd.f32 %v991, %v992
  %v994 = vsel %vm707, %v907, 0.0
  %v995 = vadd.f32 %v993, %v994
  %v996 = vsel %vm707, %v908, 0.0
  %v997 = vadd.f32 %v995, %v996
  %v998 = vsel %vm707, %v909, 0.0
  %v999 = vadd.f32 %v997, %v998
  %v1000 = vsel %vm707, %v910, 0.0
  %v1001 = vadd.f32 %v999, %v1000
  %v1002 = vsel %vm707, %v911, 0.0
  %v1003 = vadd.f32 %v1001, %v1002
  %v1004 = vsel %vm707, %v912, 0.0
  %v1005 = vadd.f32 %v1003, %v1004
  %v1006 = vsel %vm707, %v913, 0.0
  %v1007 = vadd.f32 %v1005, %v1006
  %v1008 = vsel %vm707, %v914, 0.0
  %v1009 = vadd.f32 %v1007, %v1008
  %v1010 = vsel %vm707, %v915, 0.0
  %v1011 = vadd.f32 %v1009, %v1010
  %v1012 = vsel %vm707, %v916, 0.0
  %v1013 = vadd.f32 %v1011, %v1012
  %v1014 = vrot.slane %v1013, 4
  %v1015 = vadd.f32 %v1013, %v1014
  %v1016 = vrot.slane %v1015, 2
  %v1017 = vadd.f32 %v1015, %v1016
  %v1018 = vrot.slane %v1017, 1
  %v1019 = vadd.f32 %v1017, %v1018
  %v1020 = vmul.f32 %v1019, %v817
  %v1021 = vld [vmem:[%s2] sm:$0x1]
  %v1022 = vadd.f32 %v1020, 1e-05
  %v1023 = vrsqrt.pop %v1022
  %v1024 = vmul.f32 %v1023, %v1022
  %v1025 = vmul.f32 %v1024, %v1023
  %v1026 = vmul.f32 0.5, %v1025
  %v1027 = vsub.f32 1.5, %v1026
  %v1028 = vmul.f32 %v1023, %v1027
  %vm1029 = vweird.f32 %v1022
  %vm1030 = vweird.f32 %v1023
  %vm1031 = vmor %vm1029, %vm1030
  %v1032 = vsel %vm1031, %v1023, %v1028
  %v1033 = vmul.f32 %v1021, %v1032
  %v1035 = vperm.slane %v1033, 0
  %v1037 = vmul.f32 %v819, %v1035
  %v1038 = vmul.f32 %v820, %v1035
  %v1039 = vmul.f32 %v821, %v1035
  %v1040 = vmul.f32 %v822, %v1035
  %v1041 = vmul.f32 %v823, %v1035
  %v1042 = vmul.f32 %v824, %v1035
  %v1043 = vmul.f32 %v825, %v1035
  %v1044 = vmul.f32 %v826, %v1035
  %v1045 = vmul.f32 %v827, %v1035
  %v1046 = vmul.f32 %v828, %v1035
  %v1047 = vmul.f32 %v829, %v1035
  %v1048 = vmul.f32 %v830, %v1035
  %v1049 = vmul.f32 %v831, %v1035
  %v1050 = vmul.f32 %v832, %v1035
  %v1051 = vmul.f32 %v833, %v1035
  %v1052 = vmul.f32 %v834, %v1035
  %v1053 = vmul.f32 %v835, %v1035
  %v1054 = vmul.f32 %v836, %v1035
  %v1055 = vmul.f32 %v837, %v1035
  %v1056 = vmul.f32 %v838, %v1035
  %v1057 = vmul.f32 %v839, %v1035
  %v1058 = vmul.f32 %v840, %v1035
  %v1059 = vmul.f32 %v841, %v1035
  %v1060 = vmul.f32 %v842, %v1035
  %v1061 = vmul.f32 %v843, %v1035
  %v1062 = vmul.f32 %v844, %v1035
  %v1063 = vmul.f32 %v845, %v1035
  %v1064 = vmul.f32 %v846, %v1035
  %v1065 = vmul.f32 %v847, %v1035
  %v1066 = vmul.f32 %v848, %v1035
  %v1067 = vmul.f32 %v849, %v1035
  %v1068 = vmul.f32 %v850, %v1035
  %v1069 = vmul.f32 %v851, %v1035
  %v1070 = vmul.f32 %v852, %v1035
  %v1071 = vmul.f32 %v853, %v1035
  %v1072 = vmul.f32 %v854, %v1035
  %v1073 = vmul.f32 %v855, %v1035
  %v1074 = vmul.f32 %v856, %v1035
  %v1075 = vmul.f32 %v857, %v1035
  %v1076 = vmul.f32 %v858, %v1035
  %v1077 = vmul.f32 %v859, %v1035
  %v1078 = vmul.f32 %v860, %v1035
  %v1079 = vmul.f32 %v861, %v1035
  %v1080 = vmul.f32 %v862, %v1035
  %v1081 = vmul.f32 %v863, %v1035
  %v1082 = vmul.f32 %v864, %v1035
  %v1083 = vmul.f32 %v865, %v1035
  %v1084 = vmul.f32 %v866, %v1035
  %v1085 = vmul.f32 %v867, %v1035
  %v1086 = vld [vmem:[%s3] sm:$0x1]
  %v1088 = vperm.slane %v1086, 0
  %v1090 = vadd.f32 %v1037, %v1088
  %v1091 = vadd.f32 %v1038, %v1088
  %v1092 = vadd.f32 %v1039, %v1088
  %v1093 = vadd.f32 %v1040, %v1088
  %v1094 = vadd.f32 %v1041, %v1088
  %v1095 = vadd.f32 %v1042, %v1088
  %v1096 = vadd.f32 %v1043, %v1088
  %v1097 = vadd.f32 %v1044, %v1088
  %v1098 = vadd.f32 %v1045, %v1088
  %v1099 = vadd.f32 %v1046, %v1088
  %v1100 = vadd.f32 %v1047, %v1088
  %v1101 = vadd.f32 %v1048, %v1088
  %v1102 = vadd.f32 %v1049, %v1088
  %v1103 = vadd.f32 %v1050, %v1088
  %v1104 = vadd.f32 %v1051, %v1088
  %v1105 = vadd.f32 %v1052, %v1088
  %v1106 = vadd.f32 %v1053, %v1088
  %v1107 = vadd.f32 %v1054, %v1088
  %v1108 = vadd.f32 %v1055, %v1088
  %v1109 = vadd.f32 %v1056, %v1088
  %v1110 = vadd.f32 %v1057, %v1088
  %v1111 = vadd.f32 %v1058, %v1088
  %v1112 = vadd.f32 %v1059, %v1088
  %v1113 = vadd.f32 %v1060, %v1088
  %v1114 = vadd.f32 %v1061, %v1088
  %v1115 = vadd.f32 %v1062, %v1088
  %v1116 = vadd.f32 %v1063, %v1088
  %v1117 = vadd.f32 %v1064, %v1088
  %v1118 = vadd.f32 %v1065, %v1088
  %v1119 = vadd.f32 %v1066, %v1088
  %v1120 = vadd.f32 %v1067, %v1088
  %v1121 = vadd.f32 %v1068, %v1088
  %v1122 = vadd.f32 %v1069, %v1088
  %v1123 = vadd.f32 %v1070, %v1088
  %v1124 = vadd.f32 %v1071, %v1088
  %v1125 = vadd.f32 %v1072, %v1088
  %v1126 = vadd.f32 %v1073, %v1088
  %v1127 = vadd.f32 %v1074, %v1088
  %v1128 = vadd.f32 %v1075, %v1088
  %v1129 = vadd.f32 %v1076, %v1088
  %v1130 = vadd.f32 %v1077, %v1088
  %v1131 = vadd.f32 %v1078, %v1088
  %v1132 = vadd.f32 %v1079, %v1088
  %v1133 = vadd.f32 %v1080, %v1088
  %v1134 = vadd.f32 %v1081, %v1088
  %v1135 = vadd.f32 %v1082, %v1088
  %v1136 = vadd.f32 %v1083, %v1088
  %v1137 = vadd.f32 %v1084, %v1088
  %v1138 = vadd.f32 %v1085, %v1088
  %v1139 = vmul.f32 %v1090, 0.2
  %v1140 = vmul.f32 %v1091, 0.2
  %v1141 = vmul.f32 %v1092, 0.2
  %v1142 = vmul.f32 %v1093, 0.2
  %v1143 = vmul.f32 %v1094, 0.2
  %v1144 = vmul.f32 %v1095, 0.2
  %v1145 = vmul.f32 %v1096, 0.2
  %v1146 = vmul.f32 %v1097, 0.2
  %v1147 = vmul.f32 %v1098, 0.2
  %v1148 = vmul.f32 %v1099, 0.2
  %v1149 = vmul.f32 %v1100, 0.2
  %v1150 = vmul.f32 %v1101, 0.2
  %v1151 = vmul.f32 %v1102, 0.2
  %v1152 = vmul.f32 %v1103, 0.2
  %v1153 = vmul.f32 %v1104, 0.2
  %v1154 = vmul.f32 %v1105, 0.2
  %v1155 = vmul.f32 %v1106, 0.2
  %v1156 = vmul.f32 %v1107, 0.2
  %v1157 = vmul.f32 %v1108, 0.2
  %v1158 = vmul.f32 %v1109, 0.2
  %v1159 = vmul.f32 %v1110, 0.2
  %v1160 = vmul.f32 %v1111, 0.2
  %v1161 = vmul.f32 %v1112, 0.2
  %v1162 = vmul.f32 %v1113, 0.2
  %v1163 = vmul.f32 %v1114, 0.2
  %v1164 = vmul.f32 %v1115, 0.2
  %v1165 = vmul.f32 %v1116, 0.2
  %v1166 = vmul.f32 %v1117, 0.2
  %v1167 = vmul.f32 %v1118, 0.2
  %v1168 = vmul.f32 %v1119, 0.2
  %v1169 = vmul.f32 %v1120, 0.2
  %v1170 = vmul.f32 %v1121, 0.2
  %v1171 = vmul.f32 %v1122, 0.2
  %v1172 = vmul.f32 %v1123, 0.2
  %v1173 = vmul.f32 %v1124, 0.2
  %v1174 = vmul.f32 %v1125, 0.2
  %v1175 = vmul.f32 %v1126, 0.2
  %v1176 = vmul.f32 %v1127, 0.2
  %v1177 = vmul.f32 %v1128, 0.2
  %v1178 = vmul.f32 %v1129, 0.2
  %v1179 = vmul.f32 %v1130, 0.2
  %v1180 = vmul.f32 %v1131, 0.2
  %v1181 = vmul.f32 %v1132, 0.2
  %v1182 = vmul.f32 %v1133, 0.2
  %v1183 = vmul.f32 %v1134, 0.2
  %v1184 = vmul.f32 %v1135, 0.2
  %v1185 = vmul.f32 %v1136, 0.2
  %v1186 = vmul.f32 %v1137, 0.2
  %v1187 = vmul.f32 %v1138, 0.2
  %v1188 = vmax.f32 %v1090, %v1139
  %v1189 = vmax.f32 %v1091, %v1140
  %v1190 = vmax.f32 %v1092, %v1141
  %v1191 = vmax.f32 %v1093, %v1142
  %v1192 = vmax.f32 %v1094, %v1143
  %v1193 = vmax.f32 %v1095, %v1144
  %v1194 = vmax.f32 %v1096, %v1145
  %v1195 = vmax.f32 %v1097, %v1146
  %v1196 = vmax.f32 %v1098, %v1147
  %v1197 = vmax.f32 %v1099, %v1148
  %v1198 = vmax.f32 %v1100, %v1149
  %v1199 = vmax.f32 %v1101, %v1150
  %v1200 = vmax.f32 %v1102, %v1151
  %v1201 = vmax.f32 %v1103, %v1152
  %v1202 = vmax.f32 %v1104, %v1153
  %v1203 = vmax.f32 %v1105, %v1154
  %v1204 = vmax.f32 %v1106, %v1155
  %v1205 = vmax.f32 %v1107, %v1156
  %v1206 = vmax.f32 %v1108, %v1157
  %v1207 = vmax.f32 %v1109, %v1158
  %v1208 = vmax.f32 %v1110, %v1159
  %v1209 = vmax.f32 %v1111, %v1160
  %v1210 = vmax.f32 %v1112, %v1161
  %v1211 = vmax.f32 %v1113, %v1162
  %v1212 = vmax.f32 %v1114, %v1163
  %v1213 = vmax.f32 %v1115, %v1164
  %v1214 = vmax.f32 %v1116, %v1165
  %v1215 = vmax.f32 %v1117, %v1166
  %v1216 = vmax.f32 %v1118, %v1167
  %v1217 = vmax.f32 %v1119, %v1168
  %v1218 = vmax.f32 %v1120, %v1169
  %v1219 = vmax.f32 %v1121, %v1170
  %v1220 = vmax.f32 %v1122, %v1171
  %v1221 = vmax.f32 %v1123, %v1172
  %v1222 = vmax.f32 %v1124, %v1173
  %v1223 = vmax.f32 %v1125, %v1174
  %v1224 = vmax.f32 %v1126, %v1175
  %v1225 = vmax.f32 %v1127, %v1176
  %v1226 = vmax.f32 %v1128, %v1177
  %v1227 = vmax.f32 %v1129, %v1178
  %v1228 = vmax.f32 %v1130, %v1179
  %v1229 = vmax.f32 %v1131, %v1180
  %v1230 = vmax.f32 %v1132, %v1181
  %v1231 = vmax.f32 %v1133, %v1182
  %v1232 = vmax.f32 %v1134, %v1183
  %v1233 = vmax.f32 %v1135, %v1184
  %v1234 = vmax.f32 %v1136, %v1185
  %v1235 = vmax.f32 %v1137, %v1186
  %v1236 = vmax.f32 %v1138, %v1187
  %v1237 = vpack.c.bf16 %v1188, %v1188
  %v1238 = vpack.c.bf16 %v1189, %v1189
  %v1239 = vpack.c.bf16 %v1190, %v1190
  %v1240 = vpack.c.bf16 %v1191, %v1191
  %v1241 = vpack.c.bf16 %v1192, %v1192
  %v1242 = vpack.c.bf16 %v1193, %v1193
  %v1243 = vpack.c.bf16 %v1194, %v1194
  %v1244 = vpack.c.bf16 %v1195, %v1195
  %v1245 = vpack.c.bf16 %v1196, %v1196
  %v1246 = vpack.c.bf16 %v1197, %v1197
  %v1247 = vpack.c.bf16 %v1198, %v1198
  %v1248 = vpack.c.bf16 %v1199, %v1199
  %v1249 = vpack.c.bf16 %v1200, %v1200
  %v1250 = vpack.c.bf16 %v1201, %v1201
  %v1251 = vpack.c.bf16 %v1202, %v1202
  %v1252 = vpack.c.bf16 %v1203, %v1203
  %v1253 = vpack.c.bf16 %v1204, %v1204
  %v1254 = vpack.c.bf16 %v1205, %v1205
  %v1255 = vpack.c.bf16 %v1206, %v1206
  %v1256 = vpack.c.bf16 %v1207, %v1207
  %v1257 = vpack.c.bf16 %v1208, %v1208
  %v1258 = vpack.c.bf16 %v1209, %v1209
  %v1259 = vpack.c.bf16 %v1210, %v1210
  %v1260 = vpack.c.bf16 %v1211, %v1211
  %v1261 = vpack.c.bf16 %v1212, %v1212
  %v1262 = vpack.c.bf16 %v1213, %v1213
  %v1263 = vpack.c.bf16 %v1214, %v1214
  %v1264 = vpack.c.bf16 %v1215, %v1215
  %v1265 = vpack.c.bf16 %v1216, %v1216
  %v1266 = vpack.c.bf16 %v1217, %v1217
  %v1267 = vpack.c.bf16 %v1218, %v1218
  %v1268 = vpack.c.bf16 %v1219, %v1219
  %v1269 = vpack.c.bf16 %v1220, %v1220
  %v1270 = vpack.c.bf16 %v1221, %v1221
  %v1271 = vpack.c.bf16 %v1222, %v1222
  %v1272 = vpack.c.bf16 %v1223, %v1223
  %v1273 = vpack.c.bf16 %v1224, %v1224
  %v1274 = vpack.c.bf16 %v1225, %v1225
  %v1275 = vpack.c.bf16 %v1226, %v1226
  %v1276 = vpack.c.bf16 %v1227, %v1227
  %v1277 = vpack.c.bf16 %v1228, %v1228
  %v1278 = vpack.c.bf16 %v1229, %v1229
  %v1279 = vpack.c.bf16 %v1230, %v1230
  %v1280 = vpack.c.bf16 %v1231, %v1231
  %v1281 = vpack.c.bf16 %v1232, %v1232
  %v1282 = vpack.c.bf16 %v1233, %v1233
  %v1283 = vpack.c.bf16 %v1234, %v1234
  %v1284 = vpack.c.bf16 %v1235, %v1235
  %v1285 = vpack.c.bf16 %v1236, %v1236
  %vm1286 = vcmask 257024
  %1287 = vst.msk [vmem:[%s4] sm:$0xf] %vm1286, %v1237
  %1288 = vst.msk [vmem:[%s4 + $0x4] sm:$0xf] %vm1286, %v1238
  %1289 = vst.msk [vmem:[%s4 + $0x8] sm:$0xf] %vm1286, %v1239
  %1290 = vst.msk [vmem:[%s4 + $0xc] sm:$0xf] %vm1286, %v1240
  %1291 = vst.msk [vmem:[%s4 + $0x10] sm:$0xf] %vm1286, %v1241
  %1292 = vst.msk [vmem:[%s4 + $0x14] sm:$0xf] %vm1286, %v1242
  %1293 = vst.msk [vmem:[%s4 + $0x18] sm:$0xf] %vm1286, %v1243
  %1294 = vst.msk [vmem:[%s4 + $0x1c] sm:$0xf] %vm1286, %v1244
  %1295 = vst.msk [vmem:[%s4 + $0x20] sm:$0xf] %vm1286, %v1245
  %1296 = vst.msk [vmem:[%s4 + $0x24] sm:$0xf] %vm1286, %v1246
  %1297 = vst.msk [vmem:[%s4 + $0x28] sm:$0xf] %vm1286, %v1247
  %1298 = vst.msk [vmem:[%s4 + $0x2c] sm:$0xf] %vm1286, %v1248
  %1299 = vst.msk [vmem:[%s4 + $0x30] sm:$0xf] %vm1286, %v1249
  %1300 = vst.msk [vmem:[%s4 + $0x34] sm:$0xf] %vm1286, %v1250
  %1301 = vst.msk [vmem:[%s4 + $0x38] sm:$0xf] %vm1286, %v1251
  %1302 = vst.msk [vmem:[%s4 + $0x3c] sm:$0xf] %vm1286, %v1252
  %1303 = vst.msk [vmem:[%s4 + $0x40] sm:$0xf] %vm1286, %v1253
  %1304 = vst.msk [vmem:[%s4 + $0x44] sm:$0xf] %vm1286, %v1254
  %1305 = vst.msk [vmem:[%s4 + $0x48] sm:$0xf] %vm1286, %v1255
  %1306 = vst.msk [vmem:[%s4 + $0x4c] sm:$0xf] %vm1286, %v1256
  %1307 = vst.msk [vmem:[%s4 + $0x50] sm:$0xf] %vm1286, %v1257
  %1308 = vst.msk [vmem:[%s4 + $0x54] sm:$0xf] %vm1286, %v1258
  %1309 = vst.msk [vmem:[%s4 + $0x58] sm:$0xf] %vm1286, %v1259
  %1310 = vst.msk [vmem:[%s4 + $0x5c] sm:$0xf] %vm1286, %v1260
  %1311 = vst.msk [vmem:[%s4 + $0x60] sm:$0xf] %vm1286, %v1261
  %1312 = vst.msk [vmem:[%s4 + $0x64] sm:$0xf] %vm1286, %v1262
  %1313 = vst.msk [vmem:[%s4 + $0x68] sm:$0xf] %vm1286, %v1263
  %1314 = vst.msk [vmem:[%s4 + $0x6c] sm:$0xf] %vm1286, %v1264
  %1315 = vst.msk [vmem:[%s4 + $0x70] sm:$0xf] %vm1286, %v1265
  %1316 = vst.msk [vmem:[%s4 + $0x74] sm:$0xf] %vm1286, %v1266
  %1317 = vst.msk [vmem:[%s4 + $0x78] sm:$0xf] %vm1286, %v1267
  %1318 = vst.msk [vmem:[%s4 + $0x7c] sm:$0xf] %vm1286, %v1268
  %1319 = vst.msk [vmem:[%s4 + $0x80] sm:$0xf] %vm1286, %v1269
  %1320 = vst.msk [vmem:[%s4 + $0x84] sm:$0xf] %vm1286, %v1270
  %1321 = vst.msk [vmem:[%s4 + $0x88] sm:$0xf] %vm1286, %v1271
  %1322 = vst.msk [vmem:[%s4 + $0x8c] sm:$0xf] %vm1286, %v1272
  %1323 = vst.msk [vmem:[%s4 + $0x90] sm:$0xf] %vm1286, %v1273
  %1324 = vst.msk [vmem:[%s4 + $0x94] sm:$0xf] %vm1286, %v1274
  %1325 = vst.msk [vmem:[%s4 + $0x98] sm:$0xf] %vm1286, %v1275
  %1326 = vst.msk [vmem:[%s4 + $0x9c] sm:$0xf] %vm1286, %v1276
  %1327 = vst.msk [vmem:[%s4 + $0xa0] sm:$0xf] %vm1286, %v1277
  %1328 = vst.msk [vmem:[%s4 + $0xa4] sm:$0xf] %vm1286, %v1278
  %1329 = vst.msk [vmem:[%s4 + $0xa8] sm:$0xf] %vm1286, %v1279
  %1330 = vst.msk [vmem:[%s4 + $0xac] sm:$0xf] %vm1286, %v1280
  %1331 = vst.msk [vmem:[%s4 + $0xb0] sm:$0xf] %vm1286, %v1281
  %1332 = vst.msk [vmem:[%s4 + $0xb4] sm:$0xf] %vm1286, %v1282
  %1333 = vst.msk [vmem:[%s4 + $0xb8] sm:$0xf] %vm1286, %v1283
  %1334 = vst.msk [vmem:[%s4 + $0xbc] sm:$0xf] %vm1286, %v1284
  %1335 = vst.msk [vmem:[%s4 + $0xc0] sm:$0xf] %vm1286, %v1285
  // Predicated region
  $region18: #{classifier_forward.4} parent=0 // pred_check
    _
  $region19: #{classifier_forward.4} parent=0 // pred_check_branch
    %1337 = sbr.rel (0) target = $region21
  $region20: #{classifier_forward.4} parent=0 // pred_region
    _
  $region21: #{classifier_forward.4} parent=0 // pred_fallthru
    _
  // Predicated region
  $region22: #{classifier_forward.4} parent=0 // pred_check
    _
  $region23: #{classifier_forward.4} parent=0 // pred_check_branch
    %1339 = sbr.rel (0) target = $region25
  $region24: #{classifier_forward.4} parent=0 // pred_region
    _
  $region25: #{classifier_forward.4} parent=0 // pred_fallthru
    _

// kernel: classifier_forward.5
$region0: #{classifier_forward.5}
  #allocation0 [shape = 'u32[]', space=smem, size = 0x4, offset = 0x4, fixed_abs, tag = 'smem constant byte address 0x4 - core index']
  #allocation1 [shape = 'u32[72,128]{1,0:T(1,128)}', space=vmem, size = 0x9000, scoped, tag = 'internal scratch']
  %s0 = inlined_call_operand.vmem [shape: bf16[32,512], index: 0, kind: input, shape index: {}]
  %s1 = inlined_call_operand.vmem [shape: bf16[512,64], index: 1, kind: input, shape index: {}]
  %s2 = inlined_call_operand.vmem [shape: f32[1,64], index: 2, kind: input, shape index: {}]
  %s3 = inlined_call_operand.vmem [shape: f32[1,64], index: 3, kind: input, shape index: {}]
  %s4 = inlined_call_operand.vmem [shape: bf16[32,64], index: 4, kind: output, shape index: {}]
  %s5 = sld [smem:[#allocation0]]
  $region26: #{classifier_forward.5} parent=0
    _
  %s7 = ssub.s32 1, %s5
  %s8 = scalar_select 0, %s7, %s5
  // Predicated region
  $region2: #{classifier_forward.5} parent=0 // pred_check
    _
  $region3: #{classifier_forward.5} parent=0 // pred_check_branch
    %10 = sbr.rel (0) target = $region5
  $region4: #{classifier_forward.5} parent=0 // pred_region
    _
  $region5: #{classifier_forward.5} parent=0 // pred_fallthru
    _
  // Predicated region
  $region6: #{classifier_forward.5} parent=0 // pred_check
    _
  $region7: #{classifier_forward.5} parent=0 // pred_check_branch
    %12 = sbr.rel (0) target = $region9
  $region8: #{classifier_forward.5} parent=0 // pred_region
    _
  $region9: #{classifier_forward.5} parent=0 // pred_fallthru
    _
  // Predicated region
  $region10: #{classifier_forward.5} parent=0 // pred_check
    _
  $region11: #{classifier_forward.5} parent=0 // pred_check_branch
    %14 = sbr.rel (0) target = $region13
  $region12: #{classifier_forward.5} parent=0 // pred_region
    _
  $region13: #{classifier_forward.5} parent=0 // pred_fallthru
    _
  // Predicated region
  $region14: #{classifier_forward.5} parent=0 // pred_check
    _
  $region15: #{classifier_forward.5} parent=0 // pred_check_branch
    %16 = sbr.rel (0) target = $region17
  $region16: #{classifier_forward.5} parent=0 // pred_region
    _
  $region17: #{classifier_forward.5} parent=0 // pred_fallthru
    _
  %v17 = vld [vmem:[%s0] sm:$0xff]
  %v18 = vld [vmem:[%s0 + $0x8] sm:$0xff]
  %v19 = vld [vmem:[%s0 + $0x10] sm:$0xff]
  %v20 = vld [vmem:[%s0 + $0x18] sm:$0xff]
  %v21 = vld [vmem:[%s0 + $0x20] sm:$0xff]
  %v22 = vld [vmem:[%s0 + $0x28] sm:$0xff]
  %v23 = vld [vmem:[%s0 + $0x30] sm:$0xff]
  %v24 = vld [vmem:[%s0 + $0x38] sm:$0xff]
  %v25 = vld [vmem:[%s1] sm:$0xf]
  %v26 = vld [vmem:[%s1 + $0x4] sm:$0xf]
  %v27 = vld [vmem:[%s1 + $0x8] sm:$0xf]
  %v28 = vld [vmem:[%s1 + $0xc] sm:$0xf]
  %v29 = vld [vmem:[%s1 + $0x10] sm:$0xf]
  %v30 = vld [vmem:[%s1 + $0x14] sm:$0xf]
  %v31 = vld [vmem:[%s1 + $0x18] sm:$0xf]
  %v32 = vld [vmem:[%s1 + $0x1c] sm:$0xf]
  %v33 = vld [vmem:[%s1 + $0x20] sm:$0xf]
  %v34 = vld [vmem:[%s1 + $0x24] sm:$0xf]
  %v35 = vld [vmem:[%s1 + $0x28] sm:$0xf]
  %v36 = vld [vmem:[%s1 + $0x2c] sm:$0xf]
  %v37 = vld [vmem:[%s1 + $0x30] sm:$0xf]
  %v38 = vld [vmem:[%s1 + $0x34] sm:$0xf]
  %v39 = vld [vmem:[%s1 + $0x38] sm:$0xf]
  %v40 = vld [vmem:[%s1 + $0x3c] sm:$0xf]
  %v41 = vld [vmem:[%s1 + $0x40] sm:$0xf]
  %v42 = vld [vmem:[%s1 + $0x44] sm:$0xf]
  %v43 = vld [vmem:[%s1 + $0x48] sm:$0xf]
  %v44 = vld [vmem:[%s1 + $0x4c] sm:$0xf]
  %v45 = vld [vmem:[%s1 + $0x50] sm:$0xf]
  %v46 = vld [vmem:[%s1 + $0x54] sm:$0xf]
  %v47 = vld [vmem:[%s1 + $0x58] sm:$0xf]
  %v48 = vld [vmem:[%s1 + $0x5c] sm:$0xf]
  %v49 = vld [vmem:[%s1 + $0x60] sm:$0xf]
  %v50 = vld [vmem:[%s1 + $0x64] sm:$0xf]
  %v51 = vld [vmem:[%s1 + $0x68] sm:$0xf]
  %v52 = vld [vmem:[%s1 + $0x6c] sm:$0xf]
  %v53 = vld [vmem:[%s1 + $0x70] sm:$0xf]
  %v54 = vld [vmem:[%s1 + $0x74] sm:$0xf]
  %v55 = vld [vmem:[%s1 + $0x78] sm:$0xf]
  %v56 = vld [vmem:[%s1 + $0x7c] sm:$0xf]
  %v57 = vld [vmem:[%s1 + $0x80] sm:$0xf]
  %v58 = vld [vmem:[%s1 + $0x84] sm:$0xf]
  %v59 = vld [vmem:[%s1 + $0x88] sm:$0xf]
  %v60 = vld [vmem:[%s1 + $0x8c] sm:$0xf]
  %v61 = vld [vmem:[%s1 + $0x90] sm:$0xf]
  %v62 = vld [vmem:[%s1 + $0x94] sm:$0xf]
  %v63 = vld [vmem:[%s1 + $0x98] sm:$0xf]
  %v64 = vld [vmem:[%s1 + $0x9c] sm:$0xf]
  %v65 = vld [vmem:[%s1 + $0xa0] sm:$0xf]
  %v66 = vld [vmem:[%s1 + $0xa4] sm:$0xf]
  %v67 = vld [vmem:[%s1 + $0xa8] sm:$0xf]
  %v68 = vld [vmem:[%s1 + $0xac] sm:$0xf]
  %v69 = vld [vmem:[%s1 + $0xb0] sm:$0xf]
  %v70 = vld [vmem:[%s1 + $0xb4] sm:$0xf]
  %v71 = vld [vmem:[%s1 + $0xb8] sm:$0xf]
  %v72 = vld [vmem:[%s1 + $0xbc] sm:$0xf]
  %v73 = vld [vmem:[%s1 + $0xc0] sm:$0xf]
  %v74 = vld [vmem:[%s1 + $0xc4] sm:$0xf]
  %v75 = vld [vmem:[%s1 + $0xc8] sm:$0xf]
  %v76 = vld [vmem:[%s1 + $0xcc] sm:$0xf]
  %v77 = vld [vmem:[%s1 + $0xd0] sm:$0xf]
  %v78 = vld [vmem:[%s1 + $0xd4] sm:$0xf]
  %v79 = vld [vmem:[%s1 + $0xd8] sm:$0xf]
  %v80 = vld [vmem:[%s1 + $0xdc] sm:$0xf]
  %v81 = vld [vmem:[%s1 + $0xe0] sm:$0xf]
  %v82 = vld [vmem:[%s1 + $0xe4] sm:$0xf]
  %v83 = vld [vmem:[%s1 + $0xe8] sm:$0xf]
  %v84 = vld [vmem:[%s1 + $0xec] sm:$0xf]
  %v85 = vld [vmem:[%s1 + $0xf0] sm:$0xf]
  %v86 = vld [vmem:[%s1 + $0xf4] sm:$0xf]
  %v87 = vld [vmem:[%s1 + $0xf8] sm:$0xf]
  %v88 = vld [vmem:[%s1 + $0xfc] sm:$0xf]
  %v97 = vunpack.c.l.b16 %v17
  %v98 = vunpack.c.h.b16 %v17
  %v99 = vunpack.c.l.b16 %v18
  %v100 = vunpack.c.h.b16 %v18
  %v101 = vunpack.c.l.b16 %v19
  %v102 = vunpack.c.h.b16 %v19
  %v103 = vunpack.c.l.b16 %v20
  %v104 = vunpack.c.h.b16 %v20
  %v105 = vunpack.c.l.b16 %v21
  %v106 = vunpack.c.h.b16 %v21
  %v107 = vunpack.c.l.b16 %v22
  %v108 = vunpack.c.h.b16 %v22
  %v109 = vunpack.c.l.b16 %v23
  %v110 = vunpack.c.h.b16 %v23
  %v111 = vunpack.c.l.b16 %v24
  %v112 = vunpack.c.h.b16 %v24
  %v113 = vpack.c.b16 %v101, %v97
  %v114 = vpack.c.b16 %v102, %v98
  %v115 = vpack.c.b16 %v103, %v99
  %v116 = vpack.c.b16 %v104, %v100
  %v117 = vpack.c.b16 %v109, %v105
  %v118 = vpack.c.b16 %v110, %v106
  %v119 = vpack.c.b16 %v111, %v107
  %v120 = vpack.c.b16 %v112, %v108
  %v193 = vunpack.c.l.b16 %v25
  %v194 = vunpack.c.l.b16 %v26
  %v195 = vunpack.c.l.b16 %v27
  %v196 = vunpack.c.l.b16 %v28
  %v197 = vunpack.c.l.b16 %v29
  %v198 = vunpack.c.l.b16 %v30
  %v199 = vunpack.c.l.b16 %v31
  %v200 = vunpack.c.l.b16 %v32
  %v201 = vunpack.c.l.b16 %v33
  %v202 = vunpack.c.l.b16 %v34
  %v203 = vunpack.c.l.b16 %v35
  %v204 = vunpack.c.l.b16 %v36
  %v205 = vunpack.c.l.b16 %v37
  %v206 = vunpack.c.l.b16 %v38
  %v207 = vunpack.c.l.b16 %v39
  %v208 = vunpack.c.l.b16 %v40
  %v209 = vunpack.c.l.b16 %v41
  %v210 = vunpack.c.l.b16 %v42
  %v211 = vunpack.c.l.b16 %v43
  %v212 = vunpack.c.l.b16 %v44
  %v213 = vunpack.c.l.b16 %v45
  %v214 = vunpack.c.l.b16 %v46
  %v215 = vunpack.c.l.b16 %v47
  %v216 = vunpack.c.l.b16 %v48
  %v217 = vunpack.c.l.b16 %v49
  %v218 = vunpack.c.l.b16 %v50
  %v219 = vunpack.c.l.b16 %v51
  %v220 = vunpack.c.l.b16 %v52
  %v221 = vunpack.c.l.b16 %v53
  %v222 = vunpack.c.l.b16 %v54
  %v223 = vunpack.c.l.b16 %v55
  %v224 = vunpack.c.l.b16 %v56
  %v225 = vunpack.c.l.b16 %v57
  %v226 = vunpack.c.l.b16 %v58
  %v227 = vunpack.c.l.b16 %v59
  %v228 = vunpack.c.l.b16 %v60
  %v229 = vunpack.c.l.b16 %v61
  %v230 = vunpack.c.l.b16 %v62
  %v231 = vunpack.c.l.b16 %v63
  %v232 = vunpack.c.l.b16 %v64
  %v233 = vunpack.c.l.b16 %v65
  %v234 = vunpack.c.l.b16 %v66
  %v235 = vunpack.c.l.b16 %v67
  %v236 = vunpack.c.l.b16 %v68
  %v237 = vunpack.c.l.b16 %v69
  %v238 = vunpack.c.l.b16 %v70
  %v239 = vunpack.c.l.b16 %v71
  %v240 = vunpack.c.l.b16 %v72
  %v241 = vunpack.c.l.b16 %v73
  %v242 = vunpack.c.l.b16 %v74
  %v243 = vunpack.c.l.b16 %v75
  %v244 = vunpack.c.l.b16 %v76
  %v245 = vunpack.c.l.b16 %v77
  %v246 = vunpack.c.l.b16 %v78
  %v247 = vunpack.c.l.b16 %v79
  %v248 = vunpack.c.l.b16 %v80
  %v249 = vunpack.c.l.b16 %v81
  %v250 = vunpack.c.l.b16 %v82
  %v251 = vunpack.c.l.b16 %v83
  %v252 = vunpack.c.l.b16 %v84
  %v253 = vunpack.c.l.b16 %v85
  %v254 = vunpack.c.l.b16 %v86
  %v255 = vunpack.c.l.b16 %v87
  %v256 = vunpack.c.l.b16 %v88
  %v257 = vpack.c.b16 %v194, %v193
  %v258 = vpack.c.b16 %v196, %v195
  %v259 = vpack.c.b16 %v198, %v197
  %v260 = vpack.c.b16 %v200, %v199
  %v261 = vpack.c.b16 %v202, %v201
  %v262 = vpack.c.b16 %v204, %v203
  %v263 = vpack.c.b16 %v206, %v205
  %v264 = vpack.c.b16 %v208, %v207
  %v265 = vpack.c.b16 %v210, %v209
  %v266 = vpack.c.b16 %v212, %v211
  %v267 = vpack.c.b16 %v214, %v213
  %v268 = vpack.c.b16 %v216, %v215
  %v269 = vpack.c.b16 %v218, %v217
  %v270 = vpack.c.b16 %v220, %v219
  %v271 = vpack.c.b16 %v222, %v221
  %v272 = vpack.c.b16 %v224, %v223
  %v273 = vpack.c.b16 %v226, %v225
  %v274 = vpack.c.b16 %v228, %v227
  %v275 = vpack.c.b16 %v230, %v229
  %v276 = vpack.c.b16 %v232, %v231
  %v277 = vpack.c.b16 %v234, %v233
  %v278 = vpack.c.b16 %v236, %v235
  %v279 = vpack.c.b16 %v238, %v237
  %v280 = vpack.c.b16 %v240, %v239
  %v281 = vpack.c.b16 %v242, %v241
  %v282 = vpack.c.b16 %v244, %v243
  %v283 = vpack.c.b16 %v246, %v245
  %v284 = vpack.c.b16 %v248, %v247
  %v285 = vpack.c.b16 %v250, %v249
  %v286 = vpack.c.b16 %v252, %v251
  %v287 = vpack.c.b16 %v254, %v253
  %v288 = vpack.c.b16 %v256, %v255
  %321 = vmatpush.bf16.msra.mxu0 %v264
  %322 = vmatpush.bf16.msra.mxu0 %v263
  %323 = vmatpush.bf16.msra.mxu0 %v262
  %324 = vmatpush.bf16.msra.mxu0 %v261
  %325 = vmatpush.bf16.msra.mxu0 %v260
  %326 = vmatpush.bf16.msra.mxu0 %v259
  %327 = vmatpush.bf16.msra.mxu0 %v258
  %328 = vmatpush.bf16.msra.mxu0 %v257
  %329 = vmatmul.bf16.gmra.mxu0 %v113
  %v330 = vpop.f32.mrf.mxu0
  %v331 = vadd.f32 0.0, %v330
  %v332 = vpop.f32.mrf.mxu0
  %v333 = vadd.f32 0.0, %v332
  %334 = vmatmul.bf16.gmra.mxu0 %v117
  %v335 = vpop.f32.mrf.mxu0
  %v336 = vadd.f32 0.0, %v335
  %v337 = vpop.f32.mrf.mxu0
  %v338 = vadd.f32 0.0, %v337
  %339 = vdwg.mxu0
  %340 = vmatpush.bf16.msra.mxu0 %v272
  %341 = vmatpush.bf16.msra.mxu0 %v271
  %342 = vmatpush.bf16.msra.mxu0 %v270
  %343 = vmatpush.bf16.msra.mxu0 %v269
  %344 = vmatpush.bf16.msra.mxu0 %v268
  %345 = vmatpush.bf16.msra.mxu0 %v267
  %346 = vmatpush.bf16.msra.mxu0 %v266
  %347 = vmatpush.bf16.msra.mxu0 %v265
  %348 = vmatmul.bf16.gmra.mxu0 %v114
  %v349 = vpop.f32.mrf.mxu0
  %v350 = vadd.f32 %v331, %v349
  %v351 = vpop.f32.mrf.mxu0
  %v352 = vadd.f32 %v333, %v351
  %353 = vmatmul.bf16.gmra.mxu0 %v118
  %v354 = vpop.f32.mrf.mxu0
  %v355 = vadd.f32 %v336, %v354
  %v356 = vpop.f32.mrf.mxu0
  %v357 = vadd.f32 %v338, %v356
  %358 = vdwg.mxu0
  %359 = vmatpush.bf16.msra.mxu0 %v280
  %360 = vmatpush.bf16.msra.mxu0 %v279
  %361 = vmatpush.bf16.msra.mxu0 %v278
  %362 = vmatpush.bf16.msra.mxu0 %v277
  %363 = vmatpush.bf16.msra.mxu0 %v276
  %364 = vmatpush.bf16.msra.mxu0 %v275
  %365 = vmatpush.bf16.msra.mxu0 %v274
  %366 = vmatpush.bf16.msra.mxu0 %v273
  %367 = vmatmul.bf16.gmra.mxu0 %v115
  %v368 = vpop.f32.mrf.mxu0
  %v369 = vadd.f32 %v350, %v368
  %v370 = vpop.f32.mrf.mxu0
  %v371 = vadd.f32 %v352, %v370
  %372 = vmatmul.bf16.gmra.mxu0 %v119
  %v373 = vpop.f32.mrf.mxu0
  %v374 = vadd.f32 %v355, %v373
  %v375 = vpop.f32.mrf.mxu0
  %v376 = vadd.f32 %v357, %v375
  %377 = vdwg.mxu0
  %378 = vmatpush.bf16.msra.mxu0 %v288
  %379 = vmatpush.bf16.msra.mxu0 %v287
  %380 = vmatpush.bf16.msra.mxu0 %v286
  %381 = vmatpush.bf16.msra.mxu0 %v285
  %382 = vmatpush.bf16.msra.mxu0 %v284
  %383 = vmatpush.bf16.msra.mxu0 %v283
  %384 = vmatpush.bf16.msra.mxu0 %v282
  %385 = vmatpush.bf16.msra.mxu0 %v281
  %386 = vmatmul.bf16.gmra.mxu0 %v116
  %v387 = vpop.f32.mrf.mxu0
  %v388 = vadd.f32 %v369, %v387
  %v389 = vpop.f32.mrf.mxu0
  %v390 = vadd.f32 %v371, %v389
  %391 = vmatmul.bf16.gmra.mxu0 %v120
  %v392 = vpop.f32.mrf.mxu0
  %v393 = vadd.f32 %v374, %v392
  %v394 = vpop.f32.mrf.mxu0
  %v395 = vadd.f32 %v376, %v394
  %396 = vdwg.mxu0
  %vm397 = vcmask 523264
  %v398 = vsel %vm397, %v388, 0.0
  %v399 = vsel %vm397, %v390, 0.0
  %v400 = vadd.f32 %v398, %v399
  %v401 = vsel %vm397, %v393, 0.0
  %v402 = vadd.f32 %v400, %v401
  %v403 = vsel %vm397, %v395, 0.0
  %v404 = vadd.f32 %v402, %v403
  %v405 = vrot.slane %v404, 4
  %v406 = vadd.f32 %v404, %v405
  %v407 = vrot.slane %v406, 2
  %v408 = vadd.f32 %v406, %v407
  %v409 = vrot.slane %v408, 1
  %v410 = vadd.f32 %v408, %v409
  %v411 = vrcp.pop 32.0
  %v412 = vmul.f32 32.0, %v411
  %v413 = vsub.f32 1.0, %v412
  %v414 = vmul.f32 %v411, %v413
  %v415 = vadd.f32 %v411, %v414
  %vm416 = vweird.f32 %v411
  %v417 = vsel %vm416, %v411, %v415
  %v418 = vmul.f32 %v410, %v417
  %v419 = vsub.f32 %v388, %v418
  %v420 = vsub.f32 %v390, %v418
  %v421 = vsub.f32 %v393, %v418
  %v422 = vsub.f32 %v395, %v418
  %v423 = vmul.f32 %v419, %v419
  %v424 = vmul.f32 %v420, %v420
  %v425 = vmul.f32 %v421, %v421
  %v426 = vmul.f32 %v422, %v422
  %v427 = vsel %vm397, %v423, 0.0
  %v428 = vsel %vm397, %v424, 0.0
  %v429 = vadd.f32 %v427, %v428
  %v430 = vsel %vm397, %v425, 0.0
  %v431 = vadd.f32 %v429, %v430
  %v432 = vsel %vm397, %v426, 0.0
  %v433 = vadd.f32 %v431, %v432
  %v434 = vrot.slane %v433, 4
  %v435 = vadd.f32 %v433, %v434
  %v436 = vrot.slane %v435, 2
  %v437 = vadd.f32 %v435, %v436
  %v438 = vrot.slane %v437, 1
  %v439 = vadd.f32 %v437, %v438
  %v440 = vmul.f32 %v439, %v417
  %v441 = vld [vmem:[%s2] sm:$0x1]
  %v442 = vadd.f32 %v440, 1e-05
  %v443 = vrsqrt.pop %v442
  %v444 = vmul.f32 %v443, %v442
  %v445 = vmul.f32 %v444, %v443
  %v446 = vmul.f32 0.5, %v445
  %v447 = vsub.f32 1.5, %v446
  %v448 = vmul.f32 %v443, %v447
  %vm449 = vweird.f32 %v442
  %vm450 = vweird.f32 %v443
  %vm451 = vmor %vm449, %vm450
  %v452 = vsel %vm451, %v443, %v448
  %v453 = vmul.f32 %v441, %v452
  %v455 = vperm.slane %v453, 0
  %v457 = vmul.f32 %v419, %v455
  %v458 = vmul.f32 %v420, %v455
  %v459 = vmul.f32 %v421, %v455
  %v460 = vmul.f32 %v422, %v455
  %v461 = vld [vmem:[%s3] sm:$0x1]
  %v463 = vperm.slane %v461, 0
  %v465 = vadd.f32 %v457, %v463
  %v466 = vadd.f32 %v458, %v463
  %v467 = vadd.f32 %v459, %v463
  %v468 = vadd.f32 %v460, %v463
  %v469 = vmul.f32 %v465, 0.2
  %v470 = vmul.f32 %v466, 0.2
  %v471 = vmul.f32 %v467, 0.2
  %v472 = vmul.f32 %v468, 0.2
  %v473 = vmax.f32 %v465, %v469
  %v474 = vmax.f32 %v466, %v470
  %v475 = vmax.f32 %v467, %v471
  %v476 = vmax.f32 %v468, %v472
  %v477 = vpack.c.bf16 %v473, %v473
  %v478 = vpack.c.bf16 %v474, %v474
  %v479 = vpack.c.bf16 %v475, %v475
  %v480 = vpack.c.bf16 %v476, %v476
  %vm481 = vcmask 519168
  %482 = vst.msk [vmem:[%s4] sm:$0xf] %vm481, %v477
  %483 = vst.msk [vmem:[%s4 + $0x4] sm:$0xf] %vm481, %v478
  %484 = vst.msk [vmem:[%s4 + $0x8] sm:$0xf] %vm481, %v479
  %485 = vst.msk [vmem:[%s4 + $0xc] sm:$0xf] %vm481, %v480
  // Predicated region
  $region18: #{classifier_forward.5} parent=0 // pred_check
    _
  $region19: #{classifier_forward.5} parent=0 // pred_check_branch
    %487 = sbr.rel (0) target = $region21
  $region20: #{classifier_forward.5} parent=0 // pred_region
    _
  $region21: #{classifier_forward.5} parent=0 // pred_fallthru
    _
  // Predicated region
  $region22: #{classifier_forward.5} parent=0 // pred_check
    _
  $region23: #{classifier_forward.5} parent=0 // pred_check_branch
    %489 = sbr.rel (0) target = $region25
  $region24: #{classifier_forward.5} parent=0 // pred_region
    _
  $region25: #{classifier_forward.5} parent=0 // pred_fallthru
    _

</llo_original>
